<compile_context>
chip_gen: v7x
topology: tpu7x:2x2x1
jax: 0.10.0
libtpu: 0.0.40
codegen_flags: <defaults>
</compile_context>

<pallas_src>
import functools

import jax
import jax.numpy as jnp
from jax import lax
from jax.experimental import pallas as pl
from jax.experimental.pallas import tpu as pltpu


def _resblock_kernel(x_ref, w1_ref, b1_ref, w2_ref, b2_ref, o_ref,
                     pad_sc, col_sc, *, H, W, C, K, res_scale, compute_dtype):
    """One batch element per grid step.

    x_ref  : (1, H, W, C)     unpadded NHWC input tile (f32)
    w1_ref : (K*K*C, C)       conv1 weights, im2col-packed (compute_dtype)
    b1_ref : (1, C)           conv1 bias (f32)
    w2_ref : (C, K*K*C)       conv2 weights, transposed im2col pack
    b2_ref : (C, 1)           conv2 bias (f32)
    o_ref  : (1, C, H*W)      output tile, NCHW-flattened (lane-dense)
    pad_sc : (H+2p, W+2p, C)  padded scratch, reused for x and relu(conv1(x))
    col_sc : (H*W, K*K*C)     im2col slab scratch (f32)
    """
    pad = K // 2
    Hp, Wp = H + 2 * pad, W + 2 * pad
    HW = H * W
    f32 = jnp.float32

    # --- zero only the halo border strips (the interior is fully overwritten
    # below).  Done every step: 4 thin stores, and correct even when the
    # "parallel" batch axis is sharded across TensorCores.
    pad_sc[0:pad, :, :] = jnp.zeros((pad, Wp, C), f32)
    pad_sc[Hp - pad:Hp, :, :] = jnp.zeros((pad, Wp, C), f32)
    pad_sc[:, 0:pad, :] = jnp.zeros((Hp, pad, C), f32)
    pad_sc[:, Wp - pad:Wp, :] = jnp.zeros((Hp, pad, C), f32)

    def build_col():
        # Assemble the (H*W, K*K*C) im2col slab from the padded scratch.
        # Column order (kh, kw, c) matches the host-side weight packing.
        for kh in range(K):
            for kw in range(K):
                j = (kh * K + kw) * C
                patch = pad_sc[kh:kh + H, kw:kw + W, :].reshape(HW, C)
                col_sc[:, j:j + C] = patch
        return col_sc[...].astype(compute_dtype)

    # ---- conv1 + bias + ReLU: a single (HW, KKC) x (KKC, C) MXU matmul ----
    pad_sc[pad:pad + H, pad:pad + W, :] = x_ref[0].astype(f32)
    col1 = build_col()
    h1 = jnp.dot(col1, w1_ref[...], preferred_element_type=f32)     # (HW, C)
    h1 = jnp.maximum(h1 + b1_ref[...], 0.0)

    # ---- conv2 + bias, transposed orientation: (C, KKC) x (HW, KKC)^T ----
    pad_sc[pad:pad + H, pad:pad + W, :] = h1.reshape(H, W, C)
    col2 = build_col()
    res_t = lax.dot_general(w2_ref[...], col2,
                            dimension_numbers=(((1,), (1,)), ((), ())),
                            preferred_element_type=f32)             # (C, HW)
    res_t = res_t + b2_ref[...]
    if res_scale != 1.0:
        res_t = res_t * res_scale

    # ---- residual: transpose x (HW,C) -> (C,HW) on the MXU (exact, f32) ----
    x2d = x_ref[0].reshape(HW, C).astype(f32)
    eye = (lax.broadcasted_iota(jnp.int32, (C, C), 0) ==
           lax.broadcasted_iota(jnp.int32, (C, C), 1)).astype(f32)
    x_t = lax.dot_general(eye, x2d,
                          dimension_numbers=(((1,), (1,)), ((), ())),
                          preferred_element_type=f32)               # (C, HW)

    o_ref[0] = (res_t + x_t).astype(o_ref.dtype)


def resblock_forward(x_nchw, w1, b1, w2, b2, *, res_scale=1.0,
                     compute_dtype=jnp.bfloat16):
    """ResBlock forward.  x_nchw: (N, C, H, W); w*: HWIO (K, K, C, C); b*: (C,).

    The kernel consumes NHWC (channels minor, as the im2col matmuls need) and
    emits NCHW-flattened (N, C, H*W) lane-dense output directly, so the
    wrapper needs only one input transpose and a free reshape on the output
    (no wrapper-side padding at all).
    """
    N, C, H, W = x_nchw.shape
    K = w1.shape[0]
    pad = K // 2
    Hp, Wp = H + 2 * pad, W + 2 * pad
    HW = H * W
    KKC = K * K * C

    x_nhwc = jnp.transpose(x_nchw, (0, 2, 3, 1))

    # Host-side weight packing into 2-D, grid-resident im2col slabs.
    w1_col = w1.reshape(KKC, C).astype(compute_dtype)      # (K*K*C, Cout)
    w2_row = w2.reshape(KKC, C).T.astype(compute_dtype)    # (Cout, K*K*C)
    b1_2d = b1.reshape(1, C).astype(jnp.float32)
    b2_2d = b2.reshape(C, 1).astype(jnp.float32)

    kernel = functools.partial(
        _resblock_kernel, H=H, W=W, C=C, K=K,
        res_scale=float(res_scale), compute_dtype=compute_dtype)

    out_flat = pl.pallas_call(
        kernel,
        out_shape=jax.ShapeDtypeStruct((N, C, HW), x_nchw.dtype),
        grid_spec=pltpu.PrefetchScalarGridSpec(
            num_scalar_prefetch=0,
            grid=(N,),
            in_specs=[
                pl.BlockSpec((1, H, W, C), lambda n: (n, 0, 0, 0)),
                pl.BlockSpec((KKC, C), lambda n: (0, 0)),
                pl.BlockSpec((1, C), lambda n: (0, 0)),
                pl.BlockSpec((C, KKC), lambda n: (0, 0)),
                pl.BlockSpec((C, 1), lambda n: (0, 0)),
            ],
            out_specs=pl.BlockSpec((1, C, HW), lambda n: (n, 0, 0)),
            scratch_shapes=[
                pltpu.VMEM((Hp, Wp, C), jnp.float32),   # padded x / hidden act
                pltpu.VMEM((HW, KKC), jnp.float32),     # im2col slab
            ],
        ),
        compiler_params=pltpu.CompilerParams(
            dimension_semantics=("parallel",),
            vmem_limit_bytes=64 * 1024 * 1024,
        ),
    )(x_nhwc, w1_col, b1_2d, w2_row, b2_2d)

    return out_flat.reshape(N, C, H, W)


def resblock_reference(x_nchw, w1, b1, w2, b2, *, res_scale=1.0):
    """Pure-JAX reference (matches PyTorch Conv2d 'same' semantics)."""
    x = jnp.transpose(x_nchw, (0, 2, 3, 1))
    dn = ('NHWC', 'HWIO', 'NHWC')
    h = lax.conv_general_dilated(x, w1, (1, 1), 'SAME',
                                 dimension_numbers=dn) + b1
    h = jnp.maximum(h, 0.0)
    r = lax.conv_general_dilated(h, w2, (1, 1), 'SAME',
                                 dimension_numbers=dn) + b2
    out = r * res_scale + x
    return jnp.transpose(out, (0, 3, 1, 2))


if __name__ == "__main__":
    # Small shapes consistent with ResBlock(conv, n_feat=4, kernel_size=3)
    N, C, H, W, K = 2, 4, 16, 16, 3

    key = jax.random.PRNGKey(0)
    kx, k1, kb1, k2, kb2 = jax.random.split(key, 5)

    x = jax.random.normal(kx, (N, C, H, W), dtype=jnp.float32)
    # Synthetic parameters stored directly in HWIO (a real PyTorch OIHW
    # checkpoint would be transposed with w.transpose(2, 3, 1, 0)).
    w1 = 0.1 * jax.random.normal(k1, (K, K, C, C), dtype=jnp.float32)
    b1 = 0.1 * jax.random.normal(kb1, (C,), dtype=jnp.float32)
    w2 = 0.1 * jax.random.normal(k2, (K, K, C, C), dtype=jnp.float32)
    b2 = 0.1 * jax.random.normal(kb2, (C,), dtype=jnp.float32)

    # Default path: bf16 MXU operands, f32 accumulation.
    out_bf16 = jax.block_until_ready(
        resblock_forward(x, w1, b1, w2, b2, res_scale=1.0,
                         compute_dtype=jnp.bfloat16))
    ref1 = resblock_reference(x, w1, b1, w2, b2, res_scale=1.0)
    assert out_bf16.shape == (N, C, H, W)
    assert jnp.allclose(out_bf16, ref1, atol=3e-2, rtol=3e-2), (
        float(jnp.max(jnp.abs(out_bf16 - ref1))))

    # Full-f32 path (also exercises res_scale != 1), tight tolerance.
    out_f32 = jax.block_until_ready(
        resblock_forward(x, w1, b1, w2, b2, res_scale=0.1,
                         compute_dtype=jnp.float32))
    ref2 = resblock_reference(x, w1, b1, w2, b2, res_scale=0.1)
    assert jnp.allclose(out_f32, ref2, atol=2e-4, rtol=2e-4), (
        float(jnp.max(jnp.abs(out_f32 - ref2))))

    print("KERNEL_OK")
</pallas_src>

<mosaic_0001>
module attributes {stable_mosaic.version = 11 : i64} {
  func.func @_resblock_kernel(%arg0: i32, %arg1: memref<1x16x16x4xf32, #tpu.memory_space<vmem>>, %arg2: memref<36x4xbf16, #tpu.memory_space<vmem>>, %arg3: memref<1x4xf32, #tpu.memory_space<vmem>>, %arg4: memref<4x36xbf16, #tpu.memory_space<vmem>>, %arg5: memref<4x1xf32, #tpu.memory_space<vmem>>, %arg6: memref<1x4x256xf32, #tpu.memory_space<vmem>>, %arg7: memref<18x18x4xf32, #tpu.memory_space<vmem>>, %arg8: memref<256x36xf32, #tpu.memory_space<vmem>>) attributes {dimension_semantics = [#tpu.dimension_semantics<parallel>], iteration_bounds = array<i64: 2>, scalar_prefetch = 0 : i64, scratch_operands = 2 : i64, tpu.core_type = #tpu.core_type<tc>, window_params = [{transform_indices = @transform_0, window_bounds = array<i64: 1, 16, 16, 4>}, {pipeline_mode = #tpu.pipeline_mode<synchronous>, transform_indices = @transform_1, window_bounds = array<i64: 36, 4>}, {pipeline_mode = #tpu.pipeline_mode<synchronous>, transform_indices = @transform_2, window_bounds = array<i64: 1, 4>}, {pipeline_mode = #tpu.pipeline_mode<synchronous>, transform_indices = @transform_3, window_bounds = array<i64: 4, 36>}, {pipeline_mode = #tpu.pipeline_mode<synchronous>, transform_indices = @transform_4, window_bounds = array<i64: 4, 1>}, {transform_indices = @transform_5, window_bounds = array<i64: 1, 4, 256>}]} {
    %cst = arith.constant 0.000000e+00 : f32
    %0 = vector.broadcast %cst : f32 to vector<1x18x4xf32>
    %c0 = arith.constant 0 : index
    %c0_0 = arith.constant 0 : index
    %c0_1 = arith.constant 0 : index
    %1 = vector.load %arg7[%c0, %c0_0, %c0_1] : memref<18x18x4xf32, #tpu.memory_space<vmem>>, vector<1x18x4xf32>
    tpu.vector_store %arg7[%c0, %c0_0, %c0_1], %0 {strides = array<i32>} : memref<18x18x4xf32, #tpu.memory_space<vmem>>, vector<1x18x4xf32>,
    %cst_2 = arith.constant 0.000000e+00 : f32
    %2 = vector.broadcast %cst_2 : f32 to vector<1x18x4xf32>
    %c17 = arith.constant 17 : index
    %c0_3 = arith.constant 0 : index
    %c0_4 = arith.constant 0 : index
    %3 = vector.load %arg7[%c17, %c0_3, %c0_4] : memref<18x18x4xf32, #tpu.memory_space<vmem>>, vector<1x18x4xf32>
    tpu.vector_store %arg7[%c17, %c0_3, %c0_4], %2 {strides = array<i32>} : memref<18x18x4xf32, #tpu.memory_space<vmem>>, vector<1x18x4xf32>,
    %cst_5 = arith.constant 0.000000e+00 : f32
    %4 = vector.broadcast %cst_5 : f32 to vector<18x1x4xf32>
    %c0_6 = arith.constant 0 : index
    %c0_7 = arith.constant 0 : index
    %c0_8 = arith.constant 0 : index
    %5 = vector.load %arg7[%c0_6, %c0_7, %c0_8] : memref<18x18x4xf32, #tpu.memory_space<vmem>>, vector<18x1x4xf32>
    tpu.vector_store %arg7[%c0_6, %c0_7, %c0_8], %4 {strides = array<i32>} : memref<18x18x4xf32, #tpu.memory_space<vmem>>, vector<18x1x4xf32>,
    %cst_9 = arith.constant 0.000000e+00 : f32
    %6 = vector.broadcast %cst_9 : f32 to vector<18x1x4xf32>
    %c0_10 = arith.constant 0 : index
    %c17_11 = arith.constant 17 : index
    %c0_12 = arith.constant 0 : index
    %7 = vector.load %arg7[%c0_10, %c17_11, %c0_12] : memref<18x18x4xf32, #tpu.memory_space<vmem>>, vector<18x1x4xf32>
    tpu.vector_store %arg7[%c0_10, %c17_11, %c0_12], %6 {strides = array<i32>} : memref<18x18x4xf32, #tpu.memory_space<vmem>>, vector<18x1x4xf32>,
    %c0_13 = arith.constant 0 : index
    %c0_14 = arith.constant 0 : index
    %c0_15 = arith.constant 0 : index
    %c0_16 = arith.constant 0 : index
    %8 = vector.load %arg1[%c0_13, %c0_14, %c0_15, %c0_16] : memref<1x16x16x4xf32, #tpu.memory_space<vmem>>, vector<1x16x16x4xf32>
    %9 = vector.shape_cast %8 : vector<1x16x16x4xf32> to vector<16x16x4xf32>
    %c1 = arith.constant 1 : index
    %c1_17 = arith.constant 1 : index
    %c0_18 = arith.constant 0 : index
    %10 = vector.load %arg7[%c1, %c1_17, %c0_18] : memref<18x18x4xf32, #tpu.memory_space<vmem>>, vector<16x16x4xf32>
    tpu.vector_store %arg7[%c1, %c1_17, %c0_18], %9 {strides = array<i32>} : memref<18x18x4xf32, #tpu.memory_space<vmem>>, vector<16x16x4xf32>,
    %c0_19 = arith.constant 0 : index
    %c0_20 = arith.constant 0 : index
    %c0_21 = arith.constant 0 : index
    %11 = vector.load %arg7[%c0_19, %c0_20, %c0_21] : memref<18x18x4xf32, #tpu.memory_space<vmem>>, vector<16x16x4xf32>
    %12 = vector.shape_cast %11 : vector<16x16x4xf32> to vector<256x4xf32>
    %c0_22 = arith.constant 0 : index
    %c0_23 = arith.constant 0 : index
    %13 = vector.load %arg8[%c0_22, %c0_23] : memref<256x36xf32, #tpu.memory_space<vmem>>, vector<256x4xf32>
    tpu.vector_store %arg8[%c0_22, %c0_23], %12 {strides = array<i32>} : memref<256x36xf32, #tpu.memory_space<vmem>>, vector<256x4xf32>,
    %c0_24 = arith.constant 0 : index
    %c1_25 = arith.constant 1 : index
    %c0_26 = arith.constant 0 : index
    %14 = vector.load %arg7[%c0_24, %c1_25, %c0_26] : memref<18x18x4xf32, #tpu.memory_space<vmem>>, vector<16x16x4xf32>
    %15 = vector.shape_cast %14 : vector<16x16x4xf32> to vector<256x4xf32>
    %c0_27 = arith.constant 0 : index
    %c4 = arith.constant 4 : index
    %16 = vector.load %arg8[%c0_27, %c4] : memref<256x36xf32, #tpu.memory_space<vmem>>, vector<256x4xf32>
    tpu.vector_store %arg8[%c0_27, %c4], %15 {strides = array<i32>} : memref<256x36xf32, #tpu.memory_space<vmem>>, vector<256x4xf32>,
    %c0_28 = arith.constant 0 : index
    %c2 = arith.constant 2 : index
    %c0_29 = arith.constant 0 : index
    %17 = vector.load %arg7[%c0_28, %c2, %c0_29] : memref<18x18x4xf32, #tpu.memory_space<vmem>>, vector<16x16x4xf32>
    %18 = vector.shape_cast %17 : vector<16x16x4xf32> to vector<256x4xf32>
    %c0_30 = arith.constant 0 : index
    %c8 = arith.constant 8 : index
    %19 = vector.load %arg8[%c0_30, %c8] : memref<256x36xf32, #tpu.memory_space<vmem>>, vector<256x4xf32>
    tpu.vector_store %arg8[%c0_30, %c8], %18 {strides = array<i32>} : memref<256x36xf32, #tpu.memory_space<vmem>>, vector<256x4xf32>,
    %c1_31 = arith.constant 1 : index
    %c0_32 = arith.constant 0 : index
    %c0_33 = arith.constant 0 : index
    %20 = vector.load %arg7[%c1_31, %c0_32, %c0_33] : memref<18x18x4xf32, #tpu.memory_space<vmem>>, vector<16x16x4xf32>
    %21 = vector.shape_cast %20 : vector<16x16x4xf32> to vector<256x4xf32>
    %c0_34 = arith.constant 0 : index
    %c12 = arith.constant 12 : index
    %22 = vector.load %arg8[%c0_34, %c12] : memref<256x36xf32, #tpu.memory_space<vmem>>, vector<256x4xf32>
    tpu.vector_store %arg8[%c0_34, %c12], %21 {strides = array<i32>} : memref<256x36xf32, #tpu.memory_space<vmem>>, vector<256x4xf32>,
    %c1_35 = arith.constant 1 : index
    %c1_36 = arith.constant 1 : index
    %c0_37 = arith.constant 0 : index
    %23 = vector.load %arg7[%c1_35, %c1_36, %c0_37] : memref<18x18x4xf32, #tpu.memory_space<vmem>>, vector<16x16x4xf32>
    %24 = vector.shape_cast %23 : vector<16x16x4xf32> to vector<256x4xf32>
    %c0_38 = arith.constant 0 : index
    %c16 = arith.constant 16 : index
    %25 = vector.load %arg8[%c0_38, %c16] : memref<256x36xf32, #tpu.memory_space<vmem>>, vector<256x4xf32>
    tpu.vector_store %arg8[%c0_38, %c16], %24 {strides = array<i32>} : memref<256x36xf32, #tpu.memory_space<vmem>>, vector<256x4xf32>,
    %c1_39 = arith.constant 1 : index
    %c2_40 = arith.constant 2 : index
    %c0_41 = arith.constant 0 : index
    %26 = vector.load %arg7[%c1_39, %c2_40, %c0_41] : memref<18x18x4xf32, #tpu.memory_space<vmem>>, vector<16x16x4xf32>
    %27 = vector.shape_cast %26 : vector<16x16x4xf32> to vector<256x4xf32>
    %c0_42 = arith.constant 0 : index
    %c20 = arith.constant 20 : index
    %28 = vector.load %arg8[%c0_42, %c20] : memref<256x36xf32, #tpu.memory_space<vmem>>, vector<256x4xf32>
    tpu.vector_store %arg8[%c0_42, %c20], %27 {strides = array<i32>} : memref<256x36xf32, #tpu.memory_space<vmem>>, vector<256x4xf32>,
    %c2_43 = arith.constant 2 : index
    %c0_44 = arith.constant 0 : index
    %c0_45 = arith.constant 0 : index
    %29 = vector.load %arg7[%c2_43, %c0_44, %c0_45] : memref<18x18x4xf32, #tpu.memory_space<vmem>>, vector<16x16x4xf32>
    %30 = vector.shape_cast %29 : vector<16x16x4xf32> to vector<256x4xf32>
    %c0_46 = arith.constant 0 : index
    %c24 = arith.constant 24 : index
    %31 = vector.load %arg8[%c0_46, %c24] : memref<256x36xf32, #tpu.memory_space<vmem>>, vector<256x4xf32>
    tpu.vector_store %arg8[%c0_46, %c24], %30 {strides = array<i32>} : memref<256x36xf32, #tpu.memory_space<vmem>>, vector<256x4xf32>,
    %c2_47 = arith.constant 2 : index
    %c1_48 = arith.constant 1 : index
    %c0_49 = arith.constant 0 : index
    %32 = vector.load %arg7[%c2_47, %c1_48, %c0_49] : memref<18x18x4xf32, #tpu.memory_space<vmem>>, vector<16x16x4xf32>
    %33 = vector.shape_cast %32 : vector<16x16x4xf32> to vector<256x4xf32>
    %c0_50 = arith.constant 0 : index
    %c28 = arith.constant 28 : index
    %34 = vector.load %arg8[%c0_50, %c28] : memref<256x36xf32, #tpu.memory_space<vmem>>, vector<256x4xf32>
    tpu.vector_store %arg8[%c0_50, %c28], %33 {strides = array<i32>} : memref<256x36xf32, #tpu.memory_space<vmem>>, vector<256x4xf32>,
    %c2_51 = arith.constant 2 : index
    %c2_52 = arith.constant 2 : index
    %c0_53 = arith.constant 0 : index
    %35 = vector.load %arg7[%c2_51, %c2_52, %c0_53] : memref<18x18x4xf32, #tpu.memory_space<vmem>>, vector<16x16x4xf32>
    %36 = vector.shape_cast %35 : vector<16x16x4xf32> to vector<256x4xf32>
    %c0_54 = arith.constant 0 : index
    %c32 = arith.constant 32 : index
    %37 = vector.load %arg8[%c0_54, %c32] : memref<256x36xf32, #tpu.memory_space<vmem>>, vector<256x4xf32>
    tpu.vector_store %arg8[%c0_54, %c32], %36 {strides = array<i32>} : memref<256x36xf32, #tpu.memory_space<vmem>>, vector<256x4xf32>,
    %c0_55 = arith.constant 0 : index
    %c0_56 = arith.constant 0 : index
    %38 = vector.load %arg8[%c0_55, %c0_56] : memref<256x36xf32, #tpu.memory_space<vmem>>, vector<256x36xf32>
    %39 = arith.truncf %38 : vector<256x36xf32> to vector<256x36xbf16>
    %c0_57 = arith.constant 0 : index
    %c0_58 = arith.constant 0 : index
    %40 = vector.load %arg2[%c0_57, %c0_58] : memref<36x4xbf16, #tpu.memory_space<vmem>>, vector<36x4xbf16>
    %cst_59 = arith.constant dense<0.000000e+00> : vector<256x4xf32>
    %41 = tpu.matmul %39, %40, %cst_59 {dimension_numbers = #tpu.dot_dimension_numbers<[1], [0], [0], [1], [0, 0, 1, 1], [], []>} : vector<256x36xbf16>, vector<36x4xbf16>, vector<256x4xf32> -> vector<256x4xf32>
    %c0_60 = arith.constant 0 : index
    %c0_61 = arith.constant 0 : index
    %42 = vector.load %arg3[%c0_60, %c0_61] : memref<1x4xf32, #tpu.memory_space<vmem>>, vector<1x4xf32>
    %43 = vector.broadcast %42 : vector<1x4xf32> to vector<256x4xf32>
    %44 = arith.addf %41, %43 : vector<256x4xf32>
    %cst_62 = arith.constant 0.000000e+00 : f32
    %45 = vector.broadcast %cst_62 : f32 to vector<256x4xf32>
    %46 = arith.maximumf %44, %45 : vector<256x4xf32>
    %47 = vector.shape_cast %46 : vector<256x4xf32> to vector<16x16x4xf32>
    %c1_63 = arith.constant 1 : index
    %c1_64 = arith.constant 1 : index
    %c0_65 = arith.constant 0 : index
    %48 = vector.load %arg7[%c1_63, %c1_64, %c0_65] : memref<18x18x4xf32, #tpu.memory_space<vmem>>, vector<16x16x4xf32>
    tpu.vector_store %arg7[%c1_63, %c1_64, %c0_65], %47 {strides = array<i32>} : memref<18x18x4xf32, #tpu.memory_space<vmem>>, vector<16x16x4xf32>,
    %c0_66 = arith.constant 0 : index
    %c0_67 = arith.constant 0 : index
    %c0_68 = arith.constant 0 : index
    %49 = vector.load %arg7[%c0_66, %c0_67, %c0_68] : memref<18x18x4xf32, #tpu.memory_space<vmem>>, vector<16x16x4xf32>
    %50 = vector.shape_cast %49 : vector<16x16x4xf32> to vector<256x4xf32>
    %c0_69 = arith.constant 0 : index
    %c0_70 = arith.constant 0 : index
    %51 = vector.load %arg8[%c0_69, %c0_70] : memref<256x36xf32, #tpu.memory_space<vmem>>, vector<256x4xf32>
    tpu.vector_store %arg8[%c0_69, %c0_70], %50 {strides = array<i32>} : memref<256x36xf32, #tpu.memory_space<vmem>>, vector<256x4xf32>,
    %c0_71 = arith.constant 0 : index
    %c1_72 = arith.constant 1 : index
    %c0_73 = arith.constant 0 : index
    %52 = vector.load %arg7[%c0_71, %c1_72, %c0_73] : memref<18x18x4xf32, #tpu.memory_space<vmem>>, vector<16x16x4xf32>
    %53 = vector.shape_cast %52 : vector<16x16x4xf32> to vector<256x4xf32>
    %c0_74 = arith.constant 0 : index
    %c4_75 = arith.constant 4 : index
    %54 = vector.load %arg8[%c0_74, %c4_75] : memref<256x36xf32, #tpu.memory_space<vmem>>, vector<256x4xf32>
    tpu.vector_store %arg8[%c0_74, %c4_75], %53 {strides = array<i32>} : memref<256x36xf32, #tpu.memory_space<vmem>>, vector<256x4xf32>,
    %c0_76 = arith.constant 0 : index
    %c2_77 = arith.constant 2 : index
    %c0_78 = arith.constant 0 : index
    %55 = vector.load %arg7[%c0_76, %c2_77, %c0_78] : memref<18x18x4xf32, #tpu.memory_space<vmem>>, vector<16x16x4xf32>
    %56 = vector.shape_cast %55 : vector<16x16x4xf32> to vector<256x4xf32>
    %c0_79 = arith.constant 0 : index
    %c8_80 = arith.constant 8 : index
    %57 = vector.load %arg8[%c0_79, %c8_80] : memref<256x36xf32, #tpu.memory_space<vmem>>, vector<256x4xf32>
    tpu.vector_store %arg8[%c0_79, %c8_80], %56 {strides = array<i32>} : memref<256x36xf32, #tpu.memory_space<vmem>>, vector<256x4xf32>,
    %c1_81 = arith.constant 1 : index
    %c0_82 = arith.constant 0 : index
    %c0_83 = arith.constant 0 : index
    %58 = vector.load %arg7[%c1_81, %c0_82, %c0_83] : memref<18x18x4xf32, #tpu.memory_space<vmem>>, vector<16x16x4xf32>
    %59 = vector.shape_cast %58 : vector<16x16x4xf32> to vector<256x4xf32>
    %c0_84 = arith.constant 0 : index
    %c12_85 = arith.constant 12 : index
    %60 = vector.load %arg8[%c0_84, %c12_85] : memref<256x36xf32, #tpu.memory_space<vmem>>, vector<256x4xf32>
    tpu.vector_store %arg8[%c0_84, %c12_85], %59 {strides = array<i32>} : memref<256x36xf32, #tpu.memory_space<vmem>>, vector<256x4xf32>,
    %c1_86 = arith.constant 1 : index
    %c1_87 = arith.constant 1 : index
    %c0_88 = arith.constant 0 : index
    %61 = vector.load %arg7[%c1_86, %c1_87, %c0_88] : memref<18x18x4xf32, #tpu.memory_space<vmem>>, vector<16x16x4xf32>
    %62 = vector.shape_cast %61 : vector<16x16x4xf32> to vector<256x4xf32>
    %c0_89 = arith.constant 0 : index
    %c16_90 = arith.constant 16 : index
    %63 = vector.load %arg8[%c0_89, %c16_90] : memref<256x36xf32, #tpu.memory_space<vmem>>, vector<256x4xf32>
    tpu.vector_store %arg8[%c0_89, %c16_90], %62 {strides = array<i32>} : memref<256x36xf32, #tpu.memory_space<vmem>>, vector<256x4xf32>,
    %c1_91 = arith.constant 1 : index
    %c2_92 = arith.constant 2 : index
    %c0_93 = arith.constant 0 : index
    %64 = vector.load %arg7[%c1_91, %c2_92, %c0_93] : memref<18x18x4xf32, #tpu.memory_space<vmem>>, vector<16x16x4xf32>
    %65 = vector.shape_cast %64 : vector<16x16x4xf32> to vector<256x4xf32>
    %c0_94 = arith.constant 0 : index
    %c20_95 = arith.constant 20 : index
    %66 = vector.load %arg8[%c0_94, %c20_95] : memref<256x36xf32, #tpu.memory_space<vmem>>, vector<256x4xf32>
    tpu.vector_store %arg8[%c0_94, %c20_95], %65 {strides = array<i32>} : memref<256x36xf32, #tpu.memory_space<vmem>>, vector<256x4xf32>,
    %c2_96 = arith.constant 2 : index
    %c0_97 = arith.constant 0 : index
    %c0_98 = arith.constant 0 : index
    %67 = vector.load %arg7[%c2_96, %c0_97, %c0_98] : memref<18x18x4xf32, #tpu.memory_space<vmem>>, vector<16x16x4xf32>
    %68 = vector.shape_cast %67 : vector<16x16x4xf32> to vector<256x4xf32>
    %c0_99 = arith.constant 0 : index
    %c24_100 = arith.constant 24 : index
    %69 = vector.load %arg8[%c0_99, %c24_100] : memref<256x36xf32, #tpu.memory_space<vmem>>, vector<256x4xf32>
    tpu.vector_store %arg8[%c0_99, %c24_100], %68 {strides = array<i32>} : memref<256x36xf32, #tpu.memory_space<vmem>>, vector<256x4xf32>,
    %c2_101 = arith.constant 2 : index
    %c1_102 = arith.constant 1 : index
    %c0_103 = arith.constant 0 : index
    %70 = vector.load %arg7[%c2_101, %c1_102, %c0_103] : memref<18x18x4xf32, #tpu.memory_space<vmem>>, vector<16x16x4xf32>
    %71 = vector.shape_cast %70 : vector<16x16x4xf32> to vector<256x4xf32>
    %c0_104 = arith.constant 0 : index
    %c28_105 = arith.constant 28 : index
    %72 = vector.load %arg8[%c0_104, %c28_105] : memref<256x36xf32, #tpu.memory_space<vmem>>, vector<256x4xf32>
    tpu.vector_store %arg8[%c0_104, %c28_105], %71 {strides = array<i32>} : memref<256x36xf32, #tpu.memory_space<vmem>>, vector<256x4xf32>,
    %c2_106 = arith.constant 2 : index
    %c2_107 = arith.constant 2 : index
    %c0_108 = arith.constant 0 : index
    %73 = vector.load %arg7[%c2_106, %c2_107, %c0_108] : memref<18x18x4xf32, #tpu.memory_space<vmem>>, vector<16x16x4xf32>
    %74 = vector.shape_cast %73 : vector<16x16x4xf32> to vector<256x4xf32>
    %c0_109 = arith.constant 0 : index
    %c32_110 = arith.constant 32 : index
    %75 = vector.load %arg8[%c0_109, %c32_110] : memref<256x36xf32, #tpu.memory_space<vmem>>, vector<256x4xf32>
    tpu.vector_store %arg8[%c0_109, %c32_110], %74 {strides = array<i32>} : memref<256x36xf32, #tpu.memory_space<vmem>>, vector<256x4xf32>,
    %c0_111 = arith.constant 0 : index
    %c0_112 = arith.constant 0 : index
    %76 = vector.load %arg8[%c0_111, %c0_112] : memref<256x36xf32, #tpu.memory_space<vmem>>, vector<256x36xf32>
    %77 = arith.truncf %76 : vector<256x36xf32> to vector<256x36xbf16>
    %c0_113 = arith.constant 0 : index
    %c0_114 = arith.constant 0 : index
    %78 = vector.load %arg4[%c0_113, %c0_114] : memref<4x36xbf16, #tpu.memory_space<vmem>>, vector<4x36xbf16>
    %cst_115 = arith.constant dense<0.000000e+00> : vector<4x256xf32>
    %79 = tpu.matmul %78, %77, %cst_115 {dimension_numbers = #tpu.dot_dimension_numbers<[1], [1], [0], [0], [0, 0, 1, 0], [], []>} : vector<4x36xbf16>, vector<256x36xbf16>, vector<4x256xf32> -> vector<4x256xf32>
    %c0_116 = arith.constant 0 : index
    %c0_117 = arith.constant 0 : index
    %80 = vector.load %arg5[%c0_116, %c0_117] : memref<4x1xf32, #tpu.memory_space<vmem>>, vector<4x1xf32>
    %81 = vector.broadcast %80 : vector<4x1xf32> to vector<4x256xf32>
    %82 = arith.addf %79, %81 : vector<4x256xf32>
    %c0_118 = arith.constant 0 : index
    %c0_119 = arith.constant 0 : index
    %c0_120 = arith.constant 0 : index
    %c0_121 = arith.constant 0 : index
    %83 = vector.load %arg1[%c0_118, %c0_119, %c0_120, %c0_121] : memref<1x16x16x4xf32, #tpu.memory_space<vmem>>, vector<1x16x16x4xf32>
    %84 = vector.shape_cast %83 : vector<1x16x16x4xf32> to vector<16x16x4xf32>
    %85 = vector.shape_cast %84 : vector<16x16x4xf32> to vector<256x4xf32>
    %86 = tpu.iota {dimensions = array<i32: 0>} : vector<4x4xi32>
    %87 = tpu.iota {dimensions = array<i32: 1>} : vector<4x4xi32>
    %88 = arith.cmpi eq, %86, %87 : vector<4x4xi32>
    %89 = arith.extui %88 : vector<4x4xi1> to vector<4x4xi32>
    %90 = arith.sitofp %89 : vector<4x4xi32> to vector<4x4xf32>
    %cst_122 = arith.constant dense<0.000000e+00> : vector<4x256xf32>
    %91 = tpu.matmul %90, %85, %cst_122 {dimension_numbers = #tpu.dot_dimension_numbers<[1], [1], [0], [0], [0, 0, 1, 0], [], []>} : vector<4x4xf32>, vector<256x4xf32>, vector<4x256xf32> -> vector<4x256xf32>
    %92 = arith.addf %82, %91 : vector<4x256xf32>
    %c0_123 = arith.constant 0 : index
    %c0_124 = arith.constant 0 : index
    %c0_125 = arith.constant 0 : index
    %93 = vector.load %arg6[%c0_123, %c0_124, %c0_125] : memref<1x4x256xf32, #tpu.memory_space<vmem>>, vector<1x4x256xf32>
    %94 = vector.shape_cast %93 : vector<1x4x256xf32> to vector<4x256xf32>
    %95 = vector.shape_cast %92 : vector<4x256xf32> to vector<1x4x256xf32>
    tpu.vector_store %arg6[%c0_123, %c0_124, %c0_125], %95 {strides = array<i32>} : memref<1x4x256xf32, #tpu.memory_space<vmem>>, vector<1x4x256xf32>,
    return
  }
  func.func @transform_0(%arg0: i32) -> (i32, i32, i32, i32) {
    %c0_i32 = arith.constant 0 : i32
    %c0_i32_0 = arith.constant 0 : i32
    %c0_i32_1 = arith.constant 0 : i32
    %c0_i32_2 = arith.constant 0 : i32
    return %arg0, %c0_i32, %c0_i32_0, %c0_i32_1 : i32, i32, i32, i32
  }
  func.func @transform_1(%arg0: i32) -> (i32, i32) {
    %c0_i32 = arith.constant 0 : i32
    %c0_i32_0 = arith.constant 0 : i32
    %c0_i32_1 = arith.constant 0 : i32
    return %c0_i32, %c0_i32_0 : i32, i32
  }
  func.func @transform_2(%arg0: i32) -> (i32, i32) {
    %c0_i32 = arith.constant 0 : i32
    %c0_i32_0 = arith.constant 0 : i32
    %c0_i32_1 = arith.constant 0 : i32
    return %c0_i32, %c0_i32_0 : i32, i32
  }
  func.func @transform_3(%arg0: i32) -> (i32, i32) {
    %c0_i32 = arith.constant 0 : i32
    %c0_i32_0 = arith.constant 0 : i32
    %c0_i32_1 = arith.constant 0 : i32
    return %c0_i32, %c0_i32_0 : i32, i32
  }
  func.func @transform_4(%arg0: i32) -> (i32, i32) {
    %c0_i32 = arith.constant 0 : i32
    %c0_i32_0 = arith.constant 0 : i32
    %c0_i32_1 = arith.constant 0 : i32
    return %c0_i32, %c0_i32_0 : i32, i32
  }
  func.func @transform_5(%arg0: i32) -> (i32, i32, i32) {
    %c0_i32 = arith.constant 0 : i32
    %c0_i32_0 = arith.constant 0 : i32
    %c0_i32_1 = arith.constant 0 : i32
    return %arg0, %c0_i32, %c0_i32_0 : i32, i32, i32
  }
}

</mosaic_0001>

<llo_original>
// kernel: tpu_custom_call.1
$region0: #{tpu_custom_call.1}
  #allocation0 [shape = 'u32[]', space=smem, size = 0x4, offset = 0x4, fixed_abs, tag = 'smem constant byte address 0x4 - core index']
  #allocation1 [shape = 'u32[144,128]{1,0:T(1,128)}', space=vmem, size = 0x12000, scoped, tag = 'internal scratch']
  #allocation2 [shape = 'f32[18,18,4]{2,1,0:T(8,128)}', space=vmem, size = 0x36000, scoped, tag = 'scratch operand']
  #allocation3 [shape = 'f32[256,36]{1,0:T(8,128)}', space=vmem, size = 0x20000, scoped, tag = 'scratch operand']
  %s0 = inlined_call_operand.hbm [shape: f32[2,16,16,4], index: 0, kind: input, shape index: {}]
  %s1 = inlined_call_operand.hbm [shape: bf16[36,4], index: 1, kind: input, shape index: {}]
  %s2 = inlined_call_operand.hbm [shape: f32[1,4], index: 2, kind: input, shape index: {}]
  %s3 = inlined_call_operand.hbm [shape: bf16[4,36], index: 3, kind: input, shape index: {}]
  %s4 = inlined_call_operand.hbm [shape: f32[4,1], index: 4, kind: input, shape index: {}]
  %s5 = inlined_call_operand.hbm [shape: f32[2,4,256], index: 5, kind: output, shape index: {}]
  %s6 = sld [smem:[#allocation0]]
  $region73: #{tpu_custom_call.1} parent=0
    _
  %s8 = ssub.s32 1, %s6
  %s9 = scalar_select 0, %s8, %s6
  $region1: #{tpu_custom_call.1} parent=0
    #allocation4 [shape = 'u8[262144]{0}', space=vmem, size = 0x40000, scoped, tag = 'input window, operand 0']
    #allocation5 [shape = 's32[2]{0}', space=sflag, size = 0x8, scoped, tag = 'scoped memory for tpu_custom_call.1']
    #allocation6 [shape = 's32[2]{0}', space=sflag, size = 0x8, scoped, tag = 'scoped memory for tpu_custom_call.1']
    #allocation7 [shape = 'u8[10240]{0}', space=vmem, size = 0x2800, scoped, tag = 'input window, operand 1, single buffered']
    #allocation8 [shape = 's32[1]{0}', space=sflag, size = 0x4, scoped, tag = 'scoped memory for tpu_custom_call.1']
    #allocation9 [shape = 'u8[512]{0}', space=vmem, size = 0x400, scoped, tag = 'input window, operand 2, single buffered']
    #allocation10 [shape = 'u8[1024]{0}', space=vmem, size = 0x400, scoped, tag = 'input window, operand 3, single buffered']
    #allocation11 [shape = 's32[1]{0}', space=sflag, size = 0x4, scoped, tag = 'scoped memory for tpu_custom_call.1']
    #allocation12 [shape = 'u8[2048]{0}', space=vmem, size = 0x800, scoped, tag = 'input window, operand 4, single buffered']
    #allocation13 [shape = 'u8[8192]{0}', space=vmem, size = 0x2000, scoped, tag = 'output window, operand 0']
    %10 = vsyncpa [#allocation5], 0
    %s11 = scalar_lea.sflag [#allocation5], 1
    %12 = vsyncpa %s11, 0
    %13 = vsyncpa [#allocation8], 0
    %14 = vsyncpa [#allocation11], 0
    %15 = vsyncpa [#allocation6], 0
    %s16 = scalar_lea.sflag [#allocation6], 1
    %17 = vsyncpa %s16, 0
    loop: start=0, step=1, limit=4
    $region2: #{tpu_custom_call.1} parent=1 // loop_pre_header
      _
    $region3: #{tpu_custom_call.1} parent=1 // loop_header
      %s19 = sphi 0, %s23
      %p20 = scmp.ge.s32.totalorder %s19, 4
      %s29 = sphi 0, %s31
      %s32 = sphi 0, %s29
      %s33 = sphi 0, %s32
      %s49 = sphi 0, %s33
      %s53 = sphi 0, %s53
      %s55 = sphi 0, %s53
      %s56 = sphi 0, %s55
      %s70 = sphi 0, %s56
      %s74 = sphi 0, %s74
      %s76 = sphi 0, %s74
      %s77 = sphi 0, %s76
      %s91 = sphi 0, %s77
      %s95 = sphi 0, %s95
      %s97 = sphi 0, %s95
      %s98 = sphi 0, %s97
      %s112 = sphi 0, %s98
      %s116 = sphi 0, %s116
      %s118 = sphi 0, %s116
      %s119 = sphi 0, %s118
      %s133 = sphi 0, %s119
      %s139 = sphi 0, %s141
      %s142 = sphi 0, %s139
      %s143 = sphi 0, %s142
      %s159 = sphi 0, %s143
    $region4: #{tpu_custom_call.1} parent=1 // loop_header_branch
      %22 = sbr.rel (%p20) target = $region8
    $region5: #{tpu_custom_call.1} parent=1 // loop_body
      %s24 = ssub.s32 %s19, 1
      %s25 = ssub.s32 %s19, 2
      %s26 = sadd.s32 %s19, 1
      %s27 = ssub.s32 %s19, %s26
      %p28 = scmp.eq.s32.totalorder %s27, 0
      %s30 = sadd.s32 %s29, 1
      %s31 = scalar_select %p28, %s29, %s30
      %p34 = pneg %p28
      %p35 = scmp.eq.s32.totalorder %s19, 1
      %p36 = por %p34, %p35
      %p37 = scmp.ne.s32.totalorder %s29, %s32
      %p38 = scmp.eq.s32.totalorder %s19, 0
      %p39 = por %p37, %p38
      %p40 = scmp.ne.s32.totalorder %s29, %s32
      %p41 = scmp.eq.s32.totalorder %s24, 1
      %p42 = por %p40, %p41
      %p43 = scmp.ne.s32.totalorder %s32, %s33
      %p44 = scmp.eq.s32.totalorder %s24, 0
      %p45 = por %p43, %p44
      %p46 = scmp.ne.s32.totalorder %s32, %s33
      %p47 = scmp.eq.s32.totalorder %s25, 1
      %p48 = por %p46, %p47
      %p50 = scmp.ne.s32.totalorder %s33, %s49
      %p51 = scmp.eq.s32.totalorder %s25, 0
      %p52 = por %p50, %p51
      %s54 = sadd.s32 %s53, 1
      %p57 = scmp.eq.s32.totalorder %s19, 1
      %p58 = scmp.ne.s32.totalorder %s53, %s55
      %p59 = scmp.eq.s32.totalorder %s19, 0
      %p60 = por %p58, %p59
      %p61 = scmp.ne.s32.totalorder %s53, %s55
      %p62 = scmp.eq.s32.totalorder %s24, 1
      %p63 = por %p61, %p62
      %p64 = scmp.ne.s32.totalorder %s55, %s56
      %p65 = scmp.eq.s32.totalorder %s24, 0
      %p66 = por %p64, %p65
      %p67 = scmp.ne.s32.totalorder %s55, %s56
      %p68 = scmp.eq.s32.totalorder %s25, 1
      %p69 = por %p67, %p68
      %p71 = scmp.ne.s32.totalorder %s56, %s70
      %p72 = scmp.eq.s32.totalorder %s25, 0
      %p73 = por %p71, %p72
      %s75 = sadd.s32 %s74, 1
      %p78 = scmp.eq.s32.totalorder %s19, 1
      %p79 = scmp.ne.s32.totalorder %s74, %s76
      %p80 = scmp.eq.s32.totalorder %s19, 0
      %p81 = por %p79, %p80
      %p82 = scmp.ne.s32.totalorder %s74, %s76
      %p83 = scmp.eq.s32.totalorder %s24, 1
      %p84 = por %p82, %p83
      %p85 = scmp.ne.s32.totalorder %s76, %s77
      %p86 = scmp.eq.s32.totalorder %s24, 0
      %p87 = por %p85, %p86
      %p88 = scmp.ne.s32.totalorder %s76, %s77
      %p89 = scmp.eq.s32.totalorder %s25, 1
      %p90 = por %p88, %p89
      %p92 = scmp.ne.s32.totalorder %s77, %s91
      %p93 = scmp.eq.s32.totalorder %s25, 0
      %p94 = por %p92, %p93
      %s96 = sadd.s32 %s95, 1
      %p99 = scmp.eq.s32.totalorder %s19, 1
      %p100 = scmp.ne.s32.totalorder %s95, %s97
      %p101 = scmp.eq.s32.totalorder %s19, 0
      %p102 = por %p100, %p101
      %p103 = scmp.ne.s32.totalorder %s95, %s97
      %p104 = scmp.eq.s32.totalorder %s24, 1
      %p105 = por %p103, %p104
      %p106 = scmp.ne.s32.totalorder %s97, %s98
      %p107 = scmp.eq.s32.totalorder %s24, 0
      %p108 = por %p106, %p107
      %p109 = scmp.ne.s32.totalorder %s97, %s98
      %p110 = scmp.eq.s32.totalorder %s25, 1
      %p111 = por %p109, %p110
      %p113 = scmp.ne.s32.totalorder %s98, %s112
      %p114 = scmp.eq.s32.totalorder %s25, 0
      %p115 = por %p113, %p114
      %s117 = sadd.s32 %s116, 1
      %p120 = scmp.eq.s32.totalorder %s19, 1
      %p121 = scmp.ne.s32.totalorder %s116, %s118
      %p122 = scmp.eq.s32.totalorder %s19, 0
      %p123 = por %p121, %p122
      %p124 = scmp.ne.s32.totalorder %s116, %s118
      %p125 = scmp.eq.s32.totalorder %s24, 1
      %p126 = por %p124, %p125
      %p127 = scmp.ne.s32.totalorder %s118, %s119
      %p128 = scmp.eq.s32.totalorder %s24, 0
      %p129 = por %p127, %p128
      %p130 = scmp.ne.s32.totalorder %s118, %s119
      %p131 = scmp.eq.s32.totalorder %s25, 1
      %p132 = por %p130, %p131
      %p134 = scmp.ne.s32.totalorder %s119, %s133
      %p135 = scmp.eq.s32.totalorder %s25, 0
      %p136 = por %p134, %p135
      %s137 = ssub.s32 %s19, %s26
      %p138 = scmp.eq.s32.totalorder %s137, 0
      %s140 = sadd.s32 %s139, 1
      %s141 = scalar_select %p138, %s139, %s140
      %p144 = pneg %p138
      %p145 = scmp.eq.s32.totalorder %s19, 1
      %p146 = por %p144, %p145
      %p147 = scmp.ne.s32.totalorder %s139, %s142
      %p148 = scmp.eq.s32.totalorder %s19, 0
      %p149 = por %p147, %p148
      %p150 = scmp.ne.s32.totalorder %s139, %s142
      %p151 = scmp.eq.s32.totalorder %s24, 1
      %p152 = por %p150, %p151
      %p153 = scmp.ne.s32.totalorder %s142, %s143
      %p154 = scmp.eq.s32.totalorder %s24, 0
      %p155 = por %p153, %p154
      %p156 = scmp.ne.s32.totalorder %s142, %s143
      %p157 = scmp.eq.s32.totalorder %s25, 1
      %p158 = por %p156, %p157
      %p160 = scmp.ne.s32.totalorder %s143, %s159
      %p161 = scmp.eq.s32.totalorder %s25, 0
      %p162 = por %p160, %p161
      %p163 = scmp.le.s32.totalorder 1, %s19
      %p164 = scmp.lt.s32.totalorder %s19, 3
      %p165 = pnand %p163, %p164
      %p166 = pneg %p165
      // Predicated region
      $region9: #{tpu_custom_call.1} parent=5 // pred_check
        _
      $region10: #{tpu_custom_call.1} parent=5 // pred_check_branch
        %168 = sbr.rel (%p165) target = $region12
      $region11: #{tpu_custom_call.1} parent=5 // pred_region
        %s169 = ssub.s32 %s19, 1
        // Predicated region
        $region13: #{tpu_custom_call.1} parent=11 // pred_check
          %p170 = pneg %p66
        $region14: #{tpu_custom_call.1} parent=11 // pred_check_branch
          %172 = sbr.rel (%p170) target = $region16
        $region15: #{tpu_custom_call.1} parent=11 // pred_region
          %s174 = ssub.s32 320, 320
          %175 = vsyncadd [#allocation8], %s174
          %s176 = sshll.u32 [#allocation7], 4
          %s177 = int_to_ptr.vmem [resolvable:$true] %s176
          %182 = dma.hbm_to_vmem [thread:$0]  %s1, 320, %s177, [#allocation8], 64, 64, 4
        $region16: #{tpu_custom_call.1} parent=11 // pred_fallthru
          _
        // Predicated region
        $region17: #{tpu_custom_call.1} parent=11 // pred_check
          %p183 = pneg %p87
        $region18: #{tpu_custom_call.1} parent=11 // pred_check_branch
          %185 = sbr.rel (%p183) target = $region20
        $region19: #{tpu_custom_call.1} parent=11 // pred_region
          %s187 = ssub.s32 16, 16
          %188 = vsyncadd [#allocation8], %s187
          %s190 = sshll.u32 [#allocation9], 4
          %s191 = int_to_ptr.vmem [resolvable:$true] %s190
          %193 = dma.hbm_to_vmem [thread:$0]  %s2, 16, %s191, [#allocation8]
        $region20: #{tpu_custom_call.1} parent=11 // pred_fallthru
          _
        // Predicated region
        $region21: #{tpu_custom_call.1} parent=11 // pred_check
          %p194 = pneg %p108
        $region22: #{tpu_custom_call.1} parent=11 // pred_check_branch
          %196 = sbr.rel (%p194) target = $region24
        $region23: #{tpu_custom_call.1} parent=11 // pred_region
          %s198 = ssub.s32 32, 32
          %199 = vsyncadd [#allocation11], %s198
          %s201 = sshll.u32 [#allocation10], 4
          %s202 = int_to_ptr.vmem [resolvable:$true] %s201
          %204 = dma.hbm_to_vmem [thread:$0]  %s3, 32, %s202, [#allocation11]
        $region24: #{tpu_custom_call.1} parent=11 // pred_fallthru
          _
        // Predicated region
        $region25: #{tpu_custom_call.1} parent=11 // pred_check
          %p205 = pneg %p129
        $region26: #{tpu_custom_call.1} parent=11 // pred_check_branch
          %207 = sbr.rel (%p205) target = $region28
        $region27: #{tpu_custom_call.1} parent=11 // pred_region
          %s209 = ssub.s32 64, 64
          %210 = vsyncadd [#allocation11], %s209
          %s212 = sshll.u32 [#allocation12], 4
          %s213 = int_to_ptr.vmem [resolvable:$true] %s212
          %215 = dma.hbm_to_vmem [thread:$0]  %s4, 64, %s213, [#allocation11]
        $region28: #{tpu_custom_call.1} parent=11 // pred_fallthru
          _
      $region12: #{tpu_custom_call.1} parent=5 // pred_fallthru
        _
      %p216 = scmp.lt.s32.totalorder %s19, 2
      // Predicated region
      $region29: #{tpu_custom_call.1} parent=5 // pred_check
        %p217 = pneg %p216
      $region30: #{tpu_custom_call.1} parent=5 // pred_check_branch
        %219 = sbr.rel (%p217) target = $region32
      $region31: #{tpu_custom_call.1} parent=5 // pred_region
        // Predicated region
        $region33: #{tpu_custom_call.1} parent=31 // pred_check
          %p220 = pneg %p39
        $region34: #{tpu_custom_call.1} parent=31 // pred_check_branch
          %222 = sbr.rel (%p220) target = $region36
        $region35: #{tpu_custom_call.1} parent=31 // pred_region
          %s223 = sand.u32 %s29, 1
          %s224 = scalar_lea.sflag [#allocation5], %s223
          %s225 = sand.u32 %s29, 1
          %s226 = smul.addr %s225, 256
          %s227 = scalar_lea.vmem [#allocation4], %s226
          %s229 = ssub.s32 4096, 4096
          %230 = vsyncadd %s224, %s229
          %s231 = smul.addr %s19, 32
          %s232 = smul.addr %s231, 128
          %s233 = scalar_lea.hbm %s0, %s232
          %s234 = sshll.u32 %s227, 4
          %s235 = int_to_ptr.vmem [resolvable:$true] %s234
          %240 = dma.hbm_to_vmem [thread:$0]  %s233, 4096, %s235, %s224, 128, 128, 8
        $region36: #{tpu_custom_call.1} parent=31 // pred_fallthru
          _
      $region32: #{tpu_custom_call.1} parent=5 // pred_fallthru
        _
      %p241 = scmp.le.s32.totalorder 1, %s19
      %p242 = scmp.lt.s32.totalorder %s19, 3
      %p243 = pnand %p241, %p242
      %p244 = pneg %p243
      // Predicated region
      $region37: #{tpu_custom_call.1} parent=5 // pred_check
        _
      $region38: #{tpu_custom_call.1} parent=5 // pred_check_branch
        %246 = sbr.rel (%p243) target = $region40
      $region39: #{tpu_custom_call.1} parent=5 // pred_region
        %s247 = ssub.s32 %s19, 1
        %s248 = sand.u32 %s32, 1
        %s249 = scalar_lea.sflag [#allocation5], %s248
        %s250 = sand.u32 %s32, 1
        %s251 = smul.addr %s250, 256
        %s252 = scalar_lea.vmem [#allocation4], %s251
        // Predicated region
        $region41: #{tpu_custom_call.1} parent=39 // pred_check
          %p253 = pneg %p45
        $region42: #{tpu_custom_call.1} parent=39 // pred_check_branch
          %255 = sbr.rel (%p253) target = $region44
        $region43: #{tpu_custom_call.1} parent=39 // pred_region
          %256 = dma.done %s249, 4096
        $region44: #{tpu_custom_call.1} parent=39 // pred_fallthru
          _
        // Predicated region
        $region45: #{tpu_custom_call.1} parent=39 // pred_check
          %p257 = pneg %p66
        $region46: #{tpu_custom_call.1} parent=39 // pred_check_branch
          %259 = sbr.rel (%p257) target = $region48
        $region47: #{tpu_custom_call.1} parent=39 // pred_region
          %260 = dma.done [#allocation8], 320
        $region48: #{tpu_custom_call.1} parent=39 // pred_fallthru
          _
        // Predicated region
        $region49: #{tpu_custom_call.1} parent=39 // pred_check
          %p261 = pneg %p87
        $region50: #{tpu_custom_call.1} parent=39 // pred_check_branch
          %263 = sbr.rel (%p261) target = $region52
        $region51: #{tpu_custom_call.1} parent=39 // pred_region
          %264 = dma.done [#allocation8], 16
        $region52: #{tpu_custom_call.1} parent=39 // pred_fallthru
          _
        // Predicated region
        $region53: #{tpu_custom_call.1} parent=39 // pred_check
          %p265 = pneg %p108
        $region54: #{tpu_custom_call.1} parent=39 // pred_check_branch
          %267 = sbr.rel (%p265) target = $region56
        $region55: #{tpu_custom_call.1} parent=39 // pred_region
          %268 = dma.done [#allocation11], 32
        $region56: #{tpu_custom_call.1} parent=39 // pred_fallthru
          _
        // Predicated region
        $region57: #{tpu_custom_call.1} parent=39 // pred_check
          %p269 = pneg %p129
        $region58: #{tpu_custom_call.1} parent=39 // pred_check_branch
          %271 = sbr.rel (%p269) target = $region60
        $region59: #{tpu_custom_call.1} parent=39 // pred_region
          %272 = dma.done [#allocation11], 64
        $region60: #{tpu_custom_call.1} parent=39 // pred_fallthru
          _
        %s273 = sand.u32 %s32, 1
        %s274 = scalar_lea.sflag [#allocation5], %s273
        %s275 = sand.u32 %s32, 1
        %s276 = smul.addr %s275, 256
        %s277 = scalar_lea.vmem [#allocation4], %s276
        %p278 = pneg %p45
        %p279 = pneg %p42
        %p280 = pneg %p66
        %p281 = pneg %p63
        %p282 = pneg %p87
        %p283 = pneg %p84
        %p284 = pneg %p108
        %p285 = pneg %p105
        %p286 = pneg %p129
        %p287 = pneg %p126
        %p288 = pneg %p155
        %p289 = pneg %p152
        %s290 = sand.u32 %s142, 1
        %s291 = scalar_lea.sflag [#allocation6], %s290
        %s292 = sand.u32 %s142, 1
        %s293 = smul.addr %s292, 8
        %s294 = scalar_lea.vmem [#allocation13], %s293
        %vm296 = vcmask 31744
        %297 = vst.msk [vmem:[#allocation2] sm:$0xff] %vm296, 0.0
        %298 = vst.msk [vmem:[#allocation2 + $0x8] sm:$0xff] %vm296, 0.0
        %vm299 = vcmask 25600
        %300 = vst.msk [vmem:[#allocation2 + $0x10] sm:$0x3] %vm299, 0.0
        %s301 = scalar_lea.vmem [#allocation2], 408
        %302 = vst.msk [vmem:[%s301] sm:$0xff] %vm296, 0.0
        %303 = vst.msk [vmem:[%s301 + $0x8] sm:$0xff] %vm296, 0.0
        %304 = vst.msk [vmem:[%s301 + $0x10] sm:$0x3] %vm299, 0.0
        %vm305 = vcmask 24576
        %306 = vst.msk [vmem:[#allocation2] sm:$0x1] %vm305, 0.0
        %307 = vst.msk [vmem:[#allocation2 + $0x18] sm:$0x1] %vm305, 0.0
        %308 = vst.msk [vmem:[#allocation2 + $0x30] sm:$0x1] %vm305, 0.0
        %309 = vst.msk [vmem:[#allocation2 + $0x48] sm:$0x1] %vm305, 0.0
        %310 = vst.msk [vmem:[#allocation2 + $0x60] sm:$0x1] %vm305, 0.0
        %311 = vst.msk [vmem:[#allocation2 + $0x78] sm:$0x1] %vm305, 0.0
        %312 = vst.msk [vmem:[#allocation2 + $0x90] sm:$0x1] %vm305, 0.0
        %313 = vst.msk [vmem:[#allocation2 + $0xa8] sm:$0x1] %vm305, 0.0
        %314 = vst.msk [vmem:[#allocation2 + $0xc0] sm:$0x1] %vm305, 0.0
        %315 = vst.msk [vmem:[#allocation2 + $0xd8] sm:$0x1] %vm305, 0.0
        %316 = vst.msk [vmem:[#allocation2 + $0xf0] sm:$0x1] %vm305, 0.0
        %317 = vst.msk [vmem:[#allocation2 + $0x108] sm:$0x1] %vm305, 0.0
        %318 = vst.msk [vmem:[#allocation2 + $0x120] sm:$0x1] %vm305, 0.0
        %319 = vst.msk [vmem:[#allocation2 + $0x138] sm:$0x1] %vm305, 0.0
        %320 = vst.msk [vmem:[#allocation2 + $0x150] sm:$0x1] %vm305, 0.0
        %321 = vst.msk [vmem:[#allocation2 + $0x168] sm:$0x1] %vm305, 0.0
        %322 = vst.msk [vmem:[#allocation2 + $0x180] sm:$0x1] %vm305, 0.0
        %323 = vst.msk [vmem:[#allocation2 + $0x198] sm:$0x1] %vm305, 0.0
        %324 = vst.msk [vmem:[#allocation2 + $0x11] sm:$0x1] %vm305, 0.0
        %325 = vst.msk [vmem:[#allocation2 + $0x29] sm:$0x1] %vm305, 0.0
        %326 = vst.msk [vmem:[#allocation2 + $0x41] sm:$0x1] %vm305, 0.0
        %327 = vst.msk [vmem:[#allocation2 + $0x59] sm:$0x1] %vm305, 0.0
        %328 = vst.msk [vmem:[#allocation2 + $0x71] sm:$0x1] %vm305, 0.0
        %329 = vst.msk [vmem:[#allocation2 + $0x89] sm:$0x1] %vm305, 0.0
        %330 = vst.msk [vmem:[#allocation2 + $0xa1] sm:$0x1] %vm305, 0.0
        %331 = vst.msk [vmem:[#allocation2 + $0xb9] sm:$0x1] %vm305, 0.0
        %332 = vst.msk [vmem:[#allocation2 + $0xd1] sm:$0x1] %vm305, 0.0
        %333 = vst.msk [vmem:[#allocation2 + $0xe9] sm:$0x1] %vm305, 0.0
        %334 = vst.msk [vmem:[#allocation2 + $0x101] sm:$0x1] %vm305, 0.0
        %335 = vst.msk [vmem:[#allocation2 + $0x119] sm:$0x1] %vm305, 0.0
        %336 = vst.msk [vmem:[#allocation2 + $0x131] sm:$0x1] %vm305, 0.0
        %337 = vst.msk [vmem:[#allocation2 + $0x149] sm:$0x1] %vm305, 0.0
        %338 = vst.msk [vmem:[#allocation2 + $0x161] sm:$0x1] %vm305, 0.0
        %339 = vst.msk [vmem:[#allocation2 + $0x179] sm:$0x1] %vm305, 0.0
        %340 = vst.msk [vmem:[#allocation2 + $0x191] sm:$0x1] %vm305, 0.0
        %341 = vst.msk [vmem:[#allocation2 + $0x1a9] sm:$0x1] %vm305, 0.0
        %v342 = vld [vmem:[%s252] sm:$0xff]
        %v343 = vld [vmem:[%s252 + $0x8] sm:$0xff]
        %v344 = vld [vmem:[%s252 + $0x10] sm:$0xff]
        %v345 = vld [vmem:[%s252 + $0x18] sm:$0xff]
        %v346 = vld [vmem:[%s252 + $0x20] sm:$0xff]
        %v347 = vld [vmem:[%s252 + $0x28] sm:$0xff]
        %v348 = vld [vmem:[%s252 + $0x30] sm:$0xff]
        %v349 = vld [vmem:[%s252 + $0x38] sm:$0xff]
        %v350 = vld [vmem:[%s252 + $0x40] sm:$0xff]
        %v351 = vld [vmem:[%s252 + $0x48] sm:$0xff]
        %v352 = vld [vmem:[%s252 + $0x50] sm:$0xff]
        %v353 = vld [vmem:[%s252 + $0x58] sm:$0xff]
        %v354 = vld [vmem:[%s252 + $0x60] sm:$0xff]
        %v355 = vld [vmem:[%s252 + $0x68] sm:$0xff]
        %v356 = vld [vmem:[%s252 + $0x70] sm:$0xff]
        %v357 = vld [vmem:[%s252 + $0x78] sm:$0xff]
        %v358 = vld [vmem:[%s252 + $0x80] sm:$0xff]
        %v359 = vld [vmem:[%s252 + $0x88] sm:$0xff]
        %v360 = vld [vmem:[%s252 + $0x90] sm:$0xff]
        %v361 = vld [vmem:[%s252 + $0x98] sm:$0xff]
        %v362 = vld [vmem:[%s252 + $0xa0] sm:$0xff]
        %v363 = vld [vmem:[%s252 + $0xa8] sm:$0xff]
        %v364 = vld [vmem:[%s252 + $0xb0] sm:$0xff]
        %v365 = vld [vmem:[%s252 + $0xb8] sm:$0xff]
        %v366 = vld [vmem:[%s252 + $0xc0] sm:$0xff]
        %v367 = vld [vmem:[%s252 + $0xc8] sm:$0xff]
        %v368 = vld [vmem:[%s252 + $0xd0] sm:$0xff]
        %v369 = vld [vmem:[%s252 + $0xd8] sm:$0xff]
        %v370 = vld [vmem:[%s252 + $0xe0] sm:$0xff]
        %v371 = vld [vmem:[%s252 + $0xe8] sm:$0xff]
        %v372 = vld [vmem:[%s252 + $0xf0] sm:$0xff]
        %v373 = vld [vmem:[%s252 + $0xf8] sm:$0xff]
        %s374 = scalar_lea.vmem [#allocation2], 24
        %375 = vst.msk [vmem:[%s374 + $0x1] sm:$0xff] %vm296, %v342
        %376 = vst.msk [vmem:[%s374 + $0x9] sm:$0xff] %vm296, %v343
        %377 = vst.msk [vmem:[%s374 + $0x19] sm:$0xff] %vm296, %v344
        %378 = vst.msk [vmem:[%s374 + $0x21] sm:$0xff] %vm296, %v345
        %379 = vst.msk [vmem:[%s374 + $0x31] sm:$0xff] %vm296, %v346
        %380 = vst.msk [vmem:[%s374 + $0x39] sm:$0xff] %vm296, %v347
        %381 = vst.msk [vmem:[%s374 + $0x49] sm:$0xff] %vm296, %v348
        %382 = vst.msk [vmem:[%s374 + $0x51] sm:$0xff] %vm296, %v349
        %383 = vst.msk [vmem:[%s374 + $0x61] sm:$0xff] %vm296, %v350
        %384 = vst.msk [vmem:[%s374 + $0x69] sm:$0xff] %vm296, %v351
        %385 = vst.msk [vmem:[%s374 + $0x79] sm:$0xff] %vm296, %v352
        %386 = vst.msk [vmem:[%s374 + $0x81] sm:$0xff] %vm296, %v353
        %387 = vst.msk [vmem:[%s374 + $0x91] sm:$0xff] %vm296, %v354
        %388 = vst.msk [vmem:[%s374 + $0x99] sm:$0xff] %vm296, %v355
        %389 = vst.msk [vmem:[%s374 + $0xa9] sm:$0xff] %vm296, %v356
        %390 = vst.msk [vmem:[%s374 + $0xb1] sm:$0xff] %vm296, %v357
        %391 = vst.msk [vmem:[%s374 + $0xc1] sm:$0xff] %vm296, %v358
        %392 = vst.msk [vmem:[%s374 + $0xc9] sm:$0xff] %vm296, %v359
        %393 = vst.msk [vmem:[%s374 + $0xd9] sm:$0xff] %vm296, %v360
        %394 = vst.msk [vmem:[%s374 + $0xe1] sm:$0xff] %vm296, %v361
        %395 = vst.msk [vmem:[%s374 + $0xf1] sm:$0xff] %vm296, %v362
        %396 = vst.msk [vmem:[%s374 + $0xf9] sm:$0xff] %vm296, %v363
        %397 = vst.msk [vmem:[%s374 + $0x109] sm:$0xff] %vm296, %v364
        %398 = vst.msk [vmem:[%s374 + $0x111] sm:$0xff] %vm296, %v365
        %399 = vst.msk [vmem:[%s374 + $0x121] sm:$0xff] %vm296, %v366
        %400 = vst.msk [vmem:[%s374 + $0x129] sm:$0xff] %vm296, %v367
        %401 = vst.msk [vmem:[%s374 + $0x139] sm:$0xff] %vm296, %v368
        %402 = vst.msk [vmem:[%s374 + $0x141] sm:$0xff] %vm296, %v369
        %403 = vst.msk [vmem:[%s374 + $0x151] sm:$0xff] %vm296, %v370
        %404 = vst.msk [vmem:[%s374 + $0x159] sm:$0xff] %vm296, %v371
        %405 = vst.msk [vmem:[%s374 + $0x169] sm:$0xff] %vm296, %v372
        %406 = vst.msk [vmem:[%s374 + $0x171] sm:$0xff] %vm296, %v373
        %v407 = vld [vmem:[#allocation2] sm:$0xff]
        %v408 = vld [vmem:[#allocation2 + $0x8] sm:$0xff]
        %v409 = vld [vmem:[#allocation2 + $0x18] sm:$0xff]
        %v410 = vld [vmem:[#allocation2 + $0x20] sm:$0xff]
        %v411 = vld [vmem:[#allocation2 + $0x30] sm:$0xff]
        %v412 = vld [vmem:[#allocation2 + $0x38] sm:$0xff]
        %v413 = vld [vmem:[#allocation2 + $0x48] sm:$0xff]
        %v414 = vld [vmem:[#allocation2 + $0x50] sm:$0xff]
        %v415 = vld [vmem:[#allocation2 + $0x60] sm:$0xff]
        %v416 = vld [vmem:[#allocation2 + $0x68] sm:$0xff]
        %v417 = vld [vmem:[#allocation2 + $0x78] sm:$0xff]
        %v418 = vld [vmem:[#allocation2 + $0x80] sm:$0xff]
        %v419 = vld [vmem:[#allocation2 + $0x90] sm:$0xff]
        %v420 = vld [vmem:[#allocation2 + $0x98] sm:$0xff]
        %v421 = vld [vmem:[#allocation2 + $0xa8] sm:$0xff]
        %v422 = vld [vmem:[#allocation2 + $0xb0] sm:$0xff]
        %v423 = vld [vmem:[#allocation2 + $0xc0] sm:$0xff]
        %v424 = vld [vmem:[#allocation2 + $0xc8] sm:$0xff]
        %v425 = vld [vmem:[#allocation2 + $0xd8] sm:$0xff]
        %v426 = vld [vmem:[#allocation2 + $0xe0] sm:$0xff]
        %v427 = vld [vmem:[#allocation2 + $0xf0] sm:$0xff]
        %v428 = vld [vmem:[#allocation2 + $0xf8] sm:$0xff]
        %v429 = vld [vmem:[#allocation2 + $0x108] sm:$0xff]
        %v430 = vld [vmem:[#allocation2 + $0x110] sm:$0xff]
        %v431 = vld [vmem:[#allocation2 + $0x120] sm:$0xff]
        %v432 = vld [vmem:[#allocation2 + $0x128] sm:$0xff]
        %v433 = vld [vmem:[#allocation2 + $0x138] sm:$0xff]
        %v434 = vld [vmem:[#allocation2 + $0x140] sm:$0xff]
        %v435 = vld [vmem:[#allocation2 + $0x150] sm:$0xff]
        %v436 = vld [vmem:[#allocation2 + $0x158] sm:$0xff]
        %v437 = vld [vmem:[#allocation2 + $0x168] sm:$0xff]
        %v438 = vld [vmem:[#allocation2 + $0x170] sm:$0xff]
        %439 = vst.msk [vmem:[#allocation3] sm:$0xff] %vm296, %v407
        %440 = vst.msk [vmem:[#allocation3 + $0x8] sm:$0xff] %vm296, %v408
        %441 = vst.msk [vmem:[#allocation3 + $0x10] sm:$0xff] %vm296, %v409
        %442 = vst.msk [vmem:[#allocation3 + $0x18] sm:$0xff] %vm296, %v410
        %443 = vst.msk [vmem:[#allocation3 + $0x20] sm:$0xff] %vm296, %v411
        %444 = vst.msk [vmem:[#allocation3 + $0x28] sm:$0xff] %vm296, %v412
        %445 = vst.msk [vmem:[#allocation3 + $0x30] sm:$0xff] %vm296, %v413
        %446 = vst.msk [vmem:[#allocation3 + $0x38] sm:$0xff] %vm296, %v414
        %447 = vst.msk [vmem:[#allocation3 + $0x40] sm:$0xff] %vm296, %v415
        %448 = vst.msk [vmem:[#allocation3 + $0x48] sm:$0xff] %vm296, %v416
        %449 = vst.msk [vmem:[#allocation3 + $0x50] sm:$0xff] %vm296, %v417
        %450 = vst.msk [vmem:[#allocation3 + $0x58] sm:$0xff] %vm296, %v418
        %451 = vst.msk [vmem:[#allocation3 + $0x60] sm:$0xff] %vm296, %v419
        %452 = vst.msk [vmem:[#allocation3 + $0x68] sm:$0xff] %vm296, %v420
        %453 = vst.msk [vmem:[#allocation3 + $0x70] sm:$0xff] %vm296, %v421
        %454 = vst.msk [vmem:[#allocation3 + $0x78] sm:$0xff] %vm296, %v422
        %455 = vst.msk [vmem:[#allocation3 + $0x80] sm:$0xff] %vm296, %v423
        %456 = vst.msk [vmem:[#allocation3 + $0x88] sm:$0xff] %vm296, %v424
        %457 = vst.msk [vmem:[#allocation3 + $0x90] sm:$0xff] %vm296, %v425
        %458 = vst.msk [vmem:[#allocation3 + $0x98] sm:$0xff] %vm296, %v426
        %459 = vst.msk [vmem:[#allocation3 + $0xa0] sm:$0xff] %vm296, %v427
        %460 = vst.msk [vmem:[#allocation3 + $0xa8] sm:$0xff] %vm296, %v428
        %461 = vst.msk [vmem:[#allocation3 + $0xb0] sm:$0xff] %vm296, %v429
        %462 = vst.msk [vmem:[#allocation3 + $0xb8] sm:$0xff] %vm296, %v430
        %463 = vst.msk [vmem:[#allocation3 + $0xc0] sm:$0xff] %vm296, %v431
        %464 = vst.msk [vmem:[#allocation3 + $0xc8] sm:$0xff] %vm296, %v432
        %465 = vst.msk [vmem:[#allocation3 + $0xd0] sm:$0xff] %vm296, %v433
        %466 = vst.msk [vmem:[#allocation3 + $0xd8] sm:$0xff] %vm296, %v434
        %467 = vst.msk [vmem:[#allocation3 + $0xe0] sm:$0xff] %vm296, %v435
        %468 = vst.msk [vmem:[#allocation3 + $0xe8] sm:$0xff] %vm296, %v436
        %469 = vst.msk [vmem:[#allocation3 + $0xf0] sm:$0xff] %vm296, %v437
        %470 = vst.msk [vmem:[#allocation3 + $0xf8] sm:$0xff] %vm296, %v438
        %v471 = vld [vmem:[#allocation2 + $0x1] sm:$0xff]
        %v472 = vld [vmem:[#allocation2 + $0x9] sm:$0xff]
        %v473 = vld [vmem:[#allocation2 + $0x19] sm:$0xff]
        %v474 = vld [vmem:[#allocation2 + $0x21] sm:$0xff]
        %v475 = vld [vmem:[#allocation2 + $0x31] sm:$0xff]
        %v476 = vld [vmem:[#allocation2 + $0x39] sm:$0xff]
        %v477 = vld [vmem:[#allocation2 + $0x49] sm:$0xff]
        %v478 = vld [vmem:[#allocation2 + $0x51] sm:$0xff]
        %v479 = vld [vmem:[#allocation2 + $0x61] sm:$0xff]
        %v480 = vld [vmem:[#allocation2 + $0x69] sm:$0xff]
        %v481 = vld [vmem:[#allocation2 + $0x79] sm:$0xff]
        %v482 = vld [vmem:[#allocation2 + $0x81] sm:$0xff]
        %v483 = vld [vmem:[#allocation2 + $0x91] sm:$0xff]
        %v484 = vld [vmem:[#allocation2 + $0x99] sm:$0xff]
        %v485 = vld [vmem:[#allocation2 + $0xa9] sm:$0xff]
        %v486 = vld [vmem:[#allocation2 + $0xb1] sm:$0xff]
        %v487 = vld [vmem:[#allocation2 + $0xc1] sm:$0xff]
        %v488 = vld [vmem:[#allocation2 + $0xc9] sm:$0xff]
        %v489 = vld [vmem:[#allocation2 + $0xd9] sm:$0xff]
        %v490 = vld [vmem:[#allocation2 + $0xe1] sm:$0xff]
        %v491 = vld [vmem:[#allocation2 + $0xf1] sm:$0xff]
        %v492 = vld [vmem:[#allocation2 + $0xf9] sm:$0xff]
        %v493 = vld [vmem:[#allocation2 + $0x109] sm:$0xff]
        %v494 = vld [vmem:[#allocation2 + $0x111] sm:$0xff]
        %v495 = vld [vmem:[#allocation2 + $0x121] sm:$0xff]
        %v496 = vld [vmem:[#allocation2 + $0x129] sm:$0xff]
        %v497 = vld [vmem:[#allocation2 + $0x139] sm:$0xff]
        %v498 = vld [vmem:[#allocation2 + $0x141] sm:$0xff]
        %v499 = vld [vmem:[#allocation2 + $0x151] sm:$0xff]
        %v500 = vld [vmem:[#allocation2 + $0x159] sm:$0xff]
        %v501 = vld [vmem:[#allocation2 + $0x169] sm:$0xff]
        %v502 = vld [vmem:[#allocation2 + $0x171] sm:$0xff]
        %535 = vrot.lane.b32.xlu0 %v471, 4
        %v536 = vpop.permute.xlu0 %535
        %537 = vrot.lane.b32.xlu0 %v472, 4
        %v538 = vpop.permute.xlu0 %537
        %539 = vrot.lane.b32.xlu0 %v473, 4
        %v540 = vpop.permute.xlu0 %539
        %541 = vrot.lane.b32.xlu0 %v474, 4
        %v542 = vpop.permute.xlu0 %541
        %543 = vrot.lane.b32.xlu0 %v475, 4
        %v544 = vpop.permute.xlu0 %543
        %545 = vrot.lane.b32.xlu0 %v476, 4
        %v546 = vpop.permute.xlu0 %545
        %547 = vrot.lane.b32.xlu0 %v477, 4
        %v548 = vpop.permute.xlu0 %547
        %549 = vrot.lane.b32.xlu0 %v478, 4
        %v550 = vpop.permute.xlu0 %549
        %551 = vrot.lane.b32.xlu0 %v479, 4
        %v552 = vpop.permute.xlu0 %551
        %553 = vrot.lane.b32.xlu0 %v480, 4
        %v554 = vpop.permute.xlu0 %553
        %555 = vrot.lane.b32.xlu0 %v481, 4
        %v556 = vpop.permute.xlu0 %555
        %557 = vrot.lane.b32.xlu0 %v482, 4
        %v558 = vpop.permute.xlu0 %557
        %559 = vrot.lane.b32.xlu0 %v483, 4
        %v560 = vpop.permute.xlu0 %559
        %561 = vrot.lane.b32.xlu0 %v484, 4
        %v562 = vpop.permute.xlu0 %561
        %563 = vrot.lane.b32.xlu0 %v485, 4
        %v564 = vpop.permute.xlu0 %563
        %565 = vrot.lane.b32.xlu0 %v486, 4
        %v566 = vpop.permute.xlu0 %565
        %567 = vrot.lane.b32.xlu0 %v487, 4
        %v568 = vpop.permute.xlu0 %567
        %569 = vrot.lane.b32.xlu0 %v488, 4
        %v570 = vpop.permute.xlu0 %569
        %571 = vrot.lane.b32.xlu0 %v489, 4
        %v572 = vpop.permute.xlu0 %571
        %573 = vrot.lane.b32.xlu0 %v490, 4
        %v574 = vpop.permute.xlu0 %573
        %575 = vrot.lane.b32.xlu0 %v491, 4
        %v576 = vpop.permute.xlu0 %575
        %577 = vrot.lane.b32.xlu0 %v492, 4
        %v578 = vpop.permute.xlu0 %577
        %579 = vrot.lane.b32.xlu0 %v493, 4
        %v580 = vpop.permute.xlu0 %579
        %581 = vrot.lane.b32.xlu0 %v494, 4
        %v582 = vpop.permute.xlu0 %581
        %583 = vrot.lane.b32.xlu0 %v495, 4
        %v584 = vpop.permute.xlu0 %583
        %585 = vrot.lane.b32.xlu0 %v496, 4
        %v586 = vpop.permute.xlu0 %585
        %587 = vrot.lane.b32.xlu0 %v497, 4
        %v588 = vpop.permute.xlu0 %587
        %589 = vrot.lane.b32.xlu0 %v498, 4
        %v590 = vpop.permute.xlu0 %589
        %591 = vrot.lane.b32.xlu0 %v499, 4
        %v592 = vpop.permute.xlu0 %591
        %593 = vrot.lane.b32.xlu0 %v500, 4
        %v594 = vpop.permute.xlu0 %593
        %595 = vrot.lane.b32.xlu0 %v501, 4
        %v596 = vpop.permute.xlu0 %595
        %597 = vrot.lane.b32.xlu0 %v502, 4
        %v598 = vpop.permute.xlu0 %597
        %vm631 = vcmask 64544
        %632 = vst.msk [vmem:[#allocation3] sm:$0xff] %vm631, %v536
        %633 = vst.msk [vmem:[#allocation3 + $0x8] sm:$0xff] %vm631, %v538
        %634 = vst.msk [vmem:[#allocation3 + $0x10] sm:$0xff] %vm631, %v540
        %635 = vst.msk [vmem:[#allocation3 + $0x18] sm:$0xff] %vm631, %v542
        %636 = vst.msk [vmem:[#allocation3 + $0x20] sm:$0xff] %vm631, %v544
        %637 = vst.msk [vmem:[#allocation3 + $0x28] sm:$0xff] %vm631, %v546
        %638 = vst.msk [vmem:[#allocation3 + $0x30] sm:$0xff] %vm631, %v548
        %639 = vst.msk [vmem:[#allocation3 + $0x38] sm:$0xff] %vm631, %v550
        %640 = vst.msk [vmem:[#allocation3 + $0x40] sm:$0xff] %vm631, %v552
        %641 = vst.msk [vmem:[#allocation3 + $0x48] sm:$0xff] %vm631, %v554
        %642 = vst.msk [vmem:[#allocation3 + $0x50] sm:$0xff] %vm631, %v556
        %643 = vst.msk [vmem:[#allocation3 + $0x58] sm:$0xff] %vm631, %v558
        %644 = vst.msk [vmem:[#allocation3 + $0x60] sm:$0xff] %vm631, %v560
        %645 = vst.msk [vmem:[#allocation3 + $0x68] sm:$0xff] %vm631, %v562
        %646 = vst.msk [vmem:[#allocation3 + $0x70] sm:$0xff] %vm631, %v564
        %647 = vst.msk [vmem:[#allocation3 + $0x78] sm:$0xff] %vm631, %v566
        %648 = vst.msk [vmem:[#allocation3 + $0x80] sm:$0xff] %vm631, %v568
        %649 = vst.msk [vmem:[#allocation3 + $0x88] sm:$0xff] %vm631, %v570
        %650 = vst.msk [vmem:[#allocation3 + $0x90] sm:$0xff] %vm631, %v572
        %651 = vst.msk [vmem:[#allocation3 + $0x98] sm:$0xff] %vm631, %v574
        %652 = vst.msk [vmem:[#allocation3 + $0xa0] sm:$0xff] %vm631, %v576
        %653 = vst.msk [vmem:[#allocation3 + $0xa8] sm:$0xff] %vm631, %v578
        %654 = vst.msk [vmem:[#allocation3 + $0xb0] sm:$0xff] %vm631, %v580
        %655 = vst.msk [vmem:[#allocation3 + $0xb8] sm:$0xff] %vm631, %v582
        %656 = vst.msk [vmem:[#allocation3 + $0xc0] sm:$0xff] %vm631, %v584
        %657 = vst.msk [vmem:[#allocation3 + $0xc8] sm:$0xff] %vm631, %v586
        %658 = vst.msk [vmem:[#allocation3 + $0xd0] sm:$0xff] %vm631, %v588
        %659 = vst.msk [vmem:[#allocation3 + $0xd8] sm:$0xff] %vm631, %v590
        %660 = vst.msk [vmem:[#allocation3 + $0xe0] sm:$0xff] %vm631, %v592
        %661 = vst.msk [vmem:[#allocation3 + $0xe8] sm:$0xff] %vm631, %v594
        %662 = vst.msk [vmem:[#allocation3 + $0xf0] sm:$0xff] %vm631, %v596
        %663 = vst.msk [vmem:[#allocation3 + $0xf8] sm:$0xff] %vm631, %v598
        %v664 = vld [vmem:[#allocation2 + $0x2] sm:$0xff]
        %v665 = vld [vmem:[#allocation2 + $0xa] sm:$0xff]
        %v666 = vld [vmem:[#allocation2 + $0x1a] sm:$0xff]
        %v667 = vld [vmem:[#allocation2 + $0x22] sm:$0xff]
        %v668 = vld [vmem:[#allocation2 + $0x32] sm:$0xff]
        %v669 = vld [vmem:[#allocation2 + $0x3a] sm:$0xff]
        %v670 = vld [vmem:[#allocation2 + $0x4a] sm:$0xff]
        %v671 = vld [vmem:[#allocation2 + $0x52] sm:$0xff]
        %v672 = vld [vmem:[#allocation2 + $0x62] sm:$0xff]
        %v673 = vld [vmem:[#allocation2 + $0x6a] sm:$0xff]
        %v674 = vld [vmem:[#allocation2 + $0x7a] sm:$0xff]
        %v675 = vld [vmem:[#allocation2 + $0x82] sm:$0xff]
        %v676 = vld [vmem:[#allocation2 + $0x92] sm:$0xff]
        %v677 = vld [vmem:[#allocation2 + $0x9a] sm:$0xff]
        %v678 = vld [vmem:[#allocation2 + $0xaa] sm:$0xff]
        %v679 = vld [vmem:[#allocation2 + $0xb2] sm:$0xff]
        %v680 = vld [vmem:[#allocation2 + $0xc2] sm:$0xff]
        %v681 = vld [vmem:[#allocation2 + $0xca] sm:$0xff]
        %v682 = vld [vmem:[#allocation2 + $0xda] sm:$0xff]
        %v683 = vld [vmem:[#allocation2 + $0xe2] sm:$0xff]
        %v684 = vld [vmem:[#allocation2 + $0xf2] sm:$0xff]
        %v685 = vld [vmem:[#allocation2 + $0xfa] sm:$0xff]
        %v686 = vld [vmem:[#allocation2 + $0x10a] sm:$0xff]
        %v687 = vld [vmem:[#allocation2 + $0x112] sm:$0xff]
        %v688 = vld [vmem:[#allocation2 + $0x122] sm:$0xff]
        %v689 = vld [vmem:[#allocation2 + $0x12a] sm:$0xff]
        %v690 = vld [vmem:[#allocation2 + $0x13a] sm:$0xff]
        %v691 = vld [vmem:[#allocation2 + $0x142] sm:$0xff]
        %v692 = vld [vmem:[#allocation2 + $0x152] sm:$0xff]
        %v693 = vld [vmem:[#allocation2 + $0x15a] sm:$0xff]
        %v694 = vld [vmem:[#allocation2 + $0x16a] sm:$0xff]
        %v695 = vld [vmem:[#allocation2 + $0x172] sm:$0xff]
        %728 = vrot.lane.b32.xlu0 %v664, 8
        %v729 = vpop.permute.xlu0 %728
        %730 = vrot.lane.b32.xlu0 %v665, 8
        %v731 = vpop.permute.xlu0 %730
        %732 = vrot.lane.b32.xlu0 %v666, 8
        %v733 = vpop.permute.xlu0 %732
        %734 = vrot.lane.b32.xlu0 %v667, 8
        %v735 = vpop.permute.xlu0 %734
        %736 = vrot.lane.b32.xlu0 %v668, 8
        %v737 = vpop.permute.xlu0 %736
        %738 = vrot.lane.b32.xlu0 %v669, 8
        %v739 = vpop.permute.xlu0 %738
        %740 = vrot.lane.b32.xlu0 %v670, 8
        %v741 = vpop.permute.xlu0 %740
        %742 = vrot.lane.b32.xlu0 %v671, 8
        %v743 = vpop.permute.xlu0 %742
        %744 = vrot.lane.b32.xlu0 %v672, 8
        %v745 = vpop.permute.xlu0 %744
        %746 = vrot.lane.b32.xlu0 %v673, 8
        %v747 = vpop.permute.xlu0 %746
        %748 = vrot.lane.b32.xlu0 %v674, 8
        %v749 = vpop.permute.xlu0 %748
        %750 = vrot.lane.b32.xlu0 %v675, 8
        %v751 = vpop.permute.xlu0 %750
        %752 = vrot.lane.b32.xlu0 %v676, 8
        %v753 = vpop.permute.xlu0 %752
        %754 = vrot.lane.b32.xlu0 %v677, 8
        %v755 = vpop.permute.xlu0 %754
        %756 = vrot.lane.b32.xlu0 %v678, 8
        %v757 = vpop.permute.xlu0 %756
        %758 = vrot.lane.b32.xlu0 %v679, 8
        %v759 = vpop.permute.xlu0 %758
        %760 = vrot.lane.b32.xlu0 %v680, 8
        %v761 = vpop.permute.xlu0 %760
        %762 = vrot.lane.b32.xlu0 %v681, 8
        %v763 = vpop.permute.xlu0 %762
        %764 = vrot.lane.b32.xlu0 %v682, 8
        %v765 = vpop.permute.xlu0 %764
        %766 = vrot.lane.b32.xlu0 %v683, 8
        %v767 = vpop.permute.xlu0 %766
        %768 = vrot.lane.b32.xlu0 %v684, 8
        %v769 = vpop.permute.xlu0 %768
        %770 = vrot.lane.b32.xlu0 %v685, 8
        %v771 = vpop.permute.xlu0 %770
        %772 = vrot.lane.b32.xlu0 %v686, 8
        %v773 = vpop.permute.xlu0 %772
        %774 = vrot.lane.b32.xlu0 %v687, 8
        %v775 = vpop.permute.xlu0 %774
        %776 = vrot.lane.b32.xlu0 %v688, 8
        %v777 = vpop.permute.xlu0 %776
        %778 = vrot.lane.b32.xlu0 %v689, 8
        %v779 = vpop.permute.xlu0 %778
        %780 = vrot.lane.b32.xlu0 %v690, 8
        %v781 = vpop.permute.xlu0 %780
        %782 = vrot.lane.b32.xlu0 %v691, 8
        %v783 = vpop.permute.xlu0 %782
        %784 = vrot.lane.b32.xlu0 %v692, 8
        %v785 = vpop.permute.xlu0 %784
        %786 = vrot.lane.b32.xlu0 %v693, 8
        %v787 = vpop.permute.xlu0 %786
        %788 = vrot.lane.b32.xlu0 %v694, 8
        %v789 = vpop.permute.xlu0 %788
        %790 = vrot.lane.b32.xlu0 %v695, 8
        %v791 = vpop.permute.xlu0 %790
        %vm824 = vcmask 97344
        %825 = vst.msk [vmem:[#allocation3] sm:$0xff] %vm824, %v729
        %826 = vst.msk [vmem:[#allocation3 + $0x8] sm:$0xff] %vm824, %v731
        %827 = vst.msk [vmem:[#allocation3 + $0x10] sm:$0xff] %vm824, %v733
        %828 = vst.msk [vmem:[#allocation3 + $0x18] sm:$0xff] %vm824, %v735
        %829 = vst.msk [vmem:[#allocation3 + $0x20] sm:$0xff] %vm824, %v737
        %830 = vst.msk [vmem:[#allocation3 + $0x28] sm:$0xff] %vm824, %v739
        %831 = vst.msk [vmem:[#allocation3 + $0x30] sm:$0xff] %vm824, %v741
        %832 = vst.msk [vmem:[#allocation3 + $0x38] sm:$0xff] %vm824, %v743
        %833 = vst.msk [vmem:[#allocation3 + $0x40] sm:$0xff] %vm824, %v745
        %834 = vst.msk [vmem:[#allocation3 + $0x48] sm:$0xff] %vm824, %v747
        %835 = vst.msk [vmem:[#allocation3 + $0x50] sm:$0xff] %vm824, %v749
        %836 = vst.msk [vmem:[#allocation3 + $0x58] sm:$0xff] %vm824, %v751
        %837 = vst.msk [vmem:[#allocation3 + $0x60] sm:$0xff] %vm824, %v753
        %838 = vst.msk [vmem:[#allocation3 + $0x68] sm:$0xff] %vm824, %v755
        %839 = vst.msk [vmem:[#allocation3 + $0x70] sm:$0xff] %vm824, %v757
        %840 = vst.msk [vmem:[#allocation3 + $0x78] sm:$0xff] %vm824, %v759
        %841 = vst.msk [vmem:[#allocation3 + $0x80] sm:$0xff] %vm824, %v761
        %842 = vst.msk [vmem:[#allocation3 + $0x88] sm:$0xff] %vm824, %v763
        %843 = vst.msk [vmem:[#allocation3 + $0x90] sm:$0xff] %vm824, %v765
        %844 = vst.msk [vmem:[#allocation3 + $0x98] sm:$0xff] %vm824, %v767
        %845 = vst.msk [vmem:[#allocation3 + $0xa0] sm:$0xff] %vm824, %v769
        %846 = vst.msk [vmem:[#allocation3 + $0xa8] sm:$0xff] %vm824, %v771
        %847 = vst.msk [vmem:[#allocation3 + $0xb0] sm:$0xff] %vm824, %v773
        %848 = vst.msk [vmem:[#allocation3 + $0xb8] sm:$0xff] %vm824, %v775
        %849 = vst.msk [vmem:[#allocation3 + $0xc0] sm:$0xff] %vm824, %v777
        %850 = vst.msk [vmem:[#allocation3 + $0xc8] sm:$0xff] %vm824, %v779
        %851 = vst.msk [vmem:[#allocation3 + $0xd0] sm:$0xff] %vm824, %v781
        %852 = vst.msk [vmem:[#allocation3 + $0xd8] sm:$0xff] %vm824, %v783
        %853 = vst.msk [vmem:[#allocation3 + $0xe0] sm:$0xff] %vm824, %v785
        %854 = vst.msk [vmem:[#allocation3 + $0xe8] sm:$0xff] %vm824, %v787
        %855 = vst.msk [vmem:[#allocation3 + $0xf0] sm:$0xff] %vm824, %v789
        %856 = vst.msk [vmem:[#allocation3 + $0xf8] sm:$0xff] %vm824, %v791
        %v857 = vld [vmem:[%s374] sm:$0xff]
        %v858 = vld [vmem:[%s374 + $0x8] sm:$0xff]
        %v859 = vld [vmem:[%s374 + $0x18] sm:$0xff]
        %v860 = vld [vmem:[%s374 + $0x20] sm:$0xff]
        %v861 = vld [vmem:[%s374 + $0x30] sm:$0xff]
        %v862 = vld [vmem:[%s374 + $0x38] sm:$0xff]
        %v863 = vld [vmem:[%s374 + $0x48] sm:$0xff]
        %v864 = vld [vmem:[%s374 + $0x50] sm:$0xff]
        %v865 = vld [vmem:[%s374 + $0x60] sm:$0xff]
        %v866 = vld [vmem:[%s374 + $0x68] sm:$0xff]
        %v867 = vld [vmem:[%s374 + $0x78] sm:$0xff]
        %v868 = vld [vmem:[%s374 + $0x80] sm:$0xff]
        %v869 = vld [vmem:[%s374 + $0x90] sm:$0xff]
        %v870 = vld [vmem:[%s374 + $0x98] sm:$0xff]
        %v871 = vld [vmem:[%s374 + $0xa8] sm:$0xff]
        %v872 = vld [vmem:[%s374 + $0xb0] sm:$0xff]
        %v873 = vld [vmem:[%s374 + $0xc0] sm:$0xff]
        %v874 = vld [vmem:[%s374 + $0xc8] sm:$0xff]
        %v875 = vld [vmem:[%s374 + $0xd8] sm:$0xff]
        %v876 = vld [vmem:[%s374 + $0xe0] sm:$0xff]
        %v877 = vld [vmem:[%s374 + $0xf0] sm:$0xff]
        %v878 = vld [vmem:[%s374 + $0xf8] sm:$0xff]
        %v879 = vld [vmem:[%s374 + $0x108] sm:$0xff]
        %v880 = vld [vmem:[%s374 + $0x110] sm:$0xff]
        %v881 = vld [vmem:[%s374 + $0x120] sm:$0xff]
        %v882 = vld [vmem:[%s374 + $0x128] sm:$0xff]
        %v883 = vld [vmem:[%s374 + $0x138] sm:$0xff]
        %v884 = vld [vmem:[%s374 + $0x140] sm:$0xff]
        %v885 = vld [vmem:[%s374 + $0x150] sm:$0xff]
        %v886 = vld [vmem:[%s374 + $0x158] sm:$0xff]
        %v887 = vld [vmem:[%s374 + $0x168] sm:$0xff]
        %v888 = vld [vmem:[%s374 + $0x170] sm:$0xff]
        %921 = vrot.lane.b32.xlu0 %v857, 12
        %v922 = vpop.permute.xlu0 %921
        %923 = vrot.lane.b32.xlu0 %v858, 12
        %v924 = vpop.permute.xlu0 %923
        %925 = vrot.lane.b32.xlu0 %v859, 12
        %v926 = vpop.permute.xlu0 %925
        %927 = vrot.lane.b32.xlu0 %v860, 12
        %v928 = vpop.permute.xlu0 %927
        %929 = vrot.lane.b32.xlu0 %v861, 12
        %v930 = vpop.permute.xlu0 %929
        %931 = vrot.lane.b32.xlu0 %v862, 12
        %v932 = vpop.permute.xlu0 %931
        %933 = vrot.lane.b32.xlu0 %v863, 12
        %v934 = vpop.permute.xlu0 %933
        %935 = vrot.lane.b32.xlu0 %v864, 12
        %v936 = vpop.permute.xlu0 %935
        %937 = vrot.lane.b32.xlu0 %v865, 12
        %v938 = vpop.permute.xlu0 %937
        %939 = vrot.lane.b32.xlu0 %v866, 12
        %v940 = vpop.permute.xlu0 %939
        %941 = vrot.lane.b32.xlu0 %v867, 12
        %v942 = vpop.permute.xlu0 %941
        %943 = vrot.lane.b32.xlu0 %v868, 12
        %v944 = vpop.permute.xlu0 %943
        %945 = vrot.lane.b32.xlu0 %v869, 12
        %v946 = vpop.permute.xlu0 %945
        %947 = vrot.lane.b32.xlu0 %v870, 12
        %v948 = vpop.permute.xlu0 %947
        %949 = vrot.lane.b32.xlu0 %v871, 12
        %v950 = vpop.permute.xlu0 %949
        %951 = vrot.lane.b32.xlu0 %v872, 12
        %v952 = vpop.permute.xlu0 %951
        %953 = vrot.lane.b32.xlu0 %v873, 12
        %v954 = vpop.permute.xlu0 %953
        %955 = vrot.lane.b32.xlu0 %v874, 12
        %v956 = vpop.permute.xlu0 %955
        %957 = vrot.lane.b32.xlu0 %v875, 12
        %v958 = vpop.permute.xlu0 %957
        %959 = vrot.lane.b32.xlu0 %v876, 12
        %v960 = vpop.permute.xlu0 %959
        %961 = vrot.lane.b32.xlu0 %v877, 12
        %v962 = vpop.permute.xlu0 %961
        %963 = vrot.lane.b32.xlu0 %v878, 12
        %v964 = vpop.permute.xlu0 %963
        %965 = vrot.lane.b32.xlu0 %v879, 12
        %v966 = vpop.permute.xlu0 %965
        %967 = vrot.lane.b32.xlu0 %v880, 12
        %v968 = vpop.permute.xlu0 %967
        %969 = vrot.lane.b32.xlu0 %v881, 12
        %v970 = vpop.permute.xlu0 %969
        %971 = vrot.lane.b32.xlu0 %v882, 12
        %v972 = vpop.permute.xlu0 %971
        %973 = vrot.lane.b32.xlu0 %v883, 12
        %v974 = vpop.permute.xlu0 %973
        %975 = vrot.lane.b32.xlu0 %v884, 12
        %v976 = vpop.permute.xlu0 %975
        %977 = vrot.lane.b32.xlu0 %v885, 12
        %v978 = vpop.permute.xlu0 %977
        %979 = vrot.lane.b32.xlu0 %v886, 12
        %v980 = vpop.permute.xlu0 %979
        %981 = vrot.lane.b32.xlu0 %v887, 12
        %v982 = vpop.permute.xlu0 %981
        %983 = vrot.lane.b32.xlu0 %v888, 12
        %v984 = vpop.permute.xlu0 %983
        %vm1017 = vcmask 130144
        %1018 = vst.msk [vmem:[#allocation3] sm:$0xff] %vm1017, %v922
        %1019 = vst.msk [vmem:[#allocation3 + $0x8] sm:$0xff] %vm1017, %v924
        %1020 = vst.msk [vmem:[#allocation3 + $0x10] sm:$0xff] %vm1017, %v926
        %1021 = vst.msk [vmem:[#allocation3 + $0x18] sm:$0xff] %vm1017, %v928
        %1022 = vst.msk [vmem:[#allocation3 + $0x20] sm:$0xff] %vm1017, %v930
        %1023 = vst.msk [vmem:[#allocation3 + $0x28] sm:$0xff] %vm1017, %v932
        %1024 = vst.msk [vmem:[#allocation3 + $0x30] sm:$0xff] %vm1017, %v934
        %1025 = vst.msk [vmem:[#allocation3 + $0x38] sm:$0xff] %vm1017, %v936
        %1026 = vst.msk [vmem:[#allocation3 + $0x40] sm:$0xff] %vm1017, %v938
        %1027 = vst.msk [vmem:[#allocation3 + $0x48] sm:$0xff] %vm1017, %v940
        %1028 = vst.msk [vmem:[#allocation3 + $0x50] sm:$0xff] %vm1017, %v942
        %1029 = vst.msk [vmem:[#allocation3 + $0x58] sm:$0xff] %vm1017, %v944
        %1030 = vst.msk [vmem:[#allocation3 + $0x60] sm:$0xff] %vm1017, %v946
        %1031 = vst.msk [vmem:[#allocation3 + $0x68] sm:$0xff] %vm1017, %v948
        %1032 = vst.msk [vmem:[#allocation3 + $0x70] sm:$0xff] %vm1017, %v950
        %1033 = vst.msk [vmem:[#allocation3 + $0x78] sm:$0xff] %vm1017, %v952
        %1034 = vst.msk [vmem:[#allocation3 + $0x80] sm:$0xff] %vm1017, %v954
        %1035 = vst.msk [vmem:[#allocation3 + $0x88] sm:$0xff] %vm1017, %v956
        %1036 = vst.msk [vmem:[#allocation3 + $0x90] sm:$0xff] %vm1017, %v958
        %1037 = vst.msk [vmem:[#allocation3 + $0x98] sm:$0xff] %vm1017, %v960
        %1038 = vst.msk [vmem:[#allocation3 + $0xa0] sm:$0xff] %vm1017, %v962
        %1039 = vst.msk [vmem:[#allocation3 + $0xa8] sm:$0xff] %vm1017, %v964
        %1040 = vst.msk [vmem:[#allocation3 + $0xb0] sm:$0xff] %vm1017, %v966
        %1041 = vst.msk [vmem:[#allocation3 + $0xb8] sm:$0xff] %vm1017, %v968
        %1042 = vst.msk [vmem:[#allocation3 + $0xc0] sm:$0xff] %vm1017, %v970
        %1043 = vst.msk [vmem:[#allocation3 + $0xc8] sm:$0xff] %vm1017, %v972
        %1044 = vst.msk [vmem:[#allocation3 + $0xd0] sm:$0xff] %vm1017, %v974
        %1045 = vst.msk [vmem:[#allocation3 + $0xd8] sm:$0xff] %vm1017, %v976
        %1046 = vst.msk [vmem:[#allocation3 + $0xe0] sm:$0xff] %vm1017, %v978
        %1047 = vst.msk [vmem:[#allocation3 + $0xe8] sm:$0xff] %vm1017, %v980
        %1048 = vst.msk [vmem:[#allocation3 + $0xf0] sm:$0xff] %vm1017, %v982
        %1049 = vst.msk [vmem:[#allocation3 + $0xf8] sm:$0xff] %vm1017, %v984
        %v1050 = vld [vmem:[%s374 + $0x1] sm:$0xff]
        %v1051 = vld [vmem:[%s374 + $0x9] sm:$0xff]
        %v1052 = vld [vmem:[%s374 + $0x19] sm:$0xff]
        %v1053 = vld [vmem:[%s374 + $0x21] sm:$0xff]
        %v1054 = vld [vmem:[%s374 + $0x31] sm:$0xff]
        %v1055 = vld [vmem:[%s374 + $0x39] sm:$0xff]
        %v1056 = vld [vmem:[%s374 + $0x49] sm:$0xff]
        %v1057 = vld [vmem:[%s374 + $0x51] sm:$0xff]
        %v1058 = vld [vmem:[%s374 + $0x61] sm:$0xff]
        %v1059 = vld [vmem:[%s374 + $0x69] sm:$0xff]
        %v1060 = vld [vmem:[%s374 + $0x79] sm:$0xff]
        %v1061 = vld [vmem:[%s374 + $0x81] sm:$0xff]
        %v1062 = vld [vmem:[%s374 + $0x91] sm:$0xff]
        %v1063 = vld [vmem:[%s374 + $0x99] sm:$0xff]
        %v1064 = vld [vmem:[%s374 + $0xa9] sm:$0xff]
        %v1065 = vld [vmem:[%s374 + $0xb1] sm:$0xff]
        %v1066 = vld [vmem:[%s374 + $0xc1] sm:$0xff]
        %v1067 = vld [vmem:[%s374 + $0xc9] sm:$0xff]
        %v1068 = vld [vmem:[%s374 + $0xd9] sm:$0xff]
        %v1069 = vld [vmem:[%s374 + $0xe1] sm:$0xff]
        %v1070 = vld [vmem:[%s374 + $0xf1] sm:$0xff]
        %v1071 = vld [vmem:[%s374 + $0xf9] sm:$0xff]
        %v1072 = vld [vmem:[%s374 + $0x109] sm:$0xff]
        %v1073 = vld [vmem:[%s374 + $0x111] sm:$0xff]
        %v1074 = vld [vmem:[%s374 + $0x121] sm:$0xff]
        %v1075 = vld [vmem:[%s374 + $0x129] sm:$0xff]
        %v1076 = vld [vmem:[%s374 + $0x139] sm:$0xff]
        %v1077 = vld [vmem:[%s374 + $0x141] sm:$0xff]
        %v1078 = vld [vmem:[%s374 + $0x151] sm:$0xff]
        %v1079 = vld [vmem:[%s374 + $0x159] sm:$0xff]
        %v1080 = vld [vmem:[%s374 + $0x169] sm:$0xff]
        %v1081 = vld [vmem:[%s374 + $0x171] sm:$0xff]
        %1114 = vrot.lane.b32.xlu0 %v1050, 16
        %v1115 = vpop.permute.xlu0 %1114
        %1116 = vrot.lane.b32.xlu0 %v1051, 16
        %v1117 = vpop.permute.xlu0 %1116
        %1118 = vrot.lane.b32.xlu0 %v1052, 16
        %v1119 = vpop.permute.xlu0 %1118
        %1120 = vrot.lane.b32.xlu0 %v1053, 16
        %v1121 = vpop.permute.xlu0 %1120
        %1122 = vrot.lane.b32.xlu0 %v1054, 16
        %v1123 = vpop.permute.xlu0 %1122
        %1124 = vrot.lane.b32.xlu0 %v1055, 16
        %v1125 = vpop.permute.xlu0 %1124
        %1126 = vrot.lane.b32.xlu0 %v1056, 16
        %v1127 = vpop.permute.xlu0 %1126
        %1128 = vrot.lane.b32.xlu0 %v1057, 16
        %v1129 = vpop.permute.xlu0 %1128
        %1130 = vrot.lane.b32.xlu0 %v1058, 16
        %v1131 = vpop.permute.xlu0 %1130
        %1132 = vrot.lane.b32.xlu0 %v1059, 16
        %v1133 = vpop.permute.xlu0 %1132
        %1134 = vrot.lane.b32.xlu0 %v1060, 16
        %v1135 = vpop.permute.xlu0 %1134
        %1136 = vrot.lane.b32.xlu0 %v1061, 16
        %v1137 = vpop.permute.xlu0 %1136
        %1138 = vrot.lane.b32.xlu0 %v1062, 16
        %v1139 = vpop.permute.xlu0 %1138
        %1140 = vrot.lane.b32.xlu0 %v1063, 16
        %v1141 = vpop.permute.xlu0 %1140
        %1142 = vrot.lane.b32.xlu0 %v1064, 16
        %v1143 = vpop.permute.xlu0 %1142
        %1144 = vrot.lane.b32.xlu0 %v1065, 16
        %v1145 = vpop.permute.xlu0 %1144
        %1146 = vrot.lane.b32.xlu0 %v1066, 16
        %v1147 = vpop.permute.xlu0 %1146
        %1148 = vrot.lane.b32.xlu0 %v1067, 16
        %v1149 = vpop.permute.xlu0 %1148
        %1150 = vrot.lane.b32.xlu0 %v1068, 16
        %v1151 = vpop.permute.xlu0 %1150
        %1152 = vrot.lane.b32.xlu0 %v1069, 16
        %v1153 = vpop.permute.xlu0 %1152
        %1154 = vrot.lane.b32.xlu0 %v1070, 16
        %v1155 = vpop.permute.xlu0 %1154
        %1156 = vrot.lane.b32.xlu0 %v1071, 16
        %v1157 = vpop.permute.xlu0 %1156
        %1158 = vrot.lane.b32.xlu0 %v1072, 16
        %v1159 = vpop.permute.xlu0 %1158
        %1160 = vrot.lane.b32.xlu0 %v1073, 16
        %v1161 = vpop.permute.xlu0 %1160
        %1162 = vrot.lane.b32.xlu0 %v1074, 16
        %v1163 = vpop.permute.xlu0 %1162
        %1164 = vrot.lane.b32.xlu0 %v1075, 16
        %v1165 = vpop.permute.xlu0 %1164
        %1166 = vrot.lane.b32.xlu0 %v1076, 16
        %v1167 = vpop.permute.xlu0 %1166
        %1168 = vrot.lane.b32.xlu0 %v1077, 16
        %v1169 = vpop.permute.xlu0 %1168
        %1170 = vrot.lane.b32.xlu0 %v1078, 16
        %v1171 = vpop.permute.xlu0 %1170
        %1172 = vrot.lane.b32.xlu0 %v1079, 16
        %v1173 = vpop.permute.xlu0 %1172
        %1174 = vrot.lane.b32.xlu0 %v1080, 16
        %v1175 = vpop.permute.xlu0 %1174
        %1176 = vrot.lane.b32.xlu0 %v1081, 16
        %v1177 = vpop.permute.xlu0 %1176
        %vm1210 = vcmask 162944
        %1211 = vst.msk [vmem:[#allocation3] sm:$0xff] %vm1210, %v1115
        %1212 = vst.msk [vmem:[#allocation3 + $0x8] sm:$0xff] %vm1210, %v1117
        %1213 = vst.msk [vmem:[#allocation3 + $0x10] sm:$0xff] %vm1210, %v1119
        %1214 = vst.msk [vmem:[#allocation3 + $0x18] sm:$0xff] %vm1210, %v1121
        %1215 = vst.msk [vmem:[#allocation3 + $0x20] sm:$0xff] %vm1210, %v1123
        %1216 = vst.msk [vmem:[#allocation3 + $0x28] sm:$0xff] %vm1210, %v1125
        %1217 = vst.msk [vmem:[#allocation3 + $0x30] sm:$0xff] %vm1210, %v1127
        %1218 = vst.msk [vmem:[#allocation3 + $0x38] sm:$0xff] %vm1210, %v1129
        %1219 = vst.msk [vmem:[#allocation3 + $0x40] sm:$0xff] %vm1210, %v1131
        %1220 = vst.msk [vmem:[#allocation3 + $0x48] sm:$0xff] %vm1210, %v1133
        %1221 = vst.msk [vmem:[#allocation3 + $0x50] sm:$0xff] %vm1210, %v1135
        %1222 = vst.msk [vmem:[#allocation3 + $0x58] sm:$0xff] %vm1210, %v1137
        %1223 = vst.msk [vmem:[#allocation3 + $0x60] sm:$0xff] %vm1210, %v1139
        %1224 = vst.msk [vmem:[#allocation3 + $0x68] sm:$0xff] %vm1210, %v1141
        %1225 = vst.msk [vmem:[#allocation3 + $0x70] sm:$0xff] %vm1210, %v1143
        %1226 = vst.msk [vmem:[#allocation3 + $0x78] sm:$0xff] %vm1210, %v1145
        %1227 = vst.msk [vmem:[#allocation3 + $0x80] sm:$0xff] %vm1210, %v1147
        %1228 = vst.msk [vmem:[#allocation3 + $0x88] sm:$0xff] %vm1210, %v1149
        %1229 = vst.msk [vmem:[#allocation3 + $0x90] sm:$0xff] %vm1210, %v1151
        %1230 = vst.msk [vmem:[#allocation3 + $0x98] sm:$0xff] %vm1210, %v1153
        %1231 = vst.msk [vmem:[#allocation3 + $0xa0] sm:$0xff] %vm1210, %v1155
        %1232 = vst.msk [vmem:[#allocation3 + $0xa8] sm:$0xff] %vm1210, %v1157
        %1233 = vst.msk [vmem:[#allocation3 + $0xb0] sm:$0xff] %vm1210, %v1159
        %1234 = vst.msk [vmem:[#allocation3 + $0xb8] sm:$0xff] %vm1210, %v1161
        %1235 = vst.msk [vmem:[#allocation3 + $0xc0] sm:$0xff] %vm1210, %v1163
        %1236 = vst.msk [vmem:[#allocation3 + $0xc8] sm:$0xff] %vm1210, %v1165
        %1237 = vst.msk [vmem:[#allocation3 + $0xd0] sm:$0xff] %vm1210, %v1167
        %1238 = vst.msk [vmem:[#allocation3 + $0xd8] sm:$0xff] %vm1210, %v1169
        %1239 = vst.msk [vmem:[#allocation3 + $0xe0] sm:$0xff] %vm1210, %v1171
        %1240 = vst.msk [vmem:[#allocation3 + $0xe8] sm:$0xff] %vm1210, %v1173
        %1241 = vst.msk [vmem:[#allocation3 + $0xf0] sm:$0xff] %vm1210, %v1175
        %1242 = vst.msk [vmem:[#allocation3 + $0xf8] sm:$0xff] %vm1210, %v1177
        %v1243 = vld [vmem:[%s374 + $0x2] sm:$0xff]
        %v1244 = vld [vmem:[%s374 + $0xa] sm:$0xff]
        %v1245 = vld [vmem:[%s374 + $0x1a] sm:$0xff]
        %v1246 = vld [vmem:[%s374 + $0x22] sm:$0xff]
        %v1247 = vld [vmem:[%s374 + $0x32] sm:$0xff]
        %v1248 = vld [vmem:[%s374 + $0x3a] sm:$0xff]
        %v1249 = vld [vmem:[%s374 + $0x4a] sm:$0xff]
        %v1250 = vld [vmem:[%s374 + $0x52] sm:$0xff]
        %v1251 = vld [vmem:[%s374 + $0x62] sm:$0xff]
        %v1252 = vld [vmem:[%s374 + $0x6a] sm:$0xff]
        %v1253 = vld [vmem:[%s374 + $0x7a] sm:$0xff]
        %v1254 = vld [vmem:[%s374 + $0x82] sm:$0xff]
        %v1255 = vld [vmem:[%s374 + $0x92] sm:$0xff]
        %v1256 = vld [vmem:[%s374 + $0x9a] sm:$0xff]
        %v1257 = vld [vmem:[%s374 + $0xaa] sm:$0xff]
        %v1258 = vld [vmem:[%s374 + $0xb2] sm:$0xff]
        %v1259 = vld [vmem:[%s374 + $0xc2] sm:$0xff]
        %v1260 = vld [vmem:[%s374 + $0xca] sm:$0xff]
        %v1261 = vld [vmem:[%s374 + $0xda] sm:$0xff]
        %v1262 = vld [vmem:[%s374 + $0xe2] sm:$0xff]
        %v1263 = vld [vmem:[%s374 + $0xf2] sm:$0xff]
        %v1264 = vld [vmem:[%s374 + $0xfa] sm:$0xff]
        %v1265 = vld [vmem:[%s374 + $0x10a] sm:$0xff]
        %v1266 = vld [vmem:[%s374 + $0x112] sm:$0xff]
        %v1267 = vld [vmem:[%s374 + $0x122] sm:$0xff]
        %v1268 = vld [vmem:[%s374 + $0x12a] sm:$0xff]
        %v1269 = vld [vmem:[%s374 + $0x13a] sm:$0xff]
        %v1270 = vld [vmem:[%s374 + $0x142] sm:$0xff]
        %v1271 = vld [vmem:[%s374 + $0x152] sm:$0xff]
        %v1272 = vld [vmem:[%s374 + $0x15a] sm:$0xff]
        %v1273 = vld [vmem:[%s374 + $0x16a] sm:$0xff]
        %v1274 = vld [vmem:[%s374 + $0x172] sm:$0xff]
        %1307 = vrot.lane.b32.xlu0 %v1243, 20
        %v1308 = vpop.permute.xlu0 %1307
        %1309 = vrot.lane.b32.xlu0 %v1244, 20
        %v1310 = vpop.permute.xlu0 %1309
        %1311 = vrot.lane.b32.xlu0 %v1245, 20
        %v1312 = vpop.permute.xlu0 %1311
        %1313 = vrot.lane.b32.xlu0 %v1246, 20
        %v1314 = vpop.permute.xlu0 %1313
        %1315 = vrot.lane.b32.xlu0 %v1247, 20
        %v1316 = vpop.permute.xlu0 %1315
        %1317 = vrot.lane.b32.xlu0 %v1248, 20
        %v1318 = vpop.permute.xlu0 %1317
        %1319 = vrot.lane.b32.xlu0 %v1249, 20
        %v1320 = vpop.permute.xlu0 %1319
        %1321 = vrot.lane.b32.xlu0 %v1250, 20
        %v1322 = vpop.permute.xlu0 %1321
        %1323 = vrot.lane.b32.xlu0 %v1251, 20
        %v1324 = vpop.permute.xlu0 %1323
        %1325 = vrot.lane.b32.xlu0 %v1252, 20
        %v1326 = vpop.permute.xlu0 %1325
        %1327 = vrot.lane.b32.xlu0 %v1253, 20
        %v1328 = vpop.permute.xlu0 %1327
        %1329 = vrot.lane.b32.xlu0 %v1254, 20
        %v1330 = vpop.permute.xlu0 %1329
        %1331 = vrot.lane.b32.xlu0 %v1255, 20
        %v1332 = vpop.permute.xlu0 %1331
        %1333 = vrot.lane.b32.xlu0 %v1256, 20
        %v1334 = vpop.permute.xlu0 %1333
        %1335 = vrot.lane.b32.xlu0 %v1257, 20
        %v1336 = vpop.permute.xlu0 %1335
        %1337 = vrot.lane.b32.xlu0 %v1258, 20
        %v1338 = vpop.permute.xlu0 %1337
        %1339 = vrot.lane.b32.xlu0 %v1259, 20
        %v1340 = vpop.permute.xlu0 %1339
        %1341 = vrot.lane.b32.xlu0 %v1260, 20
        %v1342 = vpop.permute.xlu0 %1341
        %1343 = vrot.lane.b32.xlu0 %v1261, 20
        %v1344 = vpop.permute.xlu0 %1343
        %1345 = vrot.lane.b32.xlu0 %v1262, 20
        %v1346 = vpop.permute.xlu0 %1345
        %1347 = vrot.lane.b32.xlu0 %v1263, 20
        %v1348 = vpop.permute.xlu0 %1347
        %1349 = vrot.lane.b32.xlu0 %v1264, 20
        %v1350 = vpop.permute.xlu0 %1349
        %1351 = vrot.lane.b32.xlu0 %v1265, 20
        %v1352 = vpop.permute.xlu0 %1351
        %1353 = vrot.lane.b32.xlu0 %v1266, 20
        %v1354 = vpop.permute.xlu0 %1353
        %1355 = vrot.lane.b32.xlu0 %v1267, 20
        %v1356 = vpop.permute.xlu0 %1355
        %1357 = vrot.lane.b32.xlu0 %v1268, 20
        %v1358 = vpop.permute.xlu0 %1357
        %1359 = vrot.lane.b32.xlu0 %v1269, 20
        %v1360 = vpop.permute.xlu0 %1359
        %1361 = vrot.lane.b32.xlu0 %v1270, 20
        %v1362 = vpop.permute.xlu0 %1361
        %1363 = vrot.lane.b32.xlu0 %v1271, 20
        %v1364 = vpop.permute.xlu0 %1363
        %1365 = vrot.lane.b32.xlu0 %v1272, 20
        %v1366 = vpop.permute.xlu0 %1365
        %1367 = vrot.lane.b32.xlu0 %v1273, 20
        %v1368 = vpop.permute.xlu0 %1367
        %1369 = vrot.lane.b32.xlu0 %v1274, 20
        %v1370 = vpop.permute.xlu0 %1369
        %vm1403 = vcmask 195744
        %1404 = vst.msk [vmem:[#allocation3] sm:$0xff] %vm1403, %v1308
        %1405 = vst.msk [vmem:[#allocation3 + $0x8] sm:$0xff] %vm1403, %v1310
        %1406 = vst.msk [vmem:[#allocation3 + $0x10] sm:$0xff] %vm1403, %v1312
        %1407 = vst.msk [vmem:[#allocation3 + $0x18] sm:$0xff] %vm1403, %v1314
        %1408 = vst.msk [vmem:[#allocation3 + $0x20] sm:$0xff] %vm1403, %v1316
        %1409 = vst.msk [vmem:[#allocation3 + $0x28] sm:$0xff] %vm1403, %v1318
        %1410 = vst.msk [vmem:[#allocation3 + $0x30] sm:$0xff] %vm1403, %v1320
        %1411 = vst.msk [vmem:[#allocation3 + $0x38] sm:$0xff] %vm1403, %v1322
        %1412 = vst.msk [vmem:[#allocation3 + $0x40] sm:$0xff] %vm1403, %v1324
        %1413 = vst.msk [vmem:[#allocation3 + $0x48] sm:$0xff] %vm1403, %v1326
        %1414 = vst.msk [vmem:[#allocation3 + $0x50] sm:$0xff] %vm1403, %v1328
        %1415 = vst.msk [vmem:[#allocation3 + $0x58] sm:$0xff] %vm1403, %v1330
        %1416 = vst.msk [vmem:[#allocation3 + $0x60] sm:$0xff] %vm1403, %v1332
        %1417 = vst.msk [vmem:[#allocation3 + $0x68] sm:$0xff] %vm1403, %v1334
        %1418 = vst.msk [vmem:[#allocation3 + $0x70] sm:$0xff] %vm1403, %v1336
        %1419 = vst.msk [vmem:[#allocation3 + $0x78] sm:$0xff] %vm1403, %v1338
        %1420 = vst.msk [vmem:[#allocation3 + $0x80] sm:$0xff] %vm1403, %v1340
        %1421 = vst.msk [vmem:[#allocation3 + $0x88] sm:$0xff] %vm1403, %v1342
        %1422 = vst.msk [vmem:[#allocation3 + $0x90] sm:$0xff] %vm1403, %v1344
        %1423 = vst.msk [vmem:[#allocation3 + $0x98] sm:$0xff] %vm1403, %v1346
        %1424 = vst.msk [vmem:[#allocation3 + $0xa0] sm:$0xff] %vm1403, %v1348
        %1425 = vst.msk [vmem:[#allocation3 + $0xa8] sm:$0xff] %vm1403, %v1350
        %1426 = vst.msk [vmem:[#allocation3 + $0xb0] sm:$0xff] %vm1403, %v1352
        %1427 = vst.msk [vmem:[#allocation3 + $0xb8] sm:$0xff] %vm1403, %v1354
        %1428 = vst.msk [vmem:[#allocation3 + $0xc0] sm:$0xff] %vm1403, %v1356
        %1429 = vst.msk [vmem:[#allocation3 + $0xc8] sm:$0xff] %vm1403, %v1358
        %1430 = vst.msk [vmem:[#allocation3 + $0xd0] sm:$0xff] %vm1403, %v1360
        %1431 = vst.msk [vmem:[#allocation3 + $0xd8] sm:$0xff] %vm1403, %v1362
        %1432 = vst.msk [vmem:[#allocation3 + $0xe0] sm:$0xff] %vm1403, %v1364
        %1433 = vst.msk [vmem:[#allocation3 + $0xe8] sm:$0xff] %vm1403, %v1366
        %1434 = vst.msk [vmem:[#allocation3 + $0xf0] sm:$0xff] %vm1403, %v1368
        %1435 = vst.msk [vmem:[#allocation3 + $0xf8] sm:$0xff] %vm1403, %v1370
        %s1436 = scalar_lea.vmem [#allocation2], 48
        %v1437 = vld [vmem:[%s1436] sm:$0xff]
        %v1438 = vld [vmem:[%s1436 + $0x8] sm:$0xff]
        %v1439 = vld [vmem:[%s1436 + $0x18] sm:$0xff]
        %v1440 = vld [vmem:[%s1436 + $0x20] sm:$0xff]
        %v1441 = vld [vmem:[%s1436 + $0x30] sm:$0xff]
        %v1442 = vld [vmem:[%s1436 + $0x38] sm:$0xff]
        %v1443 = vld [vmem:[%s1436 + $0x48] sm:$0xff]
        %v1444 = vld [vmem:[%s1436 + $0x50] sm:$0xff]
        %v1445 = vld [vmem:[%s1436 + $0x60] sm:$0xff]
        %v1446 = vld [vmem:[%s1436 + $0x68] sm:$0xff]
        %v1447 = vld [vmem:[%s1436 + $0x78] sm:$0xff]
        %v1448 = vld [vmem:[%s1436 + $0x80] sm:$0xff]
        %v1449 = vld [vmem:[%s1436 + $0x90] sm:$0xff]
        %v1450 = vld [vmem:[%s1436 + $0x98] sm:$0xff]
        %v1451 = vld [vmem:[%s1436 + $0xa8] sm:$0xff]
        %v1452 = vld [vmem:[%s1436 + $0xb0] sm:$0xff]
        %v1453 = vld [vmem:[%s1436 + $0xc0] sm:$0xff]
        %v1454 = vld [vmem:[%s1436 + $0xc8] sm:$0xff]
        %v1455 = vld [vmem:[%s1436 + $0xd8] sm:$0xff]
        %v1456 = vld [vmem:[%s1436 + $0xe0] sm:$0xff]
        %v1457 = vld [vmem:[%s1436 + $0xf0] sm:$0xff]
        %v1458 = vld [vmem:[%s1436 + $0xf8] sm:$0xff]
        %v1459 = vld [vmem:[%s1436 + $0x108] sm:$0xff]
        %v1460 = vld [vmem:[%s1436 + $0x110] sm:$0xff]
        %v1461 = vld [vmem:[%s1436 + $0x120] sm:$0xff]
        %v1462 = vld [vmem:[%s1436 + $0x128] sm:$0xff]
        %v1463 = vld [vmem:[%s1436 + $0x138] sm:$0xff]
        %v1464 = vld [vmem:[%s1436 + $0x140] sm:$0xff]
        %v1465 = vld [vmem:[%s1436 + $0x150] sm:$0xff]
        %v1466 = vld [vmem:[%s1436 + $0x158] sm:$0xff]
        %v1467 = vld [vmem:[%s1436 + $0x168] sm:$0xff]
        %v1468 = vld [vmem:[%s1436 + $0x170] sm:$0xff]
        %1501 = vrot.lane.b32.xlu0 %v1437, 24
        %v1502 = vpop.permute.xlu0 %1501
        %1503 = vrot.lane.b32.xlu0 %v1438, 24
        %v1504 = vpop.permute.xlu0 %1503
        %1505 = vrot.lane.b32.xlu0 %v1439, 24
        %v1506 = vpop.permute.xlu0 %1505
        %1507 = vrot.lane.b32.xlu0 %v1440, 24
        %v1508 = vpop.permute.xlu0 %1507
        %1509 = vrot.lane.b32.xlu0 %v1441, 24
        %v1510 = vpop.permute.xlu0 %1509
        %1511 = vrot.lane.b32.xlu0 %v1442, 24
        %v1512 = vpop.permute.xlu0 %1511
        %1513 = vrot.lane.b32.xlu0 %v1443, 24
        %v1514 = vpop.permute.xlu0 %1513
        %1515 = vrot.lane.b32.xlu0 %v1444, 24
        %v1516 = vpop.permute.xlu0 %1515
        %1517 = vrot.lane.b32.xlu0 %v1445, 24
        %v1518 = vpop.permute.xlu0 %1517
        %1519 = vrot.lane.b32.xlu0 %v1446, 24
        %v1520 = vpop.permute.xlu0 %1519
        %1521 = vrot.lane.b32.xlu0 %v1447, 24
        %v1522 = vpop.permute.xlu0 %1521
        %1523 = vrot.lane.b32.xlu0 %v1448, 24
        %v1524 = vpop.permute.xlu0 %1523
        %1525 = vrot.lane.b32.xlu0 %v1449, 24
        %v1526 = vpop.permute.xlu0 %1525
        %1527 = vrot.lane.b32.xlu0 %v1450, 24
        %v1528 = vpop.permute.xlu0 %1527
        %1529 = vrot.lane.b32.xlu0 %v1451, 24
        %v1530 = vpop.permute.xlu0 %1529
        %1531 = vrot.lane.b32.xlu0 %v1452, 24
        %v1532 = vpop.permute.xlu0 %1531
        %1533 = vrot.lane.b32.xlu0 %v1453, 24
        %v1534 = vpop.permute.xlu0 %1533
        %1535 = vrot.lane.b32.xlu0 %v1454, 24
        %v1536 = vpop.permute.xlu0 %1535
        %1537 = vrot.lane.b32.xlu0 %v1455, 24
        %v1538 = vpop.permute.xlu0 %1537
        %1539 = vrot.lane.b32.xlu0 %v1456, 24
        %v1540 = vpop.permute.xlu0 %1539
        %1541 = vrot.lane.b32.xlu0 %v1457, 24
        %v1542 = vpop.permute.xlu0 %1541
        %1543 = vrot.lane.b32.xlu0 %v1458, 24
        %v1544 = vpop.permute.xlu0 %1543
        %1545 = vrot.lane.b32.xlu0 %v1459, 24
        %v1546 = vpop.permute.xlu0 %1545
        %1547 = vrot.lane.b32.xlu0 %v1460, 24
        %v1548 = vpop.permute.xlu0 %1547
        %1549 = vrot.lane.b32.xlu0 %v1461, 24
        %v1550 = vpop.permute.xlu0 %1549
        %1551 = vrot.lane.b32.xlu0 %v1462, 24
        %v1552 = vpop.permute.xlu0 %1551
        %1553 = vrot.lane.b32.xlu0 %v1463, 24
        %v1554 = vpop.permute.xlu0 %1553
        %1555 = vrot.lane.b32.xlu0 %v1464, 24
        %v1556 = vpop.permute.xlu0 %1555
        %1557 = vrot.lane.b32.xlu0 %v1465, 24
        %v1558 = vpop.permute.xlu0 %1557
        %1559 = vrot.lane.b32.xlu0 %v1466, 24
        %v1560 = vpop.permute.xlu0 %1559
        %1561 = vrot.lane.b32.xlu0 %v1467, 24
        %v1562 = vpop.permute.xlu0 %1561
        %1563 = vrot.lane.b32.xlu0 %v1468, 24
        %v1564 = vpop.permute.xlu0 %1563
        %vm1597 = vcmask 228544
        %1598 = vst.msk [vmem:[#allocation3] sm:$0xff] %vm1597, %v1502
        %1599 = vst.msk [vmem:[#allocation3 + $0x8] sm:$0xff] %vm1597, %v1504
        %1600 = vst.msk [vmem:[#allocation3 + $0x10] sm:$0xff] %vm1597, %v1506
        %1601 = vst.msk [vmem:[#allocation3 + $0x18] sm:$0xff] %vm1597, %v1508
        %1602 = vst.msk [vmem:[#allocation3 + $0x20] sm:$0xff] %vm1597, %v1510
        %1603 = vst.msk [vmem:[#allocation3 + $0x28] sm:$0xff] %vm1597, %v1512
        %1604 = vst.msk [vmem:[#allocation3 + $0x30] sm:$0xff] %vm1597, %v1514
        %1605 = vst.msk [vmem:[#allocation3 + $0x38] sm:$0xff] %vm1597, %v1516
        %1606 = vst.msk [vmem:[#allocation3 + $0x40] sm:$0xff] %vm1597, %v1518
        %1607 = vst.msk [vmem:[#allocation3 + $0x48] sm:$0xff] %vm1597, %v1520
        %1608 = vst.msk [vmem:[#allocation3 + $0x50] sm:$0xff] %vm1597, %v1522
        %1609 = vst.msk [vmem:[#allocation3 + $0x58] sm:$0xff] %vm1597, %v1524
        %1610 = vst.msk [vmem:[#allocation3 + $0x60] sm:$0xff] %vm1597, %v1526
        %1611 = vst.msk [vmem:[#allocation3 + $0x68] sm:$0xff] %vm1597, %v1528
        %1612 = vst.msk [vmem:[#allocation3 + $0x70] sm:$0xff] %vm1597, %v1530
        %1613 = vst.msk [vmem:[#allocation3 + $0x78] sm:$0xff] %vm1597, %v1532
        %1614 = vst.msk [vmem:[#allocation3 + $0x80] sm:$0xff] %vm1597, %v1534
        %1615 = vst.msk [vmem:[#allocation3 + $0x88] sm:$0xff] %vm1597, %v1536
        %1616 = vst.msk [vmem:[#allocation3 + $0x90] sm:$0xff] %vm1597, %v1538
        %1617 = vst.msk [vmem:[#allocation3 + $0x98] sm:$0xff] %vm1597, %v1540
        %1618 = vst.msk [vmem:[#allocation3 + $0xa0] sm:$0xff] %vm1597, %v1542
        %1619 = vst.msk [vmem:[#allocation3 + $0xa8] sm:$0xff] %vm1597, %v1544
        %1620 = vst.msk [vmem:[#allocation3 + $0xb0] sm:$0xff] %vm1597, %v1546
        %1621 = vst.msk [vmem:[#allocation3 + $0xb8] sm:$0xff] %vm1597, %v1548
        %1622 = vst.msk [vmem:[#allocation3 + $0xc0] sm:$0xff] %vm1597, %v1550
        %1623 = vst.msk [vmem:[#allocation3 + $0xc8] sm:$0xff] %vm1597, %v1552
        %1624 = vst.msk [vmem:[#allocation3 + $0xd0] sm:$0xff] %vm1597, %v1554
        %1625 = vst.msk [vmem:[#allocation3 + $0xd8] sm:$0xff] %vm1597, %v1556
        %1626 = vst.msk [vmem:[#allocation3 + $0xe0] sm:$0xff] %vm1597, %v1558
        %1627 = vst.msk [vmem:[#allocation3 + $0xe8] sm:$0xff] %vm1597, %v1560
        %1628 = vst.msk [vmem:[#allocation3 + $0xf0] sm:$0xff] %vm1597, %v1562
        %1629 = vst.msk [vmem:[#allocation3 + $0xf8] sm:$0xff] %vm1597, %v1564
        %v1630 = vld [vmem:[%s1436 + $0x1] sm:$0xff]
        %v1631 = vld [vmem:[%s1436 + $0x9] sm:$0xff]
        %v1632 = vld [vmem:[%s1436 + $0x19] sm:$0xff]
        %v1633 = vld [vmem:[%s1436 + $0x21] sm:$0xff]
        %v1634 = vld [vmem:[%s1436 + $0x31] sm:$0xff]
        %v1635 = vld [vmem:[%s1436 + $0x39] sm:$0xff]
        %v1636 = vld [vmem:[%s1436 + $0x49] sm:$0xff]
        %v1637 = vld [vmem:[%s1436 + $0x51] sm:$0xff]
        %v1638 = vld [vmem:[%s1436 + $0x61] sm:$0xff]
        %v1639 = vld [vmem:[%s1436 + $0x69] sm:$0xff]
        %v1640 = vld [vmem:[%s1436 + $0x79] sm:$0xff]
        %v1641 = vld [vmem:[%s1436 + $0x81] sm:$0xff]
        %v1642 = vld [vmem:[%s1436 + $0x91] sm:$0xff]
        %v1643 = vld [vmem:[%s1436 + $0x99] sm:$0xff]
        %v1644 = vld [vmem:[%s1436 + $0xa9] sm:$0xff]
        %v1645 = vld [vmem:[%s1436 + $0xb1] sm:$0xff]
        %v1646 = vld [vmem:[%s1436 + $0xc1] sm:$0xff]
        %v1647 = vld [vmem:[%s1436 + $0xc9] sm:$0xff]
        %v1648 = vld [vmem:[%s1436 + $0xd9] sm:$0xff]
        %v1649 = vld [vmem:[%s1436 + $0xe1] sm:$0xff]
        %v1650 = vld [vmem:[%s1436 + $0xf1] sm:$0xff]
        %v1651 = vld [vmem:[%s1436 + $0xf9] sm:$0xff]
        %v1652 = vld [vmem:[%s1436 + $0x109] sm:$0xff]
        %v1653 = vld [vmem:[%s1436 + $0x111] sm:$0xff]
        %v1654 = vld [vmem:[%s1436 + $0x121] sm:$0xff]
        %v1655 = vld [vmem:[%s1436 + $0x129] sm:$0xff]
        %v1656 = vld [vmem:[%s1436 + $0x139] sm:$0xff]
        %v1657 = vld [vmem:[%s1436 + $0x141] sm:$0xff]
        %v1658 = vld [vmem:[%s1436 + $0x151] sm:$0xff]
        %v1659 = vld [vmem:[%s1436 + $0x159] sm:$0xff]
        %v1660 = vld [vmem:[%s1436 + $0x169] sm:$0xff]
        %v1661 = vld [vmem:[%s1436 + $0x171] sm:$0xff]
        %1694 = vrot.lane.b32.xlu0 %v1630, 28
        %v1695 = vpop.permute.xlu0 %1694
        %1696 = vrot.lane.b32.xlu0 %v1631, 28
        %v1697 = vpop.permute.xlu0 %1696
        %1698 = vrot.lane.b32.xlu0 %v1632, 28
        %v1699 = vpop.permute.xlu0 %1698
        %1700 = vrot.lane.b32.xlu0 %v1633, 28
        %v1701 = vpop.permute.xlu0 %1700
        %1702 = vrot.lane.b32.xlu0 %v1634, 28
        %v1703 = vpop.permute.xlu0 %1702
        %1704 = vrot.lane.b32.xlu0 %v1635, 28
        %v1705 = vpop.permute.xlu0 %1704
        %1706 = vrot.lane.b32.xlu0 %v1636, 28
        %v1707 = vpop.permute.xlu0 %1706
        %1708 = vrot.lane.b32.xlu0 %v1637, 28
        %v1709 = vpop.permute.xlu0 %1708
        %1710 = vrot.lane.b32.xlu0 %v1638, 28
        %v1711 = vpop.permute.xlu0 %1710
        %1712 = vrot.lane.b32.xlu0 %v1639, 28
        %v1713 = vpop.permute.xlu0 %1712
        %1714 = vrot.lane.b32.xlu0 %v1640, 28
        %v1715 = vpop.permute.xlu0 %1714
        %1716 = vrot.lane.b32.xlu0 %v1641, 28
        %v1717 = vpop.permute.xlu0 %1716
        %1718 = vrot.lane.b32.xlu0 %v1642, 28
        %v1719 = vpop.permute.xlu0 %1718
        %1720 = vrot.lane.b32.xlu0 %v1643, 28
        %v1721 = vpop.permute.xlu0 %1720
        %1722 = vrot.lane.b32.xlu0 %v1644, 28
        %v1723 = vpop.permute.xlu0 %1722
        %1724 = vrot.lane.b32.xlu0 %v1645, 28
        %v1725 = vpop.permute.xlu0 %1724
        %1726 = vrot.lane.b32.xlu0 %v1646, 28
        %v1727 = vpop.permute.xlu0 %1726
        %1728 = vrot.lane.b32.xlu0 %v1647, 28
        %v1729 = vpop.permute.xlu0 %1728
        %1730 = vrot.lane.b32.xlu0 %v1648, 28
        %v1731 = vpop.permute.xlu0 %1730
        %1732 = vrot.lane.b32.xlu0 %v1649, 28
        %v1733 = vpop.permute.xlu0 %1732
        %1734 = vrot.lane.b32.xlu0 %v1650, 28
        %v1735 = vpop.permute.xlu0 %1734
        %1736 = vrot.lane.b32.xlu0 %v1651, 28
        %v1737 = vpop.permute.xlu0 %1736
        %1738 = vrot.lane.b32.xlu0 %v1652, 28
        %v1739 = vpop.permute.xlu0 %1738
        %1740 = vrot.lane.b32.xlu0 %v1653, 28
        %v1741 = vpop.permute.xlu0 %1740
        %1742 = vrot.lane.b32.xlu0 %v1654, 28
        %v1743 = vpop.permute.xlu0 %1742
        %1744 = vrot.lane.b32.xlu0 %v1655, 28
        %v1745 = vpop.permute.xlu0 %1744
        %1746 = vrot.lane.b32.xlu0 %v1656, 28
        %v1747 = vpop.permute.xlu0 %1746
        %1748 = vrot.lane.b32.xlu0 %v1657, 28
        %v1749 = vpop.permute.xlu0 %1748
        %1750 = vrot.lane.b32.xlu0 %v1658, 28
        %v1751 = vpop.permute.xlu0 %1750
        %1752 = vrot.lane.b32.xlu0 %v1659, 28
        %v1753 = vpop.permute.xlu0 %1752
        %1754 = vrot.lane.b32.xlu0 %v1660, 28
        %v1755 = vpop.permute.xlu0 %1754
        %1756 = vrot.lane.b32.xlu0 %v1661, 28
        %v1757 = vpop.permute.xlu0 %1756
        %vm1790 = vcmask 261344
        %1791 = vst.msk [vmem:[#allocation3] sm:$0xff] %vm1790, %v1695
        %1792 = vst.msk [vmem:[#allocation3 + $0x8] sm:$0xff] %vm1790, %v1697
        %1793 = vst.msk [vmem:[#allocation3 + $0x10] sm:$0xff] %vm1790, %v1699
        %1794 = vst.msk [vmem:[#allocation3 + $0x18] sm:$0xff] %vm1790, %v1701
        %1795 = vst.msk [vmem:[#allocation3 + $0x20] sm:$0xff] %vm1790, %v1703
        %1796 = vst.msk [vmem:[#allocation3 + $0x28] sm:$0xff] %vm1790, %v1705
        %1797 = vst.msk [vmem:[#allocation3 + $0x30] sm:$0xff] %vm1790, %v1707
        %1798 = vst.msk [vmem:[#allocation3 + $0x38] sm:$0xff] %vm1790, %v1709
        %1799 = vst.msk [vmem:[#allocation3 + $0x40] sm:$0xff] %vm1790, %v1711
        %1800 = vst.msk [vmem:[#allocation3 + $0x48] sm:$0xff] %vm1790, %v1713
        %1801 = vst.msk [vmem:[#allocation3 + $0x50] sm:$0xff] %vm1790, %v1715
        %1802 = vst.msk [vmem:[#allocation3 + $0x58] sm:$0xff] %vm1790, %v1717
        %1803 = vst.msk [vmem:[#allocation3 + $0x60] sm:$0xff] %vm1790, %v1719
        %1804 = vst.msk [vmem:[#allocation3 + $0x68] sm:$0xff] %vm1790, %v1721
        %1805 = vst.msk [vmem:[#allocation3 + $0x70] sm:$0xff] %vm1790, %v1723
        %1806 = vst.msk [vmem:[#allocation3 + $0x78] sm:$0xff] %vm1790, %v1725
        %1807 = vst.msk [vmem:[#allocation3 + $0x80] sm:$0xff] %vm1790, %v1727
        %1808 = vst.msk [vmem:[#allocation3 + $0x88] sm:$0xff] %vm1790, %v1729
        %1809 = vst.msk [vmem:[#allocation3 + $0x90] sm:$0xff] %vm1790, %v1731
        %1810 = vst.msk [vmem:[#allocation3 + $0x98] sm:$0xff] %vm1790, %v1733
        %1811 = vst.msk [vmem:[#allocation3 + $0xa0] sm:$0xff] %vm1790, %v1735
        %1812 = vst.msk [vmem:[#allocation3 + $0xa8] sm:$0xff] %vm1790, %v1737
        %1813 = vst.msk [vmem:[#allocation3 + $0xb0] sm:$0xff] %vm1790, %v1739
        %1814 = vst.msk [vmem:[#allocation3 + $0xb8] sm:$0xff] %vm1790, %v1741
        %1815 = vst.msk [vmem:[#allocation3 + $0xc0] sm:$0xff] %vm1790, %v1743
        %1816 = vst.msk [vmem:[#allocation3 + $0xc8] sm:$0xff] %vm1790, %v1745
        %1817 = vst.msk [vmem:[#allocation3 + $0xd0] sm:$0xff] %vm1790, %v1747
        %1818 = vst.msk [vmem:[#allocation3 + $0xd8] sm:$0xff] %vm1790, %v1749
        %1819 = vst.msk [vmem:[#allocation3 + $0xe0] sm:$0xff] %vm1790, %v1751
        %1820 = vst.msk [vmem:[#allocation3 + $0xe8] sm:$0xff] %vm1790, %v1753
        %1821 = vst.msk [vmem:[#allocation3 + $0xf0] sm:$0xff] %vm1790, %v1755
        %1822 = vst.msk [vmem:[#allocation3 + $0xf8] sm:$0xff] %vm1790, %v1757
        %v1823 = vld [vmem:[%s1436 + $0x2] sm:$0xff]
        %v1824 = vld [vmem:[%s1436 + $0xa] sm:$0xff]
        %v1825 = vld [vmem:[%s1436 + $0x1a] sm:$0xff]
        %v1826 = vld [vmem:[%s1436 + $0x22] sm:$0xff]
        %v1827 = vld [vmem:[%s1436 + $0x32] sm:$0xff]
        %v1828 = vld [vmem:[%s1436 + $0x3a] sm:$0xff]
        %v1829 = vld [vmem:[%s1436 + $0x4a] sm:$0xff]
        %v1830 = vld [vmem:[%s1436 + $0x52] sm:$0xff]
        %v1831 = vld [vmem:[%s1436 + $0x62] sm:$0xff]
        %v1832 = vld [vmem:[%s1436 + $0x6a] sm:$0xff]
        %v1833 = vld [vmem:[%s1436 + $0x7a] sm:$0xff]
        %v1834 = vld [vmem:[%s1436 + $0x82] sm:$0xff]
        %v1835 = vld [vmem:[%s1436 + $0x92] sm:$0xff]
        %v1836 = vld [vmem:[%s1436 + $0x9a] sm:$0xff]
        %v1837 = vld [vmem:[%s1436 + $0xaa] sm:$0xff]
        %v1838 = vld [vmem:[%s1436 + $0xb2] sm:$0xff]
        %v1839 = vld [vmem:[%s1436 + $0xc2] sm:$0xff]
        %v1840 = vld [vmem:[%s1436 + $0xca] sm:$0xff]
        %v1841 = vld [vmem:[%s1436 + $0xda] sm:$0xff]
        %v1842 = vld [vmem:[%s1436 + $0xe2] sm:$0xff]
        %v1843 = vld [vmem:[%s1436 + $0xf2] sm:$0xff]
        %v1844 = vld [vmem:[%s1436 + $0xfa] sm:$0xff]
        %v1845 = vld [vmem:[%s1436 + $0x10a] sm:$0xff]
        %v1846 = vld [vmem:[%s1436 + $0x112] sm:$0xff]
        %v1847 = vld [vmem:[%s1436 + $0x122] sm:$0xff]
        %v1848 = vld [vmem:[%s1436 + $0x12a] sm:$0xff]
        %v1849 = vld [vmem:[%s1436 + $0x13a] sm:$0xff]
        %v1850 = vld [vmem:[%s1436 + $0x142] sm:$0xff]
        %v1851 = vld [vmem:[%s1436 + $0x152] sm:$0xff]
        %v1852 = vld [vmem:[%s1436 + $0x15a] sm:$0xff]
        %v1853 = vld [vmem:[%s1436 + $0x16a] sm:$0xff]
        %v1854 = vld [vmem:[%s1436 + $0x172] sm:$0xff]
        %1887 = vrot.lane.b32.xlu0 %v1823, 32
        %v1888 = vpop.permute.xlu0 %1887
        %1889 = vrot.lane.b32.xlu0 %v1824, 32
        %v1890 = vpop.permute.xlu0 %1889
        %1891 = vrot.lane.b32.xlu0 %v1825, 32
        %v1892 = vpop.permute.xlu0 %1891
        %1893 = vrot.lane.b32.xlu0 %v1826, 32
        %v1894 = vpop.permute.xlu0 %1893
        %1895 = vrot.lane.b32.xlu0 %v1827, 32
        %v1896 = vpop.permute.xlu0 %1895
        %1897 = vrot.lane.b32.xlu0 %v1828, 32
        %v1898 = vpop.permute.xlu0 %1897
        %1899 = vrot.lane.b32.xlu0 %v1829, 32
        %v1900 = vpop.permute.xlu0 %1899
        %1901 = vrot.lane.b32.xlu0 %v1830, 32
        %v1902 = vpop.permute.xlu0 %1901
        %1903 = vrot.lane.b32.xlu0 %v1831, 32
        %v1904 = vpop.permute.xlu0 %1903
        %1905 = vrot.lane.b32.xlu0 %v1832, 32
        %v1906 = vpop.permute.xlu0 %1905
        %1907 = vrot.lane.b32.xlu0 %v1833, 32
        %v1908 = vpop.permute.xlu0 %1907
        %1909 = vrot.lane.b32.xlu0 %v1834, 32
        %v1910 = vpop.permute.xlu0 %1909
        %1911 = vrot.lane.b32.xlu0 %v1835, 32
        %v1912 = vpop.permute.xlu0 %1911
        %1913 = vrot.lane.b32.xlu0 %v1836, 32
        %v1914 = vpop.permute.xlu0 %1913
        %1915 = vrot.lane.b32.xlu0 %v1837, 32
        %v1916 = vpop.permute.xlu0 %1915
        %1917 = vrot.lane.b32.xlu0 %v1838, 32
        %v1918 = vpop.permute.xlu0 %1917
        %1919 = vrot.lane.b32.xlu0 %v1839, 32
        %v1920 = vpop.permute.xlu0 %1919
        %1921 = vrot.lane.b32.xlu0 %v1840, 32
        %v1922 = vpop.permute.xlu0 %1921
        %1923 = vrot.lane.b32.xlu0 %v1841, 32
        %v1924 = vpop.permute.xlu0 %1923
        %1925 = vrot.lane.b32.xlu0 %v1842, 32
        %v1926 = vpop.permute.xlu0 %1925
        %1927 = vrot.lane.b32.xlu0 %v1843, 32
        %v1928 = vpop.permute.xlu0 %1927
        %1929 = vrot.lane.b32.xlu0 %v1844, 32
        %v1930 = vpop.permute.xlu0 %1929
        %1931 = vrot.lane.b32.xlu0 %v1845, 32
        %v1932 = vpop.permute.xlu0 %1931
        %1933 = vrot.lane.b32.xlu0 %v1846, 32
        %v1934 = vpop.permute.xlu0 %1933
        %1935 = vrot.lane.b32.xlu0 %v1847, 32
        %v1936 = vpop.permute.xlu0 %1935
        %1937 = vrot.lane.b32.xlu0 %v1848, 32
        %v1938 = vpop.permute.xlu0 %1937
        %1939 = vrot.lane.b32.xlu0 %v1849, 32
        %v1940 = vpop.permute.xlu0 %1939
        %1941 = vrot.lane.b32.xlu0 %v1850, 32
        %v1942 = vpop.permute.xlu0 %1941
        %1943 = vrot.lane.b32.xlu0 %v1851, 32
        %v1944 = vpop.permute.xlu0 %1943
        %1945 = vrot.lane.b32.xlu0 %v1852, 32
        %v1946 = vpop.permute.xlu0 %1945
        %1947 = vrot.lane.b32.xlu0 %v1853, 32
        %v1948 = vpop.permute.xlu0 %1947
        %1949 = vrot.lane.b32.xlu0 %v1854, 32
        %v1950 = vpop.permute.xlu0 %1949
        %vm1983 = vcmask 294144
        %1984 = vst.msk [vmem:[#allocation3] sm:$0xff] %vm1983, %v1888
        %1985 = vst.msk [vmem:[#allocation3 + $0x8] sm:$0xff] %vm1983, %v1890
        %1986 = vst.msk [vmem:[#allocation3 + $0x10] sm:$0xff] %vm1983, %v1892
        %1987 = vst.msk [vmem:[#allocation3 + $0x18] sm:$0xff] %vm1983, %v1894
        %1988 = vst.msk [vmem:[#allocation3 + $0x20] sm:$0xff] %vm1983, %v1896
        %1989 = vst.msk [vmem:[#allocation3 + $0x28] sm:$0xff] %vm1983, %v1898
        %1990 = vst.msk [vmem:[#allocation3 + $0x30] sm:$0xff] %vm1983, %v1900
        %1991 = vst.msk [vmem:[#allocation3 + $0x38] sm:$0xff] %vm1983, %v1902
        %1992 = vst.msk [vmem:[#allocation3 + $0x40] sm:$0xff] %vm1983, %v1904
        %1993 = vst.msk [vmem:[#allocation3 + $0x48] sm:$0xff] %vm1983, %v1906
        %1994 = vst.msk [vmem:[#allocation3 + $0x50] sm:$0xff] %vm1983, %v1908
        %1995 = vst.msk [vmem:[#allocation3 + $0x58] sm:$0xff] %vm1983, %v1910
        %1996 = vst.msk [vmem:[#allocation3 + $0x60] sm:$0xff] %vm1983, %v1912
        %1997 = vst.msk [vmem:[#allocation3 + $0x68] sm:$0xff] %vm1983, %v1914
        %1998 = vst.msk [vmem:[#allocation3 + $0x70] sm:$0xff] %vm1983, %v1916
        %1999 = vst.msk [vmem:[#allocation3 + $0x78] sm:$0xff] %vm1983, %v1918
        %2000 = vst.msk [vmem:[#allocation3 + $0x80] sm:$0xff] %vm1983, %v1920
        %2001 = vst.msk [vmem:[#allocation3 + $0x88] sm:$0xff] %vm1983, %v1922
        %2002 = vst.msk [vmem:[#allocation3 + $0x90] sm:$0xff] %vm1983, %v1924
        %2003 = vst.msk [vmem:[#allocation3 + $0x98] sm:$0xff] %vm1983, %v1926
        %2004 = vst.msk [vmem:[#allocation3 + $0xa0] sm:$0xff] %vm1983, %v1928
        %2005 = vst.msk [vmem:[#allocation3 + $0xa8] sm:$0xff] %vm1983, %v1930
        %2006 = vst.msk [vmem:[#allocation3 + $0xb0] sm:$0xff] %vm1983, %v1932
        %2007 = vst.msk [vmem:[#allocation3 + $0xb8] sm:$0xff] %vm1983, %v1934
        %2008 = vst.msk [vmem:[#allocation3 + $0xc0] sm:$0xff] %vm1983, %v1936
        %2009 = vst.msk [vmem:[#allocation3 + $0xc8] sm:$0xff] %vm1983, %v1938
        %2010 = vst.msk [vmem:[#allocation3 + $0xd0] sm:$0xff] %vm1983, %v1940
        %2011 = vst.msk [vmem:[#allocation3 + $0xd8] sm:$0xff] %vm1983, %v1942
        %2012 = vst.msk [vmem:[#allocation3 + $0xe0] sm:$0xff] %vm1983, %v1944
        %2013 = vst.msk [vmem:[#allocation3 + $0xe8] sm:$0xff] %vm1983, %v1946
        %2014 = vst.msk [vmem:[#allocation3 + $0xf0] sm:$0xff] %vm1983, %v1948
        %2015 = vst.msk [vmem:[#allocation3 + $0xf8] sm:$0xff] %vm1983, %v1950
        %v2016 = vld [vmem:[#allocation3] sm:$0xff]
        %v2017 = vld [vmem:[#allocation3 + $0x8] sm:$0xff]
        %v2018 = vld [vmem:[#allocation3 + $0x10] sm:$0xff]
        %v2019 = vld [vmem:[#allocation3 + $0x18] sm:$0xff]
        %v2020 = vld [vmem:[#allocation3 + $0x20] sm:$0xff]
        %v2021 = vld [vmem:[#allocation3 + $0x28] sm:$0xff]
        %v2022 = vld [vmem:[#allocation3 + $0x30] sm:$0xff]
        %v2023 = vld [vmem:[#allocation3 + $0x38] sm:$0xff]
        %v2024 = vld [vmem:[#allocation3 + $0x40] sm:$0xff]
        %v2025 = vld [vmem:[#allocation3 + $0x48] sm:$0xff]
        %v2026 = vld [vmem:[#allocation3 + $0x50] sm:$0xff]
        %v2027 = vld [vmem:[#allocation3 + $0x58] sm:$0xff]
        %v2028 = vld [vmem:[#allocation3 + $0x60] sm:$0xff]
        %v2029 = vld [vmem:[#allocation3 + $0x68] sm:$0xff]
        %v2030 = vld [vmem:[#allocation3 + $0x70] sm:$0xff]
        %v2031 = vld [vmem:[#allocation3 + $0x78] sm:$0xff]
        %v2032 = vld [vmem:[#allocation3 + $0x80] sm:$0xff]
        %v2033 = vld [vmem:[#allocation3 + $0x88] sm:$0xff]
        %v2034 = vld [vmem:[#allocation3 + $0x90] sm:$0xff]
        %v2035 = vld [vmem:[#allocation3 + $0x98] sm:$0xff]
        %v2036 = vld [vmem:[#allocation3 + $0xa0] sm:$0xff]
        %v2037 = vld [vmem:[#allocation3 + $0xa8] sm:$0xff]
        %v2038 = vld [vmem:[#allocation3 + $0xb0] sm:$0xff]
        %v2039 = vld [vmem:[#allocation3 + $0xb8] sm:$0xff]
        %v2040 = vld [vmem:[#allocation3 + $0xc0] sm:$0xff]
        %v2041 = vld [vmem:[#allocation3 + $0xc8] sm:$0xff]
        %v2042 = vld [vmem:[#allocation3 + $0xd0] sm:$0xff]
        %v2043 = vld [vmem:[#allocation3 + $0xd8] sm:$0xff]
        %v2044 = vld [vmem:[#allocation3 + $0xe0] sm:$0xff]
        %v2045 = vld [vmem:[#allocation3 + $0xe8] sm:$0xff]
        %v2046 = vld [vmem:[#allocation3 + $0xf0] sm:$0xff]
        %v2047 = vld [vmem:[#allocation3 + $0xf8] sm:$0xff]
        %v2048 = vpack.c.bf16 %v2017, %v2016
        %v2049 = vpack.c.bf16 %v2019, %v2018
        %v2050 = vpack.c.bf16 %v2021, %v2020
        %v2051 = vpack.c.bf16 %v2023, %v2022
        %v2052 = vpack.c.bf16 %v2025, %v2024
        %v2053 = vpack.c.bf16 %v2027, %v2026
        %v2054 = vpack.c.bf16 %v2029, %v2028
        %v2055 = vpack.c.bf16 %v2031, %v2030
        %v2056 = vpack.c.bf16 %v2033, %v2032
        %v2057 = vpack.c.bf16 %v2035, %v2034
        %v2058 = vpack.c.bf16 %v2037, %v2036
        %v2059 = vpack.c.bf16 %v2039, %v2038
        %v2060 = vpack.c.bf16 %v2041, %v2040
        %v2061 = vpack.c.bf16 %v2043, %v2042
        %v2062 = vpack.c.bf16 %v2045, %v2044
        %v2063 = vpack.c.bf16 %v2047, %v2046
        %v2064 = vld [vmem:[#allocation7] sm:$0xf]
        %v2065 = vld [vmem:[#allocation7 + $0x4] sm:$0xf]
        %v2066 = vld [vmem:[#allocation7 + $0x8] sm:$0xf]
        %v2067 = vld [vmem:[#allocation7 + $0xc] sm:$0xf]
        %v2068 = vld [vmem:[#allocation7 + $0x10] sm:$0x3]
        %v2069 = vld [vmem:[#allocation9] sm:$0x1]
        %v2071 = vlaneseq
        %v2072 = vshrl.u32 %v2071, 7
        %v2073 = vsub.s32 0, %v2072
        %v2074 = vrot.slane %v2069, %v2073
        %v2081 = vunpack.c.l.b16 %v2064
        %v2082 = vunpack.c.l.b16 %v2065
        %v2083 = vunpack.c.l.b16 %v2066
        %v2084 = vunpack.c.l.b16 %v2067
        %v2085 = vunpack.c.l.b16 %v2068
        %v2086 = vpack.c.b16 %v2082, %v2081
        %v2087 = vpack.c.b16 %v2084, %v2083
        %v2088 = vpack.c.b16 %v2085, %v2085
        %vm2091 = vcmask 293888
        %v2093 = vsel %vm2091, %v2048, 0
        %v2096 = vsel %vm2091, %v2049, 0
        %v2099 = vsel %vm2091, %v2050, 0
        %v2102 = vsel %vm2091, %v2051, 0
        %v2105 = vsel %vm2091, %v2052, 0
        %v2108 = vsel %vm2091, %v2053, 0
        %v2111 = vsel %vm2091, %v2054, 0
        %v2114 = vsel %vm2091, %v2055, 0
        %v2117 = vsel %vm2091, %v2056, 0
        %v2120 = vsel %vm2091, %v2057, 0
        %v2123 = vsel %vm2091, %v2058, 0
        %v2126 = vsel %vm2091, %v2059, 0
        %v2129 = vsel %vm2091, %v2060, 0
        %v2132 = vsel %vm2091, %v2061, 0
        %v2135 = vsel %vm2091, %v2062, 0
        %v2138 = vsel %vm2091, %v2063, 0
        %vm2140 = vcmask 1041408
        %v2142 = vsel %vm2140, %v2088, 0
        %2144 = vmatprep.subr.bf16.mxu0 0
        %2145 = vmatpush1.bf16.msra.mxu0 %v2086
        %2146 = vmatprep.subr.bf16.mxu0 0
        %2147 = vmatpush1.bf16.msra.mxu0 %v2087
        %2148 = vmatprep.subr.bf16.mxu0 0
        %2149 = vmatpush1.bf16.msra.mxu0 %v2142
        %2150 = vmatprep.subr.bf16.mxu0 0
        %2151 = vmatpush1.bf16.msra.mxu0 0
        %2152 = vmatprep.subr.bf16.mxu0 0
        %2153 = vmatpush1.bf16.msra.mxu0 0
        %2154 = vmatprep.subr.bf16.mxu0 0
        %2155 = vmatpush1.bf16.msra.mxu0 0
        %2156 = vmatprep.subr.bf16.mxu0 0
        %2157 = vmatpush1.bf16.msra.mxu0 0
        %2158 = vmatprep.subr.bf16.mxu0 0
        %2159 = vmatpush1.bf16.msra.mxu0 0
        %2160 = vmatprep.subr.bf16.mxu0 0
        %2161 = vmatpush1.bf16.msra.mxu0 0
        %2162 = vmatprep.subr.bf16.mxu0 0
        %2163 = vmatpush1.bf16.msra.mxu0 0
        %2164 = vmatprep.subr.bf16.mxu0 0
        %2165 = vmatpush1.bf16.msra.mxu0 0
        %2166 = vmatprep.subr.bf16.mxu0 0
        %2167 = vmatpush1.bf16.msra.mxu0 0
        %2168 = vmatprep.subr.bf16.mxu0 0
        %2169 = vmatpush1.bf16.msra.mxu0 0
        %2170 = vmatprep.subr.bf16.mxu0 0
        %2171 = vmatpush1.bf16.msra.mxu0 0
        %2172 = vmatprep.subr.bf16.mxu0 0
        %2173 = vmatpush1.bf16.msra.mxu0 0
        %2174 = vmatprep.subr.bf16.mxu0 0
        %2175 = vmatpush1.bf16.msra.mxu0 0
        %2176 = vmatprep.mubr.bf16.mxu0 0
        %2177 = vmatmul.mubr.bf16.gmra.mrb[0].mxu0 %v2093
        %v2178 = vpop.f32.mrb[0].mxu0
        %v2179 = vadd.f32 %v2074, %v2178
        %v2180 = vpop.f32.mrb[0].mxu0
        %v2181 = vpop.f32.mrb[0].mxu0
        %v2182 = vadd.f32 %v2074, %v2181
        %v2183 = vpop.f32.mrb[0].mxu0
        %2184 = vmatprep.mubr.bf16.mxu0 0
        %2185 = vmatmul.mubr.bf16.gmra.mrb[0].mxu0 %v2096
        %v2186 = vpop.f32.mrb[0].mxu0
        %v2187 = vadd.f32 %v2074, %v2186
        %v2188 = vpop.f32.mrb[0].mxu0
        %v2189 = vpop.f32.mrb[0].mxu0
        %v2190 = vadd.f32 %v2074, %v2189
        %v2191 = vpop.f32.mrb[0].mxu0
        %2192 = vmatprep.mubr.bf16.mxu0 0
        %2193 = vmatmul.mubr.bf16.gmra.mrb[0].mxu0 %v2099
        %v2194 = vpop.f32.mrb[0].mxu0
        %v2195 = vadd.f32 %v2074, %v2194
        %v2196 = vpop.f32.mrb[0].mxu0
        %v2197 = vpop.f32.mrb[0].mxu0
        %v2198 = vadd.f32 %v2074, %v2197
        %v2199 = vpop.f32.mrb[0].mxu0
        %2200 = vmatprep.mubr.bf16.mxu0 0
        %2201 = vmatmul.mubr.bf16.gmra.mrb[0].mxu0 %v2102
        %v2202 = vpop.f32.mrb[0].mxu0
        %v2203 = vadd.f32 %v2074, %v2202
        %v2204 = vpop.f32.mrb[0].mxu0
        %v2205 = vpop.f32.mrb[0].mxu0
        %v2206 = vadd.f32 %v2074, %v2205
        %v2207 = vpop.f32.mrb[0].mxu0
        %2208 = vmatprep.mubr.bf16.mxu0 0
        %2209 = vmatmul.mubr.bf16.gmra.mrb[0].mxu0 %v2105
        %v2210 = vpop.f32.mrb[0].mxu0
        %v2211 = vadd.f32 %v2074, %v2210
        %v2212 = vpop.f32.mrb[0].mxu0
        %v2213 = vpop.f32.mrb[0].mxu0
        %v2214 = vadd.f32 %v2074, %v2213
        %v2215 = vpop.f32.mrb[0].mxu0
        %2216 = vmatprep.mubr.bf16.mxu0 0
        %2217 = vmatmul.mubr.bf16.gmra.mrb[0].mxu0 %v2108
        %v2218 = vpop.f32.mrb[0].mxu0
        %v2219 = vadd.f32 %v2074, %v2218
        %v2220 = vpop.f32.mrb[0].mxu0
        %v2221 = vpop.f32.mrb[0].mxu0
        %v2222 = vadd.f32 %v2074, %v2221
        %v2223 = vpop.f32.mrb[0].mxu0
        %2224 = vmatprep.mubr.bf16.mxu0 0
        %2225 = vmatmul.mubr.bf16.gmra.mrb[0].mxu0 %v2111
        %v2226 = vpop.f32.mrb[0].mxu0
        %v2227 = vadd.f32 %v2074, %v2226
        %v2228 = vpop.f32.mrb[0].mxu0
        %v2229 = vpop.f32.mrb[0].mxu0
        %v2230 = vadd.f32 %v2074, %v2229
        %v2231 = vpop.f32.mrb[0].mxu0
        %2232 = vmatprep.mubr.bf16.mxu0 0
        %2233 = vmatmul.mubr.bf16.gmra.mrb[0].mxu0 %v2114
        %v2234 = vpop.f32.mrb[0].mxu0
        %v2235 = vadd.f32 %v2074, %v2234
        %v2236 = vpop.f32.mrb[0].mxu0
        %v2237 = vpop.f32.mrb[0].mxu0
        %v2238 = vadd.f32 %v2074, %v2237
        %v2239 = vpop.f32.mrb[0].mxu0
        %2240 = vmatprep.mubr.bf16.mxu0 0
        %2241 = vmatmul.mubr.bf16.gmra.mrb[0].mxu0 %v2117
        %v2242 = vpop.f32.mrb[0].mxu0
        %v2243 = vadd.f32 %v2074, %v2242
        %v2244 = vpop.f32.mrb[0].mxu0
        %v2245 = vpop.f32.mrb[0].mxu0
        %v2246 = vadd.f32 %v2074, %v2245
        %v2247 = vpop.f32.mrb[0].mxu0
        %2248 = vmatprep.mubr.bf16.mxu0 0
        %2249 = vmatmul.mubr.bf16.gmra.mrb[0].mxu0 %v2120
        %v2250 = vpop.f32.mrb[0].mxu0
        %v2251 = vadd.f32 %v2074, %v2250
        %v2252 = vpop.f32.mrb[0].mxu0
        %v2253 = vpop.f32.mrb[0].mxu0
        %v2254 = vadd.f32 %v2074, %v2253
        %v2255 = vpop.f32.mrb[0].mxu0
        %2256 = vmatprep.mubr.bf16.mxu0 0
        %2257 = vmatmul.mubr.bf16.gmra.mrb[0].mxu0 %v2123
        %v2258 = vpop.f32.mrb[0].mxu0
        %v2259 = vadd.f32 %v2074, %v2258
        %v2260 = vpop.f32.mrb[0].mxu0
        %v2261 = vpop.f32.mrb[0].mxu0
        %v2262 = vadd.f32 %v2074, %v2261
        %v2263 = vpop.f32.mrb[0].mxu0
        %2264 = vmatprep.mubr.bf16.mxu0 0
        %2265 = vmatmul.mubr.bf16.gmra.mrb[0].mxu0 %v2126
        %v2266 = vpop.f32.mrb[0].mxu0
        %v2267 = vadd.f32 %v2074, %v2266
        %v2268 = vpop.f32.mrb[0].mxu0
        %v2269 = vpop.f32.mrb[0].mxu0
        %v2270 = vadd.f32 %v2074, %v2269
        %v2271 = vpop.f32.mrb[0].mxu0
        %2272 = vmatprep.mubr.bf16.mxu0 0
        %2273 = vmatmul.mubr.bf16.gmra.mrb[0].mxu0 %v2129
        %v2274 = vpop.f32.mrb[0].mxu0
        %v2275 = vadd.f32 %v2074, %v2274
        %v2276 = vpop.f32.mrb[0].mxu0
        %v2277 = vpop.f32.mrb[0].mxu0
        %v2278 = vadd.f32 %v2074, %v2277
        %v2279 = vpop.f32.mrb[0].mxu0
        %2280 = vmatprep.mubr.bf16.mxu0 0
        %2281 = vmatmul.mubr.bf16.gmra.mrb[0].mxu0 %v2132
        %v2282 = vpop.f32.mrb[0].mxu0
        %v2283 = vadd.f32 %v2074, %v2282
        %v2284 = vpop.f32.mrb[0].mxu0
        %v2285 = vpop.f32.mrb[0].mxu0
        %v2286 = vadd.f32 %v2074, %v2285
        %v2287 = vpop.f32.mrb[0].mxu0
        %2288 = vmatprep.mubr.bf16.mxu0 0
        %2289 = vmatmul.mubr.bf16.gmra.mrb[0].mxu0 %v2135
        %v2290 = vpop.f32.mrb[0].mxu0
        %v2291 = vadd.f32 %v2074, %v2290
        %v2292 = vpop.f32.mrb[0].mxu0
        %v2293 = vpop.f32.mrb[0].mxu0
        %v2294 = vadd.f32 %v2074, %v2293
        %v2295 = vpop.f32.mrb[0].mxu0
        %2296 = vmatprep.mubr.bf16.mxu0 0
        %2297 = vmatmul.mubr.bf16.gmra.mrb[0].mxu0 %v2138
        %v2298 = vpop.f32.mrb[0].mxu0
        %v2299 = vadd.f32 %v2074, %v2298
        %v2300 = vpop.f32.mrb[0].mxu0
        %v2301 = vpop.f32.mrb[0].mxu0
        %v2302 = vadd.f32 %v2074, %v2301
        %v2303 = vpop.f32.mrb[0].mxu0
        %2304 = vdwg.mxu0
        %v2305 = vmax.f32 %v2179, 0.0
        %v2306 = vmax.f32 %v2182, 0.0
        %v2307 = vmax.f32 %v2187, 0.0
        %v2308 = vmax.f32 %v2190, 0.0
        %v2309 = vmax.f32 %v2195, 0.0
        %v2310 = vmax.f32 %v2198, 0.0
        %v2311 = vmax.f32 %v2203, 0.0
        %v2312 = vmax.f32 %v2206, 0.0
        %v2313 = vmax.f32 %v2211, 0.0
        %v2314 = vmax.f32 %v2214, 0.0
        %v2315 = vmax.f32 %v2219, 0.0
        %v2316 = vmax.f32 %v2222, 0.0
        %v2317 = vmax.f32 %v2227, 0.0
        %v2318 = vmax.f32 %v2230, 0.0
        %v2319 = vmax.f32 %v2235, 0.0
        %v2320 = vmax.f32 %v2238, 0.0
        %v2321 = vmax.f32 %v2243, 0.0
        %v2322 = vmax.f32 %v2246, 0.0
        %v2323 = vmax.f32 %v2251, 0.0
        %v2324 = vmax.f32 %v2254, 0.0
        %v2325 = vmax.f32 %v2259, 0.0
        %v2326 = vmax.f32 %v2262, 0.0
        %v2327 = vmax.f32 %v2267, 0.0
        %v2328 = vmax.f32 %v2270, 0.0
        %v2329 = vmax.f32 %v2275, 0.0
        %v2330 = vmax.f32 %v2278, 0.0
        %v2331 = vmax.f32 %v2283, 0.0
        %v2332 = vmax.f32 %v2286, 0.0
        %v2333 = vmax.f32 %v2291, 0.0
        %v2334 = vmax.f32 %v2294, 0.0
        %v2335 = vmax.f32 %v2299, 0.0
        %v2336 = vmax.f32 %v2302, 0.0
        %2337 = vst.msk [vmem:[%s374 + $0x1] sm:$0xff] %vm296, %v2305
        %2338 = vst.msk [vmem:[%s374 + $0x9] sm:$0xff] %vm296, %v2306
        %2339 = vst.msk [vmem:[%s374 + $0x19] sm:$0xff] %vm296, %v2307
        %2340 = vst.msk [vmem:[%s374 + $0x21] sm:$0xff] %vm296, %v2308
        %2341 = vst.msk [vmem:[%s374 + $0x31] sm:$0xff] %vm296, %v2309
        %2342 = vst.msk [vmem:[%s374 + $0x39] sm:$0xff] %vm296, %v2310
        %2343 = vst.msk [vmem:[%s374 + $0x49] sm:$0xff] %vm296, %v2311
        %2344 = vst.msk [vmem:[%s374 + $0x51] sm:$0xff] %vm296, %v2312
        %2345 = vst.msk [vmem:[%s374 + $0x61] sm:$0xff] %vm296, %v2313
        %2346 = vst.msk [vmem:[%s374 + $0x69] sm:$0xff] %vm296, %v2314
        %2347 = vst.msk [vmem:[%s374 + $0x79] sm:$0xff] %vm296, %v2315
        %2348 = vst.msk [vmem:[%s374 + $0x81] sm:$0xff] %vm296, %v2316
        %2349 = vst.msk [vmem:[%s374 + $0x91] sm:$0xff] %vm296, %v2317
        %2350 = vst.msk [vmem:[%s374 + $0x99] sm:$0xff] %vm296, %v2318
        %2351 = vst.msk [vmem:[%s374 + $0xa9] sm:$0xff] %vm296, %v2319
        %2352 = vst.msk [vmem:[%s374 + $0xb1] sm:$0xff] %vm296, %v2320
        %2353 = vst.msk [vmem:[%s374 + $0xc1] sm:$0xff] %vm296, %v2321
        %2354 = vst.msk [vmem:[%s374 + $0xc9] sm:$0xff] %vm296, %v2322
        %2355 = vst.msk [vmem:[%s374 + $0xd9] sm:$0xff] %vm296, %v2323
        %2356 = vst.msk [vmem:[%s374 + $0xe1] sm:$0xff] %vm296, %v2324
        %2357 = vst.msk [vmem:[%s374 + $0xf1] sm:$0xff] %vm296, %v2325
        %2358 = vst.msk [vmem:[%s374 + $0xf9] sm:$0xff] %vm296, %v2326
        %2359 = vst.msk [vmem:[%s374 + $0x109] sm:$0xff] %vm296, %v2327
        %2360 = vst.msk [vmem:[%s374 + $0x111] sm:$0xff] %vm296, %v2328
        %2361 = vst.msk [vmem:[%s374 + $0x121] sm:$0xff] %vm296, %v2329
        %2362 = vst.msk [vmem:[%s374 + $0x129] sm:$0xff] %vm296, %v2330
        %2363 = vst.msk [vmem:[%s374 + $0x139] sm:$0xff] %vm296, %v2331
        %2364 = vst.msk [vmem:[%s374 + $0x141] sm:$0xff] %vm296, %v2332
        %2365 = vst.msk [vmem:[%s374 + $0x151] sm:$0xff] %vm296, %v2333
        %2366 = vst.msk [vmem:[%s374 + $0x159] sm:$0xff] %vm296, %v2334
        %2367 = vst.msk [vmem:[%s374 + $0x169] sm:$0xff] %vm296, %v2335
        %2368 = vst.msk [vmem:[%s374 + $0x171] sm:$0xff] %vm296, %v2336
        %v2369 = vld [vmem:[#allocation2] sm:$0xff]
        %v2370 = vld [vmem:[#allocation2 + $0x8] sm:$0xff]
        %v2371 = vld [vmem:[#allocation2 + $0x18] sm:$0xff]
        %v2372 = vld [vmem:[#allocation2 + $0x20] sm:$0xff]
        %v2373 = vld [vmem:[#allocation2 + $0x30] sm:$0xff]
        %v2374 = vld [vmem:[#allocation2 + $0x38] sm:$0xff]
        %v2375 = vld [vmem:[#allocation2 + $0x48] sm:$0xff]
        %v2376 = vld [vmem:[#allocation2 + $0x50] sm:$0xff]
        %v2377 = vld [vmem:[#allocation2 + $0x60] sm:$0xff]
        %v2378 = vld [vmem:[#allocation2 + $0x68] sm:$0xff]
        %v2379 = vld [vmem:[#allocation2 + $0x78] sm:$0xff]
        %v2380 = vld [vmem:[#allocation2 + $0x80] sm:$0xff]
        %v2381 = vld [vmem:[#allocation2 + $0x90] sm:$0xff]
        %v2382 = vld [vmem:[#allocation2 + $0x98] sm:$0xff]
        %v2383 = vld [vmem:[#allocation2 + $0xa8] sm:$0xff]
        %v2384 = vld [vmem:[#allocation2 + $0xb0] sm:$0xff]
        %v2385 = vld [vmem:[#allocation2 + $0xc0] sm:$0xff]
        %v2386 = vld [vmem:[#allocation2 + $0xc8] sm:$0xff]
        %v2387 = vld [vmem:[#allocation2 + $0xd8] sm:$0xff]
        %v2388 = vld [vmem:[#allocation2 + $0xe0] sm:$0xff]
        %v2389 = vld [vmem:[#allocation2 + $0xf0] sm:$0xff]
        %v2390 = vld [vmem:[#allocation2 + $0xf8] sm:$0xff]
        %v2391 = vld [vmem:[#allocation2 + $0x108] sm:$0xff]
        %v2392 = vld [vmem:[#allocation2 + $0x110] sm:$0xff]
        %v2393 = vld [vmem:[#allocation2 + $0x120] sm:$0xff]
        %v2394 = vld [vmem:[#allocation2 + $0x128] sm:$0xff]
        %v2395 = vld [vmem:[#allocation2 + $0x138] sm:$0xff]
        %v2396 = vld [vmem:[#allocation2 + $0x140] sm:$0xff]
        %v2397 = vld [vmem:[#allocation2 + $0x150] sm:$0xff]
        %v2398 = vld [vmem:[#allocation2 + $0x158] sm:$0xff]
        %v2399 = vld [vmem:[#allocation2 + $0x168] sm:$0xff]
        %v2400 = vld [vmem:[#allocation2 + $0x170] sm:$0xff]
        %2401 = vst.msk [vmem:[#allocation3] sm:$0xff] %vm296, %v2369
        %2402 = vst.msk [vmem:[#allocation3 + $0x8] sm:$0xff] %vm296, %v2370
        %2403 = vst.msk [vmem:[#allocation3 + $0x10] sm:$0xff] %vm296, %v2371
        %2404 = vst.msk [vmem:[#allocation3 + $0x18] sm:$0xff] %vm296, %v2372
        %2405 = vst.msk [vmem:[#allocation3 + $0x20] sm:$0xff] %vm296, %v2373
        %2406 = vst.msk [vmem:[#allocation3 + $0x28] sm:$0xff] %vm296, %v2374
        %2407 = vst.msk [vmem:[#allocation3 + $0x30] sm:$0xff] %vm296, %v2375
        %2408 = vst.msk [vmem:[#allocation3 + $0x38] sm:$0xff] %vm296, %v2376
        %2409 = vst.msk [vmem:[#allocation3 + $0x40] sm:$0xff] %vm296, %v2377
        %2410 = vst.msk [vmem:[#allocation3 + $0x48] sm:$0xff] %vm296, %v2378
        %2411 = vst.msk [vmem:[#allocation3 + $0x50] sm:$0xff] %vm296, %v2379
        %2412 = vst.msk [vmem:[#allocation3 + $0x58] sm:$0xff] %vm296, %v2380
        %2413 = vst.msk [vmem:[#allocation3 + $0x60] sm:$0xff] %vm296, %v2381
        %2414 = vst.msk [vmem:[#allocation3 + $0x68] sm:$0xff] %vm296, %v2382
        %2415 = vst.msk [vmem:[#allocation3 + $0x70] sm:$0xff] %vm296, %v2383
        %2416 = vst.msk [vmem:[#allocation3 + $0x78] sm:$0xff] %vm296, %v2384
        %2417 = vst.msk [vmem:[#allocation3 + $0x80] sm:$0xff] %vm296, %v2385
        %2418 = vst.msk [vmem:[#allocation3 + $0x88] sm:$0xff] %vm296, %v2386
        %2419 = vst.msk [vmem:[#allocation3 + $0x90] sm:$0xff] %vm296, %v2387
        %2420 = vst.msk [vmem:[#allocation3 + $0x98] sm:$0xff] %vm296, %v2388
        %2421 = vst.msk [vmem:[#allocation3 + $0xa0] sm:$0xff] %vm296, %v2389
        %2422 = vst.msk [vmem:[#allocation3 + $0xa8] sm:$0xff] %vm296, %v2390
        %2423 = vst.msk [vmem:[#allocation3 + $0xb0] sm:$0xff] %vm296, %v2391
        %2424 = vst.msk [vmem:[#allocation3 + $0xb8] sm:$0xff] %vm296, %v2392
        %2425 = vst.msk [vmem:[#allocation3 + $0xc0] sm:$0xff] %vm296, %v2393
        %2426 = vst.msk [vmem:[#allocation3 + $0xc8] sm:$0xff] %vm296, %v2394
        %2427 = vst.msk [vmem:[#allocation3 + $0xd0] sm:$0xff] %vm296, %v2395
        %2428 = vst.msk [vmem:[#allocation3 + $0xd8] sm:$0xff] %vm296, %v2396
        %2429 = vst.msk [vmem:[#allocation3 + $0xe0] sm:$0xff] %vm296, %v2397
        %2430 = vst.msk [vmem:[#allocation3 + $0xe8] sm:$0xff] %vm296, %v2398
        %2431 = vst.msk [vmem:[#allocation3 + $0xf0] sm:$0xff] %vm296, %v2399
        %2432 = vst.msk [vmem:[#allocation3 + $0xf8] sm:$0xff] %vm296, %v2400
        %v2433 = vld [vmem:[#allocation2 + $0x1] sm:$0xff]
        %v2434 = vld [vmem:[#allocation2 + $0x9] sm:$0xff]
        %v2435 = vld [vmem:[#allocation2 + $0x19] sm:$0xff]
        %v2436 = vld [vmem:[#allocation2 + $0x21] sm:$0xff]
        %v2437 = vld [vmem:[#allocation2 + $0x31] sm:$0xff]
        %v2438 = vld [vmem:[#allocation2 + $0x39] sm:$0xff]
        %v2439 = vld [vmem:[#allocation2 + $0x49] sm:$0xff]
        %v2440 = vld [vmem:[#allocation2 + $0x51] sm:$0xff]
        %v2441 = vld [vmem:[#allocation2 + $0x61] sm:$0xff]
        %v2442 = vld [vmem:[#allocation2 + $0x69] sm:$0xff]
        %v2443 = vld [vmem:[#allocation2 + $0x79] sm:$0xff]
        %v2444 = vld [vmem:[#allocation2 + $0x81] sm:$0xff]
        %v2445 = vld [vmem:[#allocation2 + $0x91] sm:$0xff]
        %v2446 = vld [vmem:[#allocation2 + $0x99] sm:$0xff]
        %v2447 = vld [vmem:[#allocation2 + $0xa9] sm:$0xff]
        %v2448 = vld [vmem:[#allocation2 + $0xb1] sm:$0xff]
        %v2449 = vld [vmem:[#allocation2 + $0xc1] sm:$0xff]
        %v2450 = vld [vmem:[#allocation2 + $0xc9] sm:$0xff]
        %v2451 = vld [vmem:[#allocation2 + $0xd9] sm:$0xff]
        %v2452 = vld [vmem:[#allocation2 + $0xe1] sm:$0xff]
        %v2453 = vld [vmem:[#allocation2 + $0xf1] sm:$0xff]
        %v2454 = vld [vmem:[#allocation2 + $0xf9] sm:$0xff]
        %v2455 = vld [vmem:[#allocation2 + $0x109] sm:$0xff]
        %v2456 = vld [vmem:[#allocation2 + $0x111] sm:$0xff]
        %v2457 = vld [vmem:[#allocation2 + $0x121] sm:$0xff]
        %v2458 = vld [vmem:[#allocation2 + $0x129] sm:$0xff]
        %v2459 = vld [vmem:[#allocation2 + $0x139] sm:$0xff]
        %v2460 = vld [vmem:[#allocation2 + $0x141] sm:$0xff]
        %v2461 = vld [vmem:[#allocation2 + $0x151] sm:$0xff]
        %v2462 = vld [vmem:[#allocation2 + $0x159] sm:$0xff]
        %v2463 = vld [vmem:[#allocation2 + $0x169] sm:$0xff]
        %v2464 = vld [vmem:[#allocation2 + $0x171] sm:$0xff]
        %2497 = vrot.lane.b32.xlu0 %v2433, 4
        %v2498 = vpop.permute.xlu0 %2497
        %2499 = vrot.lane.b32.xlu0 %v2434, 4
        %v2500 = vpop.permute.xlu0 %2499
        %2501 = vrot.lane.b32.xlu0 %v2435, 4
        %v2502 = vpop.permute.xlu0 %2501
        %2503 = vrot.lane.b32.xlu0 %v2436, 4
        %v2504 = vpop.permute.xlu0 %2503
        %2505 = vrot.lane.b32.xlu0 %v2437, 4
        %v2506 = vpop.permute.xlu0 %2505
        %2507 = vrot.lane.b32.xlu0 %v2438, 4
        %v2508 = vpop.permute.xlu0 %2507
        %2509 = vrot.lane.b32.xlu0 %v2439, 4
        %v2510 = vpop.permute.xlu0 %2509
        %2511 = vrot.lane.b32.xlu0 %v2440, 4
        %v2512 = vpop.permute.xlu0 %2511
        %2513 = vrot.lane.b32.xlu0 %v2441, 4
        %v2514 = vpop.permute.xlu0 %2513
        %2515 = vrot.lane.b32.xlu0 %v2442, 4
        %v2516 = vpop.permute.xlu0 %2515
        %2517 = vrot.lane.b32.xlu0 %v2443, 4
        %v2518 = vpop.permute.xlu0 %2517
        %2519 = vrot.lane.b32.xlu0 %v2444, 4
        %v2520 = vpop.permute.xlu0 %2519
        %2521 = vrot.lane.b32.xlu0 %v2445, 4
        %v2522 = vpop.permute.xlu0 %2521
        %2523 = vrot.lane.b32.xlu0 %v2446, 4
        %v2524 = vpop.permute.xlu0 %2523
        %2525 = vrot.lane.b32.xlu0 %v2447, 4
        %v2526 = vpop.permute.xlu0 %2525
        %2527 = vrot.lane.b32.xlu0 %v2448, 4
        %v2528 = vpop.permute.xlu0 %2527
        %2529 = vrot.lane.b32.xlu0 %v2449, 4
        %v2530 = vpop.permute.xlu0 %2529
        %2531 = vrot.lane.b32.xlu0 %v2450, 4
        %v2532 = vpop.permute.xlu0 %2531
        %2533 = vrot.lane.b32.xlu0 %v2451, 4
        %v2534 = vpop.permute.xlu0 %2533
        %2535 = vrot.lane.b32.xlu0 %v2452, 4
        %v2536 = vpop.permute.xlu0 %2535
        %2537 = vrot.lane.b32.xlu0 %v2453, 4
        %v2538 = vpop.permute.xlu0 %2537
        %2539 = vrot.lane.b32.xlu0 %v2454, 4
        %v2540 = vpop.permute.xlu0 %2539
        %2541 = vrot.lane.b32.xlu0 %v2455, 4
        %v2542 = vpop.permute.xlu0 %2541
        %2543 = vrot.lane.b32.xlu0 %v2456, 4
        %v2544 = vpop.permute.xlu0 %2543
        %2545 = vrot.lane.b32.xlu0 %v2457, 4
        %v2546 = vpop.permute.xlu0 %2545
        %2547 = vrot.lane.b32.xlu0 %v2458, 4
        %v2548 = vpop.permute.xlu0 %2547
        %2549 = vrot.lane.b32.xlu0 %v2459, 4
        %v2550 = vpop.permute.xlu0 %2549
        %2551 = vrot.lane.b32.xlu0 %v2460, 4
        %v2552 = vpop.permute.xlu0 %2551
        %2553 = vrot.lane.b32.xlu0 %v2461, 4
        %v2554 = vpop.permute.xlu0 %2553
        %2555 = vrot.lane.b32.xlu0 %v2462, 4
        %v2556 = vpop.permute.xlu0 %2555
        %2557 = vrot.lane.b32.xlu0 %v2463, 4
        %v2558 = vpop.permute.xlu0 %2557
        %2559 = vrot.lane.b32.xlu0 %v2464, 4
        %v2560 = vpop.permute.xlu0 %2559
        %2593 = vst.msk [vmem:[#allocation3] sm:$0xff] %vm631, %v2498
        %2594 = vst.msk [vmem:[#allocation3 + $0x8] sm:$0xff] %vm631, %v2500
        %2595 = vst.msk [vmem:[#allocation3 + $0x10] sm:$0xff] %vm631, %v2502
        %2596 = vst.msk [vmem:[#allocation3 + $0x18] sm:$0xff] %vm631, %v2504
        %2597 = vst.msk [vmem:[#allocation3 + $0x20] sm:$0xff] %vm631, %v2506
        %2598 = vst.msk [vmem:[#allocation3 + $0x28] sm:$0xff] %vm631, %v2508
        %2599 = vst.msk [vmem:[#allocation3 + $0x30] sm:$0xff] %vm631, %v2510
        %2600 = vst.msk [vmem:[#allocation3 + $0x38] sm:$0xff] %vm631, %v2512
        %2601 = vst.msk [vmem:[#allocation3 + $0x40] sm:$0xff] %vm631, %v2514
        %2602 = vst.msk [vmem:[#allocation3 + $0x48] sm:$0xff] %vm631, %v2516
        %2603 = vst.msk [vmem:[#allocation3 + $0x50] sm:$0xff] %vm631, %v2518
        %2604 = vst.msk [vmem:[#allocation3 + $0x58] sm:$0xff] %vm631, %v2520
        %2605 = vst.msk [vmem:[#allocation3 + $0x60] sm:$0xff] %vm631, %v2522
        %2606 = vst.msk [vmem:[#allocation3 + $0x68] sm:$0xff] %vm631, %v2524
        %2607 = vst.msk [vmem:[#allocation3 + $0x70] sm:$0xff] %vm631, %v2526
        %2608 = vst.msk [vmem:[#allocation3 + $0x78] sm:$0xff] %vm631, %v2528
        %2609 = vst.msk [vmem:[#allocation3 + $0x80] sm:$0xff] %vm631, %v2530
        %2610 = vst.msk [vmem:[#allocation3 + $0x88] sm:$0xff] %vm631, %v2532
        %2611 = vst.msk [vmem:[#allocation3 + $0x90] sm:$0xff] %vm631, %v2534
        %2612 = vst.msk [vmem:[#allocation3 + $0x98] sm:$0xff] %vm631, %v2536
        %2613 = vst.msk [vmem:[#allocation3 + $0xa0] sm:$0xff] %vm631, %v2538
        %2614 = vst.msk [vmem:[#allocation3 + $0xa8] sm:$0xff] %vm631, %v2540
        %2615 = vst.msk [vmem:[#allocation3 + $0xb0] sm:$0xff] %vm631, %v2542
        %2616 = vst.msk [vmem:[#allocation3 + $0xb8] sm:$0xff] %vm631, %v2544
        %2617 = vst.msk [vmem:[#allocation3 + $0xc0] sm:$0xff] %vm631, %v2546
        %2618 = vst.msk [vmem:[#allocation3 + $0xc8] sm:$0xff] %vm631, %v2548
        %2619 = vst.msk [vmem:[#allocation3 + $0xd0] sm:$0xff] %vm631, %v2550
        %2620 = vst.msk [vmem:[#allocation3 + $0xd8] sm:$0xff] %vm631, %v2552
        %2621 = vst.msk [vmem:[#allocation3 + $0xe0] sm:$0xff] %vm631, %v2554
        %2622 = vst.msk [vmem:[#allocation3 + $0xe8] sm:$0xff] %vm631, %v2556
        %2623 = vst.msk [vmem:[#allocation3 + $0xf0] sm:$0xff] %vm631, %v2558
        %2624 = vst.msk [vmem:[#allocation3 + $0xf8] sm:$0xff] %vm631, %v2560
        %v2625 = vld [vmem:[#allocation2 + $0x2] sm:$0xff]
        %v2626 = vld [vmem:[#allocation2 + $0xa] sm:$0xff]
        %v2627 = vld [vmem:[#allocation2 + $0x1a] sm:$0xff]
        %v2628 = vld [vmem:[#allocation2 + $0x22] sm:$0xff]
        %v2629 = vld [vmem:[#allocation2 + $0x32] sm:$0xff]
        %v2630 = vld [vmem:[#allocation2 + $0x3a] sm:$0xff]
        %v2631 = vld [vmem:[#allocation2 + $0x4a] sm:$0xff]
        %v2632 = vld [vmem:[#allocation2 + $0x52] sm:$0xff]
        %v2633 = vld [vmem:[#allocation2 + $0x62] sm:$0xff]
        %v2634 = vld [vmem:[#allocation2 + $0x6a] sm:$0xff]
        %v2635 = vld [vmem:[#allocation2 + $0x7a] sm:$0xff]
        %v2636 = vld [vmem:[#allocation2 + $0x82] sm:$0xff]
        %v2637 = vld [vmem:[#allocation2 + $0x92] sm:$0xff]
        %v2638 = vld [vmem:[#allocation2 + $0x9a] sm:$0xff]
        %v2639 = vld [vmem:[#allocation2 + $0xaa] sm:$0xff]
        %v2640 = vld [vmem:[#allocation2 + $0xb2] sm:$0xff]
        %v2641 = vld [vmem:[#allocation2 + $0xc2] sm:$0xff]
        %v2642 = vld [vmem:[#allocation2 + $0xca] sm:$0xff]
        %v2643 = vld [vmem:[#allocation2 + $0xda] sm:$0xff]
        %v2644 = vld [vmem:[#allocation2 + $0xe2] sm:$0xff]
        %v2645 = vld [vmem:[#allocation2 + $0xf2] sm:$0xff]
        %v2646 = vld [vmem:[#allocation2 + $0xfa] sm:$0xff]
        %v2647 = vld [vmem:[#allocation2 + $0x10a] sm:$0xff]
        %v2648 = vld [vmem:[#allocation2 + $0x112] sm:$0xff]
        %v2649 = vld [vmem:[#allocation2 + $0x122] sm:$0xff]
        %v2650 = vld [vmem:[#allocation2 + $0x12a] sm:$0xff]
        %v2651 = vld [vmem:[#allocation2 + $0x13a] sm:$0xff]
        %v2652 = vld [vmem:[#allocation2 + $0x142] sm:$0xff]
        %v2653 = vld [vmem:[#allocation2 + $0x152] sm:$0xff]
        %v2654 = vld [vmem:[#allocation2 + $0x15a] sm:$0xff]
        %v2655 = vld [vmem:[#allocation2 + $0x16a] sm:$0xff]
        %v2656 = vld [vmem:[#allocation2 + $0x172] sm:$0xff]
        %2689 = vrot.lane.b32.xlu0 %v2625, 8
        %v2690 = vpop.permute.xlu0 %2689
        %2691 = vrot.lane.b32.xlu0 %v2626, 8
        %v2692 = vpop.permute.xlu0 %2691
        %2693 = vrot.lane.b32.xlu0 %v2627, 8
        %v2694 = vpop.permute.xlu0 %2693
        %2695 = vrot.lane.b32.xlu0 %v2628, 8
        %v2696 = vpop.permute.xlu0 %2695
        %2697 = vrot.lane.b32.xlu0 %v2629, 8
        %v2698 = vpop.permute.xlu0 %2697
        %2699 = vrot.lane.b32.xlu0 %v2630, 8
        %v2700 = vpop.permute.xlu0 %2699
        %2701 = vrot.lane.b32.xlu0 %v2631, 8
        %v2702 = vpop.permute.xlu0 %2701
        %2703 = vrot.lane.b32.xlu0 %v2632, 8
        %v2704 = vpop.permute.xlu0 %2703
        %2705 = vrot.lane.b32.xlu0 %v2633, 8
        %v2706 = vpop.permute.xlu0 %2705
        %2707 = vrot.lane.b32.xlu0 %v2634, 8
        %v2708 = vpop.permute.xlu0 %2707
        %2709 = vrot.lane.b32.xlu0 %v2635, 8
        %v2710 = vpop.permute.xlu0 %2709
        %2711 = vrot.lane.b32.xlu0 %v2636, 8
        %v2712 = vpop.permute.xlu0 %2711
        %2713 = vrot.lane.b32.xlu0 %v2637, 8
        %v2714 = vpop.permute.xlu0 %2713
        %2715 = vrot.lane.b32.xlu0 %v2638, 8
        %v2716 = vpop.permute.xlu0 %2715
        %2717 = vrot.lane.b32.xlu0 %v2639, 8
        %v2718 = vpop.permute.xlu0 %2717
        %2719 = vrot.lane.b32.xlu0 %v2640, 8
        %v2720 = vpop.permute.xlu0 %2719
        %2721 = vrot.lane.b32.xlu0 %v2641, 8
        %v2722 = vpop.permute.xlu0 %2721
        %2723 = vrot.lane.b32.xlu0 %v2642, 8
        %v2724 = vpop.permute.xlu0 %2723
        %2725 = vrot.lane.b32.xlu0 %v2643, 8
        %v2726 = vpop.permute.xlu0 %2725
        %2727 = vrot.lane.b32.xlu0 %v2644, 8
        %v2728 = vpop.permute.xlu0 %2727
        %2729 = vrot.lane.b32.xlu0 %v2645, 8
        %v2730 = vpop.permute.xlu0 %2729
        %2731 = vrot.lane.b32.xlu0 %v2646, 8
        %v2732 = vpop.permute.xlu0 %2731
        %2733 = vrot.lane.b32.xlu0 %v2647, 8
        %v2734 = vpop.permute.xlu0 %2733
        %2735 = vrot.lane.b32.xlu0 %v2648, 8
        %v2736 = vpop.permute.xlu0 %2735
        %2737 = vrot.lane.b32.xlu0 %v2649, 8
        %v2738 = vpop.permute.xlu0 %2737
        %2739 = vrot.lane.b32.xlu0 %v2650, 8
        %v2740 = vpop.permute.xlu0 %2739
        %2741 = vrot.lane.b32.xlu0 %v2651, 8
        %v2742 = vpop.permute.xlu0 %2741
        %2743 = vrot.lane.b32.xlu0 %v2652, 8
        %v2744 = vpop.permute.xlu0 %2743
        %2745 = vrot.lane.b32.xlu0 %v2653, 8
        %v2746 = vpop.permute.xlu0 %2745
        %2747 = vrot.lane.b32.xlu0 %v2654, 8
        %v2748 = vpop.permute.xlu0 %2747
        %2749 = vrot.lane.b32.xlu0 %v2655, 8
        %v2750 = vpop.permute.xlu0 %2749
        %2751 = vrot.lane.b32.xlu0 %v2656, 8
        %v2752 = vpop.permute.xlu0 %2751
        %2785 = vst.msk [vmem:[#allocation3] sm:$0xff] %vm824, %v2690
        %2786 = vst.msk [vmem:[#allocation3 + $0x8] sm:$0xff] %vm824, %v2692
        %2787 = vst.msk [vmem:[#allocation3 + $0x10] sm:$0xff] %vm824, %v2694
        %2788 = vst.msk [vmem:[#allocation3 + $0x18] sm:$0xff] %vm824, %v2696
        %2789 = vst.msk [vmem:[#allocation3 + $0x20] sm:$0xff] %vm824, %v2698
        %2790 = vst.msk [vmem:[#allocation3 + $0x28] sm:$0xff] %vm824, %v2700
        %2791 = vst.msk [vmem:[#allocation3 + $0x30] sm:$0xff] %vm824, %v2702
        %2792 = vst.msk [vmem:[#allocation3 + $0x38] sm:$0xff] %vm824, %v2704
        %2793 = vst.msk [vmem:[#allocation3 + $0x40] sm:$0xff] %vm824, %v2706
        %2794 = vst.msk [vmem:[#allocation3 + $0x48] sm:$0xff] %vm824, %v2708
        %2795 = vst.msk [vmem:[#allocation3 + $0x50] sm:$0xff] %vm824, %v2710
        %2796 = vst.msk [vmem:[#allocation3 + $0x58] sm:$0xff] %vm824, %v2712
        %2797 = vst.msk [vmem:[#allocation3 + $0x60] sm:$0xff] %vm824, %v2714
        %2798 = vst.msk [vmem:[#allocation3 + $0x68] sm:$0xff] %vm824, %v2716
        %2799 = vst.msk [vmem:[#allocation3 + $0x70] sm:$0xff] %vm824, %v2718
        %2800 = vst.msk [vmem:[#allocation3 + $0x78] sm:$0xff] %vm824, %v2720
        %2801 = vst.msk [vmem:[#allocation3 + $0x80] sm:$0xff] %vm824, %v2722
        %2802 = vst.msk [vmem:[#allocation3 + $0x88] sm:$0xff] %vm824, %v2724
        %2803 = vst.msk [vmem:[#allocation3 + $0x90] sm:$0xff] %vm824, %v2726
        %2804 = vst.msk [vmem:[#allocation3 + $0x98] sm:$0xff] %vm824, %v2728
        %2805 = vst.msk [vmem:[#allocation3 + $0xa0] sm:$0xff] %vm824, %v2730
        %2806 = vst.msk [vmem:[#allocation3 + $0xa8] sm:$0xff] %vm824, %v2732
        %2807 = vst.msk [vmem:[#allocation3 + $0xb0] sm:$0xff] %vm824, %v2734
        %2808 = vst.msk [vmem:[#allocation3 + $0xb8] sm:$0xff] %vm824, %v2736
        %2809 = vst.msk [vmem:[#allocation3 + $0xc0] sm:$0xff] %vm824, %v2738
        %2810 = vst.msk [vmem:[#allocation3 + $0xc8] sm:$0xff] %vm824, %v2740
        %2811 = vst.msk [vmem:[#allocation3 + $0xd0] sm:$0xff] %vm824, %v2742
        %2812 = vst.msk [vmem:[#allocation3 + $0xd8] sm:$0xff] %vm824, %v2744
        %2813 = vst.msk [vmem:[#allocation3 + $0xe0] sm:$0xff] %vm824, %v2746
        %2814 = vst.msk [vmem:[#allocation3 + $0xe8] sm:$0xff] %vm824, %v2748
        %2815 = vst.msk [vmem:[#allocation3 + $0xf0] sm:$0xff] %vm824, %v2750
        %2816 = vst.msk [vmem:[#allocation3 + $0xf8] sm:$0xff] %vm824, %v2752
        %v2817 = vld [vmem:[%s374] sm:$0xff]
        %v2818 = vld [vmem:[%s374 + $0x8] sm:$0xff]
        %v2819 = vld [vmem:[%s374 + $0x18] sm:$0xff]
        %v2820 = vld [vmem:[%s374 + $0x20] sm:$0xff]
        %v2821 = vld [vmem:[%s374 + $0x30] sm:$0xff]
        %v2822 = vld [vmem:[%s374 + $0x38] sm:$0xff]
        %v2823 = vld [vmem:[%s374 + $0x48] sm:$0xff]
        %v2824 = vld [vmem:[%s374 + $0x50] sm:$0xff]
        %v2825 = vld [vmem:[%s374 + $0x60] sm:$0xff]
        %v2826 = vld [vmem:[%s374 + $0x68] sm:$0xff]
        %v2827 = vld [vmem:[%s374 + $0x78] sm:$0xff]
        %v2828 = vld [vmem:[%s374 + $0x80] sm:$0xff]
        %v2829 = vld [vmem:[%s374 + $0x90] sm:$0xff]
        %v2830 = vld [vmem:[%s374 + $0x98] sm:$0xff]
        %v2831 = vld [vmem:[%s374 + $0xa8] sm:$0xff]
        %v2832 = vld [vmem:[%s374 + $0xb0] sm:$0xff]
        %v2833 = vld [vmem:[%s374 + $0xc0] sm:$0xff]
        %v2834 = vld [vmem:[%s374 + $0xc8] sm:$0xff]
        %v2835 = vld [vmem:[%s374 + $0xd8] sm:$0xff]
        %v2836 = vld [vmem:[%s374 + $0xe0] sm:$0xff]
        %v2837 = vld [vmem:[%s374 + $0xf0] sm:$0xff]
        %v2838 = vld [vmem:[%s374 + $0xf8] sm:$0xff]
        %v2839 = vld [vmem:[%s374 + $0x108] sm:$0xff]
        %v2840 = vld [vmem:[%s374 + $0x110] sm:$0xff]
        %v2841 = vld [vmem:[%s374 + $0x120] sm:$0xff]
        %v2842 = vld [vmem:[%s374 + $0x128] sm:$0xff]
        %v2843 = vld [vmem:[%s374 + $0x138] sm:$0xff]
        %v2844 = vld [vmem:[%s374 + $0x140] sm:$0xff]
        %v2845 = vld [vmem:[%s374 + $0x150] sm:$0xff]
        %v2846 = vld [vmem:[%s374 + $0x158] sm:$0xff]
        %v2847 = vld [vmem:[%s374 + $0x168] sm:$0xff]
        %v2848 = vld [vmem:[%s374 + $0x170] sm:$0xff]
        %2881 = vrot.lane.b32.xlu0 %v2817, 12
        %v2882 = vpop.permute.xlu0 %2881
        %2883 = vrot.lane.b32.xlu0 %v2818, 12
        %v2884 = vpop.permute.xlu0 %2883
        %2885 = vrot.lane.b32.xlu0 %v2819, 12
        %v2886 = vpop.permute.xlu0 %2885
        %2887 = vrot.lane.b32.xlu0 %v2820, 12
        %v2888 = vpop.permute.xlu0 %2887
        %2889 = vrot.lane.b32.xlu0 %v2821, 12
        %v2890 = vpop.permute.xlu0 %2889
        %2891 = vrot.lane.b32.xlu0 %v2822, 12
        %v2892 = vpop.permute.xlu0 %2891
        %2893 = vrot.lane.b32.xlu0 %v2823, 12
        %v2894 = vpop.permute.xlu0 %2893
        %2895 = vrot.lane.b32.xlu0 %v2824, 12
        %v2896 = vpop.permute.xlu0 %2895
        %2897 = vrot.lane.b32.xlu0 %v2825, 12
        %v2898 = vpop.permute.xlu0 %2897
        %2899 = vrot.lane.b32.xlu0 %v2826, 12
        %v2900 = vpop.permute.xlu0 %2899
        %2901 = vrot.lane.b32.xlu0 %v2827, 12
        %v2902 = vpop.permute.xlu0 %2901
        %2903 = vrot.lane.b32.xlu0 %v2828, 12
        %v2904 = vpop.permute.xlu0 %2903
        %2905 = vrot.lane.b32.xlu0 %v2829, 12
        %v2906 = vpop.permute.xlu0 %2905
        %2907 = vrot.lane.b32.xlu0 %v2830, 12
        %v2908 = vpop.permute.xlu0 %2907
        %2909 = vrot.lane.b32.xlu0 %v2831, 12
        %v2910 = vpop.permute.xlu0 %2909
        %2911 = vrot.lane.b32.xlu0 %v2832, 12
        %v2912 = vpop.permute.xlu0 %2911
        %2913 = vrot.lane.b32.xlu0 %v2833, 12
        %v2914 = vpop.permute.xlu0 %2913
        %2915 = vrot.lane.b32.xlu0 %v2834, 12
        %v2916 = vpop.permute.xlu0 %2915
        %2917 = vrot.lane.b32.xlu0 %v2835, 12
        %v2918 = vpop.permute.xlu0 %2917
        %2919 = vrot.lane.b32.xlu0 %v2836, 12
        %v2920 = vpop.permute.xlu0 %2919
        %2921 = vrot.lane.b32.xlu0 %v2837, 12
        %v2922 = vpop.permute.xlu0 %2921
        %2923 = vrot.lane.b32.xlu0 %v2838, 12
        %v2924 = vpop.permute.xlu0 %2923
        %2925 = vrot.lane.b32.xlu0 %v2839, 12
        %v2926 = vpop.permute.xlu0 %2925
        %2927 = vrot.lane.b32.xlu0 %v2840, 12
        %v2928 = vpop.permute.xlu0 %2927
        %2929 = vrot.lane.b32.xlu0 %v2841, 12
        %v2930 = vpop.permute.xlu0 %2929
        %2931 = vrot.lane.b32.xlu0 %v2842, 12
        %v2932 = vpop.permute.xlu0 %2931
        %2933 = vrot.lane.b32.xlu0 %v2843, 12
        %v2934 = vpop.permute.xlu0 %2933
        %2935 = vrot.lane.b32.xlu0 %v2844, 12
        %v2936 = vpop.permute.xlu0 %2935
        %2937 = vrot.lane.b32.xlu0 %v2845, 12
        %v2938 = vpop.permute.xlu0 %2937
        %2939 = vrot.lane.b32.xlu0 %v2846, 12
        %v2940 = vpop.permute.xlu0 %2939
        %2941 = vrot.lane.b32.xlu0 %v2847, 12
        %v2942 = vpop.permute.xlu0 %2941
        %2943 = vrot.lane.b32.xlu0 %v2848, 12
        %v2944 = vpop.permute.xlu0 %2943
        %2977 = vst.msk [vmem:[#allocation3] sm:$0xff] %vm1017, %v2882
        %2978 = vst.msk [vmem:[#allocation3 + $0x8] sm:$0xff] %vm1017, %v2884
        %2979 = vst.msk [vmem:[#allocation3 + $0x10] sm:$0xff] %vm1017, %v2886
        %2980 = vst.msk [vmem:[#allocation3 + $0x18] sm:$0xff] %vm1017, %v2888
        %2981 = vst.msk [vmem:[#allocation3 + $0x20] sm:$0xff] %vm1017, %v2890
        %2982 = vst.msk [vmem:[#allocation3 + $0x28] sm:$0xff] %vm1017, %v2892
        %2983 = vst.msk [vmem:[#allocation3 + $0x30] sm:$0xff] %vm1017, %v2894
        %2984 = vst.msk [vmem:[#allocation3 + $0x38] sm:$0xff] %vm1017, %v2896
        %2985 = vst.msk [vmem:[#allocation3 + $0x40] sm:$0xff] %vm1017, %v2898
        %2986 = vst.msk [vmem:[#allocation3 + $0x48] sm:$0xff] %vm1017, %v2900
        %2987 = vst.msk [vmem:[#allocation3 + $0x50] sm:$0xff] %vm1017, %v2902
        %2988 = vst.msk [vmem:[#allocation3 + $0x58] sm:$0xff] %vm1017, %v2904
        %2989 = vst.msk [vmem:[#allocation3 + $0x60] sm:$0xff] %vm1017, %v2906
        %2990 = vst.msk [vmem:[#allocation3 + $0x68] sm:$0xff] %vm1017, %v2908
        %2991 = vst.msk [vmem:[#allocation3 + $0x70] sm:$0xff] %vm1017, %v2910
        %2992 = vst.msk [vmem:[#allocation3 + $0x78] sm:$0xff] %vm1017, %v2912
        %2993 = vst.msk [vmem:[#allocation3 + $0x80] sm:$0xff] %vm1017, %v2914
        %2994 = vst.msk [vmem:[#allocation3 + $0x88] sm:$0xff] %vm1017, %v2916
        %2995 = vst.msk [vmem:[#allocation3 + $0x90] sm:$0xff] %vm1017, %v2918
        %2996 = vst.msk [vmem:[#allocation3 + $0x98] sm:$0xff] %vm1017, %v2920
        %2997 = vst.msk [vmem:[#allocation3 + $0xa0] sm:$0xff] %vm1017, %v2922
        %2998 = vst.msk [vmem:[#allocation3 + $0xa8] sm:$0xff] %vm1017, %v2924
        %2999 = vst.msk [vmem:[#allocation3 + $0xb0] sm:$0xff] %vm1017, %v2926
        %3000 = vst.msk [vmem:[#allocation3 + $0xb8] sm:$0xff] %vm1017, %v2928
        %3001 = vst.msk [vmem:[#allocation3 + $0xc0] sm:$0xff] %vm1017, %v2930
        %3002 = vst.msk [vmem:[#allocation3 + $0xc8] sm:$0xff] %vm1017, %v2932
        %3003 = vst.msk [vmem:[#allocation3 + $0xd0] sm:$0xff] %vm1017, %v2934
        %3004 = vst.msk [vmem:[#allocation3 + $0xd8] sm:$0xff] %vm1017, %v2936
        %3005 = vst.msk [vmem:[#allocation3 + $0xe0] sm:$0xff] %vm1017, %v2938
        %3006 = vst.msk [vmem:[#allocation3 + $0xe8] sm:$0xff] %vm1017, %v2940
        %3007 = vst.msk [vmem:[#allocation3 + $0xf0] sm:$0xff] %vm1017, %v2942
        %3008 = vst.msk [vmem:[#allocation3 + $0xf8] sm:$0xff] %vm1017, %v2944
        %v3009 = vld [vmem:[%s374 + $0x1] sm:$0xff]
        %v3010 = vld [vmem:[%s374 + $0x9] sm:$0xff]
        %v3011 = vld [vmem:[%s374 + $0x19] sm:$0xff]
        %v3012 = vld [vmem:[%s374 + $0x21] sm:$0xff]
        %v3013 = vld [vmem:[%s374 + $0x31] sm:$0xff]
        %v3014 = vld [vmem:[%s374 + $0x39] sm:$0xff]
        %v3015 = vld [vmem:[%s374 + $0x49] sm:$0xff]
        %v3016 = vld [vmem:[%s374 + $0x51] sm:$0xff]
        %v3017 = vld [vmem:[%s374 + $0x61] sm:$0xff]
        %v3018 = vld [vmem:[%s374 + $0x69] sm:$0xff]
        %v3019 = vld [vmem:[%s374 + $0x79] sm:$0xff]
        %v3020 = vld [vmem:[%s374 + $0x81] sm:$0xff]
        %v3021 = vld [vmem:[%s374 + $0x91] sm:$0xff]
        %v3022 = vld [vmem:[%s374 + $0x99] sm:$0xff]
        %v3023 = vld [vmem:[%s374 + $0xa9] sm:$0xff]
        %v3024 = vld [vmem:[%s374 + $0xb1] sm:$0xff]
        %v3025 = vld [vmem:[%s374 + $0xc1] sm:$0xff]
        %v3026 = vld [vmem:[%s374 + $0xc9] sm:$0xff]
        %v3027 = vld [vmem:[%s374 + $0xd9] sm:$0xff]
        %v3028 = vld [vmem:[%s374 + $0xe1] sm:$0xff]
        %v3029 = vld [vmem:[%s374 + $0xf1] sm:$0xff]
        %v3030 = vld [vmem:[%s374 + $0xf9] sm:$0xff]
        %v3031 = vld [vmem:[%s374 + $0x109] sm:$0xff]
        %v3032 = vld [vmem:[%s374 + $0x111] sm:$0xff]
        %v3033 = vld [vmem:[%s374 + $0x121] sm:$0xff]
        %v3034 = vld [vmem:[%s374 + $0x129] sm:$0xff]
        %v3035 = vld [vmem:[%s374 + $0x139] sm:$0xff]
        %v3036 = vld [vmem:[%s374 + $0x141] sm:$0xff]
        %v3037 = vld [vmem:[%s374 + $0x151] sm:$0xff]
        %v3038 = vld [vmem:[%s374 + $0x159] sm:$0xff]
        %v3039 = vld [vmem:[%s374 + $0x169] sm:$0xff]
        %v3040 = vld [vmem:[%s374 + $0x171] sm:$0xff]
        %3073 = vrot.lane.b32.xlu0 %v3009, 16
        %v3074 = vpop.permute.xlu0 %3073
        %3075 = vrot.lane.b32.xlu0 %v3010, 16
        %v3076 = vpop.permute.xlu0 %3075
        %3077 = vrot.lane.b32.xlu0 %v3011, 16
        %v3078 = vpop.permute.xlu0 %3077
        %3079 = vrot.lane.b32.xlu0 %v3012, 16
        %v3080 = vpop.permute.xlu0 %3079
        %3081 = vrot.lane.b32.xlu0 %v3013, 16
        %v3082 = vpop.permute.xlu0 %3081
        %3083 = vrot.lane.b32.xlu0 %v3014, 16
        %v3084 = vpop.permute.xlu0 %3083
        %3085 = vrot.lane.b32.xlu0 %v3015, 16
        %v3086 = vpop.permute.xlu0 %3085
        %3087 = vrot.lane.b32.xlu0 %v3016, 16
        %v3088 = vpop.permute.xlu0 %3087
        %3089 = vrot.lane.b32.xlu0 %v3017, 16
        %v3090 = vpop.permute.xlu0 %3089
        %3091 = vrot.lane.b32.xlu0 %v3018, 16
        %v3092 = vpop.permute.xlu0 %3091
        %3093 = vrot.lane.b32.xlu0 %v3019, 16
        %v3094 = vpop.permute.xlu0 %3093
        %3095 = vrot.lane.b32.xlu0 %v3020, 16
        %v3096 = vpop.permute.xlu0 %3095
        %3097 = vrot.lane.b32.xlu0 %v3021, 16
        %v3098 = vpop.permute.xlu0 %3097
        %3099 = vrot.lane.b32.xlu0 %v3022, 16
        %v3100 = vpop.permute.xlu0 %3099
        %3101 = vrot.lane.b32.xlu0 %v3023, 16
        %v3102 = vpop.permute.xlu0 %3101
        %3103 = vrot.lane.b32.xlu0 %v3024, 16
        %v3104 = vpop.permute.xlu0 %3103
        %3105 = vrot.lane.b32.xlu0 %v3025, 16
        %v3106 = vpop.permute.xlu0 %3105
        %3107 = vrot.lane.b32.xlu0 %v3026, 16
        %v3108 = vpop.permute.xlu0 %3107
        %3109 = vrot.lane.b32.xlu0 %v3027, 16
        %v3110 = vpop.permute.xlu0 %3109
        %3111 = vrot.lane.b32.xlu0 %v3028, 16
        %v3112 = vpop.permute.xlu0 %3111
        %3113 = vrot.lane.b32.xlu0 %v3029, 16
        %v3114 = vpop.permute.xlu0 %3113
        %3115 = vrot.lane.b32.xlu0 %v3030, 16
        %v3116 = vpop.permute.xlu0 %3115
        %3117 = vrot.lane.b32.xlu0 %v3031, 16
        %v3118 = vpop.permute.xlu0 %3117
        %3119 = vrot.lane.b32.xlu0 %v3032, 16
        %v3120 = vpop.permute.xlu0 %3119
        %3121 = vrot.lane.b32.xlu0 %v3033, 16
        %v3122 = vpop.permute.xlu0 %3121
        %3123 = vrot.lane.b32.xlu0 %v3034, 16
        %v3124 = vpop.permute.xlu0 %3123
        %3125 = vrot.lane.b32.xlu0 %v3035, 16
        %v3126 = vpop.permute.xlu0 %3125
        %3127 = vrot.lane.b32.xlu0 %v3036, 16
        %v3128 = vpop.permute.xlu0 %3127
        %3129 = vrot.lane.b32.xlu0 %v3037, 16
        %v3130 = vpop.permute.xlu0 %3129
        %3131 = vrot.lane.b32.xlu0 %v3038, 16
        %v3132 = vpop.permute.xlu0 %3131
        %3133 = vrot.lane.b32.xlu0 %v3039, 16
        %v3134 = vpop.permute.xlu0 %3133
        %3135 = vrot.lane.b32.xlu0 %v3040, 16
        %v3136 = vpop.permute.xlu0 %3135
        %3169 = vst.msk [vmem:[#allocation3] sm:$0xff] %vm1210, %v3074
        %3170 = vst.msk [vmem:[#allocation3 + $0x8] sm:$0xff] %vm1210, %v3076
        %3171 = vst.msk [vmem:[#allocation3 + $0x10] sm:$0xff] %vm1210, %v3078
        %3172 = vst.msk [vmem:[#allocation3 + $0x18] sm:$0xff] %vm1210, %v3080
        %3173 = vst.msk [vmem:[#allocation3 + $0x20] sm:$0xff] %vm1210, %v3082
        %3174 = vst.msk [vmem:[#allocation3 + $0x28] sm:$0xff] %vm1210, %v3084
        %3175 = vst.msk [vmem:[#allocation3 + $0x30] sm:$0xff] %vm1210, %v3086
        %3176 = vst.msk [vmem:[#allocation3 + $0x38] sm:$0xff] %vm1210, %v3088
        %3177 = vst.msk [vmem:[#allocation3 + $0x40] sm:$0xff] %vm1210, %v3090
        %3178 = vst.msk [vmem:[#allocation3 + $0x48] sm:$0xff] %vm1210, %v3092
        %3179 = vst.msk [vmem:[#allocation3 + $0x50] sm:$0xff] %vm1210, %v3094
        %3180 = vst.msk [vmem:[#allocation3 + $0x58] sm:$0xff] %vm1210, %v3096
        %3181 = vst.msk [vmem:[#allocation3 + $0x60] sm:$0xff] %vm1210, %v3098
        %3182 = vst.msk [vmem:[#allocation3 + $0x68] sm:$0xff] %vm1210, %v3100
        %3183 = vst.msk [vmem:[#allocation3 + $0x70] sm:$0xff] %vm1210, %v3102
        %3184 = vst.msk [vmem:[#allocation3 + $0x78] sm:$0xff] %vm1210, %v3104
        %3185 = vst.msk [vmem:[#allocation3 + $0x80] sm:$0xff] %vm1210, %v3106
        %3186 = vst.msk [vmem:[#allocation3 + $0x88] sm:$0xff] %vm1210, %v3108
        %3187 = vst.msk [vmem:[#allocation3 + $0x90] sm:$0xff] %vm1210, %v3110
        %3188 = vst.msk [vmem:[#allocation3 + $0x98] sm:$0xff] %vm1210, %v3112
        %3189 = vst.msk [vmem:[#allocation3 + $0xa0] sm:$0xff] %vm1210, %v3114
        %3190 = vst.msk [vmem:[#allocation3 + $0xa8] sm:$0xff] %vm1210, %v3116
        %3191 = vst.msk [vmem:[#allocation3 + $0xb0] sm:$0xff] %vm1210, %v3118
        %3192 = vst.msk [vmem:[#allocation3 + $0xb8] sm:$0xff] %vm1210, %v3120
        %3193 = vst.msk [vmem:[#allocation3 + $0xc0] sm:$0xff] %vm1210, %v3122
        %3194 = vst.msk [vmem:[#allocation3 + $0xc8] sm:$0xff] %vm1210, %v3124
        %3195 = vst.msk [vmem:[#allocation3 + $0xd0] sm:$0xff] %vm1210, %v3126
        %3196 = vst.msk [vmem:[#allocation3 + $0xd8] sm:$0xff] %vm1210, %v3128
        %3197 = vst.msk [vmem:[#allocation3 + $0xe0] sm:$0xff] %vm1210, %v3130
        %3198 = vst.msk [vmem:[#allocation3 + $0xe8] sm:$0xff] %vm1210, %v3132
        %3199 = vst.msk [vmem:[#allocation3 + $0xf0] sm:$0xff] %vm1210, %v3134
        %3200 = vst.msk [vmem:[#allocation3 + $0xf8] sm:$0xff] %vm1210, %v3136
        %v3201 = vld [vmem:[%s374 + $0x2] sm:$0xff]
        %v3202 = vld [vmem:[%s374 + $0xa] sm:$0xff]
        %v3203 = vld [vmem:[%s374 + $0x1a] sm:$0xff]
        %v3204 = vld [vmem:[%s374 + $0x22] sm:$0xff]
        %v3205 = vld [vmem:[%s374 + $0x32] sm:$0xff]
        %v3206 = vld [vmem:[%s374 + $0x3a] sm:$0xff]
        %v3207 = vld [vmem:[%s374 + $0x4a] sm:$0xff]
        %v3208 = vld [vmem:[%s374 + $0x52] sm:$0xff]
        %v3209 = vld [vmem:[%s374 + $0x62] sm:$0xff]
        %v3210 = vld [vmem:[%s374 + $0x6a] sm:$0xff]
        %v3211 = vld [vmem:[%s374 + $0x7a] sm:$0xff]
        %v3212 = vld [vmem:[%s374 + $0x82] sm:$0xff]
        %v3213 = vld [vmem:[%s374 + $0x92] sm:$0xff]
        %v3214 = vld [vmem:[%s374 + $0x9a] sm:$0xff]
        %v3215 = vld [vmem:[%s374 + $0xaa] sm:$0xff]
        %v3216 = vld [vmem:[%s374 + $0xb2] sm:$0xff]
        %v3217 = vld [vmem:[%s374 + $0xc2] sm:$0xff]
        %v3218 = vld [vmem:[%s374 + $0xca] sm:$0xff]
        %v3219 = vld [vmem:[%s374 + $0xda] sm:$0xff]
        %v3220 = vld [vmem:[%s374 + $0xe2] sm:$0xff]
        %v3221 = vld [vmem:[%s374 + $0xf2] sm:$0xff]
        %v3222 = vld [vmem:[%s374 + $0xfa] sm:$0xff]
        %v3223 = vld [vmem:[%s374 + $0x10a] sm:$0xff]
        %v3224 = vld [vmem:[%s374 + $0x112] sm:$0xff]
        %v3225 = vld [vmem:[%s374 + $0x122] sm:$0xff]
        %v3226 = vld [vmem:[%s374 + $0x12a] sm:$0xff]
        %v3227 = vld [vmem:[%s374 + $0x13a] sm:$0xff]
        %v3228 = vld [vmem:[%s374 + $0x142] sm:$0xff]
        %v3229 = vld [vmem:[%s374 + $0x152] sm:$0xff]
        %v3230 = vld [vmem:[%s374 + $0x15a] sm:$0xff]
        %v3231 = vld [vmem:[%s374 + $0x16a] sm:$0xff]
        %v3232 = vld [vmem:[%s374 + $0x172] sm:$0xff]
        %3265 = vrot.lane.b32.xlu0 %v3201, 20
        %v3266 = vpop.permute.xlu0 %3265
        %3267 = vrot.lane.b32.xlu0 %v3202, 20
        %v3268 = vpop.permute.xlu0 %3267
        %3269 = vrot.lane.b32.xlu0 %v3203, 20
        %v3270 = vpop.permute.xlu0 %3269
        %3271 = vrot.lane.b32.xlu0 %v3204, 20
        %v3272 = vpop.permute.xlu0 %3271
        %3273 = vrot.lane.b32.xlu0 %v3205, 20
        %v3274 = vpop.permute.xlu0 %3273
        %3275 = vrot.lane.b32.xlu0 %v3206, 20
        %v3276 = vpop.permute.xlu0 %3275
        %3277 = vrot.lane.b32.xlu0 %v3207, 20
        %v3278 = vpop.permute.xlu0 %3277
        %3279 = vrot.lane.b32.xlu0 %v3208, 20
        %v3280 = vpop.permute.xlu0 %3279
        %3281 = vrot.lane.b32.xlu0 %v3209, 20
        %v3282 = vpop.permute.xlu0 %3281
        %3283 = vrot.lane.b32.xlu0 %v3210, 20
        %v3284 = vpop.permute.xlu0 %3283
        %3285 = vrot.lane.b32.xlu0 %v3211, 20
        %v3286 = vpop.permute.xlu0 %3285
        %3287 = vrot.lane.b32.xlu0 %v3212, 20
        %v3288 = vpop.permute.xlu0 %3287
        %3289 = vrot.lane.b32.xlu0 %v3213, 20
        %v3290 = vpop.permute.xlu0 %3289
        %3291 = vrot.lane.b32.xlu0 %v3214, 20
        %v3292 = vpop.permute.xlu0 %3291
        %3293 = vrot.lane.b32.xlu0 %v3215, 20
        %v3294 = vpop.permute.xlu0 %3293
        %3295 = vrot.lane.b32.xlu0 %v3216, 20
        %v3296 = vpop.permute.xlu0 %3295
        %3297 = vrot.lane.b32.xlu0 %v3217, 20
        %v3298 = vpop.permute.xlu0 %3297
        %3299 = vrot.lane.b32.xlu0 %v3218, 20
        %v3300 = vpop.permute.xlu0 %3299
        %3301 = vrot.lane.b32.xlu0 %v3219, 20
        %v3302 = vpop.permute.xlu0 %3301
        %3303 = vrot.lane.b32.xlu0 %v3220, 20
        %v3304 = vpop.permute.xlu0 %3303
        %3305 = vrot.lane.b32.xlu0 %v3221, 20
        %v3306 = vpop.permute.xlu0 %3305
        %3307 = vrot.lane.b32.xlu0 %v3222, 20
        %v3308 = vpop.permute.xlu0 %3307
        %3309 = vrot.lane.b32.xlu0 %v3223, 20
        %v3310 = vpop.permute.xlu0 %3309
        %3311 = vrot.lane.b32.xlu0 %v3224, 20
        %v3312 = vpop.permute.xlu0 %3311
        %3313 = vrot.lane.b32.xlu0 %v3225, 20
        %v3314 = vpop.permute.xlu0 %3313
        %3315 = vrot.lane.b32.xlu0 %v3226, 20
        %v3316 = vpop.permute.xlu0 %3315
        %3317 = vrot.lane.b32.xlu0 %v3227, 20
        %v3318 = vpop.permute.xlu0 %3317
        %3319 = vrot.lane.b32.xlu0 %v3228, 20
        %v3320 = vpop.permute.xlu0 %3319
        %3321 = vrot.lane.b32.xlu0 %v3229, 20
        %v3322 = vpop.permute.xlu0 %3321
        %3323 = vrot.lane.b32.xlu0 %v3230, 20
        %v3324 = vpop.permute.xlu0 %3323
        %3325 = vrot.lane.b32.xlu0 %v3231, 20
        %v3326 = vpop.permute.xlu0 %3325
        %3327 = vrot.lane.b32.xlu0 %v3232, 20
        %v3328 = vpop.permute.xlu0 %3327
        %3361 = vst.msk [vmem:[#allocation3] sm:$0xff] %vm1403, %v3266
        %3362 = vst.msk [vmem:[#allocation3 + $0x8] sm:$0xff] %vm1403, %v3268
        %3363 = vst.msk [vmem:[#allocation3 + $0x10] sm:$0xff] %vm1403, %v3270
        %3364 = vst.msk [vmem:[#allocation3 + $0x18] sm:$0xff] %vm1403, %v3272
        %3365 = vst.msk [vmem:[#allocation3 + $0x20] sm:$0xff] %vm1403, %v3274
        %3366 = vst.msk [vmem:[#allocation3 + $0x28] sm:$0xff] %vm1403, %v3276
        %3367 = vst.msk [vmem:[#allocation3 + $0x30] sm:$0xff] %vm1403, %v3278
        %3368 = vst.msk [vmem:[#allocation3 + $0x38] sm:$0xff] %vm1403, %v3280
        %3369 = vst.msk [vmem:[#allocation3 + $0x40] sm:$0xff] %vm1403, %v3282
        %3370 = vst.msk [vmem:[#allocation3 + $0x48] sm:$0xff] %vm1403, %v3284
        %3371 = vst.msk [vmem:[#allocation3 + $0x50] sm:$0xff] %vm1403, %v3286
        %3372 = vst.msk [vmem:[#allocation3 + $0x58] sm:$0xff] %vm1403, %v3288
        %3373 = vst.msk [vmem:[#allocation3 + $0x60] sm:$0xff] %vm1403, %v3290
        %3374 = vst.msk [vmem:[#allocation3 + $0x68] sm:$0xff] %vm1403, %v3292
        %3375 = vst.msk [vmem:[#allocation3 + $0x70] sm:$0xff] %vm1403, %v3294
        %3376 = vst.msk [vmem:[#allocation3 + $0x78] sm:$0xff] %vm1403, %v3296
        %3377 = vst.msk [vmem:[#allocation3 + $0x80] sm:$0xff] %vm1403, %v3298
        %3378 = vst.msk [vmem:[#allocation3 + $0x88] sm:$0xff] %vm1403, %v3300
        %3379 = vst.msk [vmem:[#allocation3 + $0x90] sm:$0xff] %vm1403, %v3302
        %3380 = vst.msk [vmem:[#allocation3 + $0x98] sm:$0xff] %vm1403, %v3304
        %3381 = vst.msk [vmem:[#allocation3 + $0xa0] sm:$0xff] %vm1403, %v3306
        %3382 = vst.msk [vmem:[#allocation3 + $0xa8] sm:$0xff] %vm1403, %v3308
        %3383 = vst.msk [vmem:[#allocation3 + $0xb0] sm:$0xff] %vm1403, %v3310
        %3384 = vst.msk [vmem:[#allocation3 + $0xb8] sm:$0xff] %vm1403, %v3312
        %3385 = vst.msk [vmem:[#allocation3 + $0xc0] sm:$0xff] %vm1403, %v3314
        %3386 = vst.msk [vmem:[#allocation3 + $0xc8] sm:$0xff] %vm1403, %v3316
        %3387 = vst.msk [vmem:[#allocation3 + $0xd0] sm:$0xff] %vm1403, %v3318
        %3388 = vst.msk [vmem:[#allocation3 + $0xd8] sm:$0xff] %vm1403, %v3320
        %3389 = vst.msk [vmem:[#allocation3 + $0xe0] sm:$0xff] %vm1403, %v3322
        %3390 = vst.msk [vmem:[#allocation3 + $0xe8] sm:$0xff] %vm1403, %v3324
        %3391 = vst.msk [vmem:[#allocation3 + $0xf0] sm:$0xff] %vm1403, %v3326
        %3392 = vst.msk [vmem:[#allocation3 + $0xf8] sm:$0xff] %vm1403, %v3328
        %v3393 = vld [vmem:[%s1436] sm:$0xff]
        %v3394 = vld [vmem:[%s1436 + $0x8] sm:$0xff]
        %v3395 = vld [vmem:[%s1436 + $0x18] sm:$0xff]
        %v3396 = vld [vmem:[%s1436 + $0x20] sm:$0xff]
        %v3397 = vld [vmem:[%s1436 + $0x30] sm:$0xff]
        %v3398 = vld [vmem:[%s1436 + $0x38] sm:$0xff]
        %v3399 = vld [vmem:[%s1436 + $0x48] sm:$0xff]
        %v3400 = vld [vmem:[%s1436 + $0x50] sm:$0xff]
        %v3401 = vld [vmem:[%s1436 + $0x60] sm:$0xff]
        %v3402 = vld [vmem:[%s1436 + $0x68] sm:$0xff]
        %v3403 = vld [vmem:[%s1436 + $0x78] sm:$0xff]
        %v3404 = vld [vmem:[%s1436 + $0x80] sm:$0xff]
        %v3405 = vld [vmem:[%s1436 + $0x90] sm:$0xff]
        %v3406 = vld [vmem:[%s1436 + $0x98] sm:$0xff]
        %v3407 = vld [vmem:[%s1436 + $0xa8] sm:$0xff]
        %v3408 = vld [vmem:[%s1436 + $0xb0] sm:$0xff]
        %v3409 = vld [vmem:[%s1436 + $0xc0] sm:$0xff]
        %v3410 = vld [vmem:[%s1436 + $0xc8] sm:$0xff]
        %v3411 = vld [vmem:[%s1436 + $0xd8] sm:$0xff]
        %v3412 = vld [vmem:[%s1436 + $0xe0] sm:$0xff]
        %v3413 = vld [vmem:[%s1436 + $0xf0] sm:$0xff]
        %v3414 = vld [vmem:[%s1436 + $0xf8] sm:$0xff]
        %v3415 = vld [vmem:[%s1436 + $0x108] sm:$0xff]
        %v3416 = vld [vmem:[%s1436 + $0x110] sm:$0xff]
        %v3417 = vld [vmem:[%s1436 + $0x120] sm:$0xff]
        %v3418 = vld [vmem:[%s1436 + $0x128] sm:$0xff]
        %v3419 = vld [vmem:[%s1436 + $0x138] sm:$0xff]
        %v3420 = vld [vmem:[%s1436 + $0x140] sm:$0xff]
        %v3421 = vld [vmem:[%s1436 + $0x150] sm:$0xff]
        %v3422 = vld [vmem:[%s1436 + $0x158] sm:$0xff]
        %v3423 = vld [vmem:[%s1436 + $0x168] sm:$0xff]
        %v3424 = vld [vmem:[%s1436 + $0x170] sm:$0xff]
        %3457 = vrot.lane.b32.xlu0 %v3393, 24
        %v3458 = vpop.permute.xlu0 %3457
        %3459 = vrot.lane.b32.xlu0 %v3394, 24
        %v3460 = vpop.permute.xlu0 %3459
        %3461 = vrot.lane.b32.xlu0 %v3395, 24
        %v3462 = vpop.permute.xlu0 %3461
        %3463 = vrot.lane.b32.xlu0 %v3396, 24
        %v3464 = vpop.permute.xlu0 %3463
        %3465 = vrot.lane.b32.xlu0 %v3397, 24
        %v3466 = vpop.permute.xlu0 %3465
        %3467 = vrot.lane.b32.xlu0 %v3398, 24
        %v3468 = vpop.permute.xlu0 %3467
        %3469 = vrot.lane.b32.xlu0 %v3399, 24
        %v3470 = vpop.permute.xlu0 %3469
        %3471 = vrot.lane.b32.xlu0 %v3400, 24
        %v3472 = vpop.permute.xlu0 %3471
        %3473 = vrot.lane.b32.xlu0 %v3401, 24
        %v3474 = vpop.permute.xlu0 %3473
        %3475 = vrot.lane.b32.xlu0 %v3402, 24
        %v3476 = vpop.permute.xlu0 %3475
        %3477 = vrot.lane.b32.xlu0 %v3403, 24
        %v3478 = vpop.permute.xlu0 %3477
        %3479 = vrot.lane.b32.xlu0 %v3404, 24
        %v3480 = vpop.permute.xlu0 %3479
        %3481 = vrot.lane.b32.xlu0 %v3405, 24
        %v3482 = vpop.permute.xlu0 %3481
        %3483 = vrot.lane.b32.xlu0 %v3406, 24
        %v3484 = vpop.permute.xlu0 %3483
        %3485 = vrot.lane.b32.xlu0 %v3407, 24
        %v3486 = vpop.permute.xlu0 %3485
        %3487 = vrot.lane.b32.xlu0 %v3408, 24
        %v3488 = vpop.permute.xlu0 %3487
        %3489 = vrot.lane.b32.xlu0 %v3409, 24
        %v3490 = vpop.permute.xlu0 %3489
        %3491 = vrot.lane.b32.xlu0 %v3410, 24
        %v3492 = vpop.permute.xlu0 %3491
        %3493 = vrot.lane.b32.xlu0 %v3411, 24
        %v3494 = vpop.permute.xlu0 %3493
        %3495 = vrot.lane.b32.xlu0 %v3412, 24
        %v3496 = vpop.permute.xlu0 %3495
        %3497 = vrot.lane.b32.xlu0 %v3413, 24
        %v3498 = vpop.permute.xlu0 %3497
        %3499 = vrot.lane.b32.xlu0 %v3414, 24
        %v3500 = vpop.permute.xlu0 %3499
        %3501 = vrot.lane.b32.xlu0 %v3415, 24
        %v3502 = vpop.permute.xlu0 %3501
        %3503 = vrot.lane.b32.xlu0 %v3416, 24
        %v3504 = vpop.permute.xlu0 %3503
        %3505 = vrot.lane.b32.xlu0 %v3417, 24
        %v3506 = vpop.permute.xlu0 %3505
        %3507 = vrot.lane.b32.xlu0 %v3418, 24
        %v3508 = vpop.permute.xlu0 %3507
        %3509 = vrot.lane.b32.xlu0 %v3419, 24
        %v3510 = vpop.permute.xlu0 %3509
        %3511 = vrot.lane.b32.xlu0 %v3420, 24
        %v3512 = vpop.permute.xlu0 %3511
        %3513 = vrot.lane.b32.xlu0 %v3421, 24
        %v3514 = vpop.permute.xlu0 %3513
        %3515 = vrot.lane.b32.xlu0 %v3422, 24
        %v3516 = vpop.permute.xlu0 %3515
        %3517 = vrot.lane.b32.xlu0 %v3423, 24
        %v3518 = vpop.permute.xlu0 %3517
        %3519 = vrot.lane.b32.xlu0 %v3424, 24
        %v3520 = vpop.permute.xlu0 %3519
        %3553 = vst.msk [vmem:[#allocation3] sm:$0xff] %vm1597, %v3458
        %3554 = vst.msk [vmem:[#allocation3 + $0x8] sm:$0xff] %vm1597, %v3460
        %3555 = vst.msk [vmem:[#allocation3 + $0x10] sm:$0xff] %vm1597, %v3462
        %3556 = vst.msk [vmem:[#allocation3 + $0x18] sm:$0xff] %vm1597, %v3464
        %3557 = vst.msk [vmem:[#allocation3 + $0x20] sm:$0xff] %vm1597, %v3466
        %3558 = vst.msk [vmem:[#allocation3 + $0x28] sm:$0xff] %vm1597, %v3468
        %3559 = vst.msk [vmem:[#allocation3 + $0x30] sm:$0xff] %vm1597, %v3470
        %3560 = vst.msk [vmem:[#allocation3 + $0x38] sm:$0xff] %vm1597, %v3472
        %3561 = vst.msk [vmem:[#allocation3 + $0x40] sm:$0xff] %vm1597, %v3474
        %3562 = vst.msk [vmem:[#allocation3 + $0x48] sm:$0xff] %vm1597, %v3476
        %3563 = vst.msk [vmem:[#allocation3 + $0x50] sm:$0xff] %vm1597, %v3478
        %3564 = vst.msk [vmem:[#allocation3 + $0x58] sm:$0xff] %vm1597, %v3480
        %3565 = vst.msk [vmem:[#allocation3 + $0x60] sm:$0xff] %vm1597, %v3482
        %3566 = vst.msk [vmem:[#allocation3 + $0x68] sm:$0xff] %vm1597, %v3484
        %3567 = vst.msk [vmem:[#allocation3 + $0x70] sm:$0xff] %vm1597, %v3486
        %3568 = vst.msk [vmem:[#allocation3 + $0x78] sm:$0xff] %vm1597, %v3488
        %3569 = vst.msk [vmem:[#allocation3 + $0x80] sm:$0xff] %vm1597, %v3490
        %3570 = vst.msk [vmem:[#allocation3 + $0x88] sm:$0xff] %vm1597, %v3492
        %3571 = vst.msk [vmem:[#allocation3 + $0x90] sm:$0xff] %vm1597, %v3494
        %3572 = vst.msk [vmem:[#allocation3 + $0x98] sm:$0xff] %vm1597, %v3496
        %3573 = vst.msk [vmem:[#allocation3 + $0xa0] sm:$0xff] %vm1597, %v3498
        %3574 = vst.msk [vmem:[#allocation3 + $0xa8] sm:$0xff] %vm1597, %v3500
        %3575 = vst.msk [vmem:[#allocation3 + $0xb0] sm:$0xff] %vm1597, %v3502
        %3576 = vst.msk [vmem:[#allocation3 + $0xb8] sm:$0xff] %vm1597, %v3504
        %3577 = vst.msk [vmem:[#allocation3 + $0xc0] sm:$0xff] %vm1597, %v3506
        %3578 = vst.msk [vmem:[#allocation3 + $0xc8] sm:$0xff] %vm1597, %v3508
        %3579 = vst.msk [vmem:[#allocation3 + $0xd0] sm:$0xff] %vm1597, %v3510
        %3580 = vst.msk [vmem:[#allocation3 + $0xd8] sm:$0xff] %vm1597, %v3512
        %3581 = vst.msk [vmem:[#allocation3 + $0xe0] sm:$0xff] %vm1597, %v3514
        %3582 = vst.msk [vmem:[#allocation3 + $0xe8] sm:$0xff] %vm1597, %v3516
        %3583 = vst.msk [vmem:[#allocation3 + $0xf0] sm:$0xff] %vm1597, %v3518
        %3584 = vst.msk [vmem:[#allocation3 + $0xf8] sm:$0xff] %vm1597, %v3520
        %v3585 = vld [vmem:[%s1436 + $0x1] sm:$0xff]
        %v3586 = vld [vmem:[%s1436 + $0x9] sm:$0xff]
        %v3587 = vld [vmem:[%s1436 + $0x19] sm:$0xff]
        %v3588 = vld [vmem:[%s1436 + $0x21] sm:$0xff]
        %v3589 = vld [vmem:[%s1436 + $0x31] sm:$0xff]
        %v3590 = vld [vmem:[%s1436 + $0x39] sm:$0xff]
        %v3591 = vld [vmem:[%s1436 + $0x49] sm:$0xff]
        %v3592 = vld [vmem:[%s1436 + $0x51] sm:$0xff]
        %v3593 = vld [vmem:[%s1436 + $0x61] sm:$0xff]
        %v3594 = vld [vmem:[%s1436 + $0x69] sm:$0xff]
        %v3595 = vld [vmem:[%s1436 + $0x79] sm:$0xff]
        %v3596 = vld [vmem:[%s1436 + $0x81] sm:$0xff]
        %v3597 = vld [vmem:[%s1436 + $0x91] sm:$0xff]
        %v3598 = vld [vmem:[%s1436 + $0x99] sm:$0xff]
        %v3599 = vld [vmem:[%s1436 + $0xa9] sm:$0xff]
        %v3600 = vld [vmem:[%s1436 + $0xb1] sm:$0xff]
        %v3601 = vld [vmem:[%s1436 + $0xc1] sm:$0xff]
        %v3602 = vld [vmem:[%s1436 + $0xc9] sm:$0xff]
        %v3603 = vld [vmem:[%s1436 + $0xd9] sm:$0xff]
        %v3604 = vld [vmem:[%s1436 + $0xe1] sm:$0xff]
        %v3605 = vld [vmem:[%s1436 + $0xf1] sm:$0xff]
        %v3606 = vld [vmem:[%s1436 + $0xf9] sm:$0xff]
        %v3607 = vld [vmem:[%s1436 + $0x109] sm:$0xff]
        %v3608 = vld [vmem:[%s1436 + $0x111] sm:$0xff]
        %v3609 = vld [vmem:[%s1436 + $0x121] sm:$0xff]
        %v3610 = vld [vmem:[%s1436 + $0x129] sm:$0xff]
        %v3611 = vld [vmem:[%s1436 + $0x139] sm:$0xff]
        %v3612 = vld [vmem:[%s1436 + $0x141] sm:$0xff]
        %v3613 = vld [vmem:[%s1436 + $0x151] sm:$0xff]
        %v3614 = vld [vmem:[%s1436 + $0x159] sm:$0xff]
        %v3615 = vld [vmem:[%s1436 + $0x169] sm:$0xff]
        %v3616 = vld [vmem:[%s1436 + $0x171] sm:$0xff]
        %3649 = vrot.lane.b32.xlu0 %v3585, 28
        %v3650 = vpop.permute.xlu0 %3649
        %3651 = vrot.lane.b32.xlu0 %v3586, 28
        %v3652 = vpop.permute.xlu0 %3651
        %3653 = vrot.lane.b32.xlu0 %v3587, 28
        %v3654 = vpop.permute.xlu0 %3653
        %3655 = vrot.lane.b32.xlu0 %v3588, 28
        %v3656 = vpop.permute.xlu0 %3655
        %3657 = vrot.lane.b32.xlu0 %v3589, 28
        %v3658 = vpop.permute.xlu0 %3657
        %3659 = vrot.lane.b32.xlu0 %v3590, 28
        %v3660 = vpop.permute.xlu0 %3659
        %3661 = vrot.lane.b32.xlu0 %v3591, 28
        %v3662 = vpop.permute.xlu0 %3661
        %3663 = vrot.lane.b32.xlu0 %v3592, 28
        %v3664 = vpop.permute.xlu0 %3663
        %3665 = vrot.lane.b32.xlu0 %v3593, 28
        %v3666 = vpop.permute.xlu0 %3665
        %3667 = vrot.lane.b32.xlu0 %v3594, 28
        %v3668 = vpop.permute.xlu0 %3667
        %3669 = vrot.lane.b32.xlu0 %v3595, 28
        %v3670 = vpop.permute.xlu0 %3669
        %3671 = vrot.lane.b32.xlu0 %v3596, 28
        %v3672 = vpop.permute.xlu0 %3671
        %3673 = vrot.lane.b32.xlu0 %v3597, 28
        %v3674 = vpop.permute.xlu0 %3673
        %3675 = vrot.lane.b32.xlu0 %v3598, 28
        %v3676 = vpop.permute.xlu0 %3675
        %3677 = vrot.lane.b32.xlu0 %v3599, 28
        %v3678 = vpop.permute.xlu0 %3677
        %3679 = vrot.lane.b32.xlu0 %v3600, 28
        %v3680 = vpop.permute.xlu0 %3679
        %3681 = vrot.lane.b32.xlu0 %v3601, 28
        %v3682 = vpop.permute.xlu0 %3681
        %3683 = vrot.lane.b32.xlu0 %v3602, 28
        %v3684 = vpop.permute.xlu0 %3683
        %3685 = vrot.lane.b32.xlu0 %v3603, 28
        %v3686 = vpop.permute.xlu0 %3685
        %3687 = vrot.lane.b32.xlu0 %v3604, 28
        %v3688 = vpop.permute.xlu0 %3687
        %3689 = vrot.lane.b32.xlu0 %v3605, 28
        %v3690 = vpop.permute.xlu0 %3689
        %3691 = vrot.lane.b32.xlu0 %v3606, 28
        %v3692 = vpop.permute.xlu0 %3691
        %3693 = vrot.lane.b32.xlu0 %v3607, 28
        %v3694 = vpop.permute.xlu0 %3693
        %3695 = vrot.lane.b32.xlu0 %v3608, 28
        %v3696 = vpop.permute.xlu0 %3695
        %3697 = vrot.lane.b32.xlu0 %v3609, 28
        %v3698 = vpop.permute.xlu0 %3697
        %3699 = vrot.lane.b32.xlu0 %v3610, 28
        %v3700 = vpop.permute.xlu0 %3699
        %3701 = vrot.lane.b32.xlu0 %v3611, 28
        %v3702 = vpop.permute.xlu0 %3701
        %3703 = vrot.lane.b32.xlu0 %v3612, 28
        %v3704 = vpop.permute.xlu0 %3703
        %3705 = vrot.lane.b32.xlu0 %v3613, 28
        %v3706 = vpop.permute.xlu0 %3705
        %3707 = vrot.lane.b32.xlu0 %v3614, 28
        %v3708 = vpop.permute.xlu0 %3707
        %3709 = vrot.lane.b32.xlu0 %v3615, 28
        %v3710 = vpop.permute.xlu0 %3709
        %3711 = vrot.lane.b32.xlu0 %v3616, 28
        %v3712 = vpop.permute.xlu0 %3711
        %3745 = vst.msk [vmem:[#allocation3] sm:$0xff] %vm1790, %v3650
        %3746 = vst.msk [vmem:[#allocation3 + $0x8] sm:$0xff] %vm1790, %v3652
        %3747 = vst.msk [vmem:[#allocation3 + $0x10] sm:$0xff] %vm1790, %v3654
        %3748 = vst.msk [vmem:[#allocation3 + $0x18] sm:$0xff] %vm1790, %v3656
        %3749 = vst.msk [vmem:[#allocation3 + $0x20] sm:$0xff] %vm1790, %v3658
        %3750 = vst.msk [vmem:[#allocation3 + $0x28] sm:$0xff] %vm1790, %v3660
        %3751 = vst.msk [vmem:[#allocation3 + $0x30] sm:$0xff] %vm1790, %v3662
        %3752 = vst.msk [vmem:[#allocation3 + $0x38] sm:$0xff] %vm1790, %v3664
        %3753 = vst.msk [vmem:[#allocation3 + $0x40] sm:$0xff] %vm1790, %v3666
        %3754 = vst.msk [vmem:[#allocation3 + $0x48] sm:$0xff] %vm1790, %v3668
        %3755 = vst.msk [vmem:[#allocation3 + $0x50] sm:$0xff] %vm1790, %v3670
        %3756 = vst.msk [vmem:[#allocation3 + $0x58] sm:$0xff] %vm1790, %v3672
        %3757 = vst.msk [vmem:[#allocation3 + $0x60] sm:$0xff] %vm1790, %v3674
        %3758 = vst.msk [vmem:[#allocation3 + $0x68] sm:$0xff] %vm1790, %v3676
        %3759 = vst.msk [vmem:[#allocation3 + $0x70] sm:$0xff] %vm1790, %v3678
        %3760 = vst.msk [vmem:[#allocation3 + $0x78] sm:$0xff] %vm1790, %v3680
        %3761 = vst.msk [vmem:[#allocation3 + $0x80] sm:$0xff] %vm1790, %v3682
        %3762 = vst.msk [vmem:[#allocation3 + $0x88] sm:$0xff] %vm1790, %v3684
        %3763 = vst.msk [vmem:[#allocation3 + $0x90] sm:$0xff] %vm1790, %v3686
        %3764 = vst.msk [vmem:[#allocation3 + $0x98] sm:$0xff] %vm1790, %v3688
        %3765 = vst.msk [vmem:[#allocation3 + $0xa0] sm:$0xff] %vm1790, %v3690
        %3766 = vst.msk [vmem:[#allocation3 + $0xa8] sm:$0xff] %vm1790, %v3692
        %3767 = vst.msk [vmem:[#allocation3 + $0xb0] sm:$0xff] %vm1790, %v3694
        %3768 = vst.msk [vmem:[#allocation3 + $0xb8] sm:$0xff] %vm1790, %v3696
        %3769 = vst.msk [vmem:[#allocation3 + $0xc0] sm:$0xff] %vm1790, %v3698
        %3770 = vst.msk [vmem:[#allocation3 + $0xc8] sm:$0xff] %vm1790, %v3700
        %3771 = vst.msk [vmem:[#allocation3 + $0xd0] sm:$0xff] %vm1790, %v3702
        %3772 = vst.msk [vmem:[#allocation3 + $0xd8] sm:$0xff] %vm1790, %v3704
        %3773 = vst.msk [vmem:[#allocation3 + $0xe0] sm:$0xff] %vm1790, %v3706
        %3774 = vst.msk [vmem:[#allocation3 + $0xe8] sm:$0xff] %vm1790, %v3708
        %3775 = vst.msk [vmem:[#allocation3 + $0xf0] sm:$0xff] %vm1790, %v3710
        %3776 = vst.msk [vmem:[#allocation3 + $0xf8] sm:$0xff] %vm1790, %v3712
        %v3777 = vld [vmem:[%s1436 + $0x2] sm:$0xff]
        %v3778 = vld [vmem:[%s1436 + $0xa] sm:$0xff]
        %v3779 = vld [vmem:[%s1436 + $0x1a] sm:$0xff]
        %v3780 = vld [vmem:[%s1436 + $0x22] sm:$0xff]
        %v3781 = vld [vmem:[%s1436 + $0x32] sm:$0xff]
        %v3782 = vld [vmem:[%s1436 + $0x3a] sm:$0xff]
        %v3783 = vld [vmem:[%s1436 + $0x4a] sm:$0xff]
        %v3784 = vld [vmem:[%s1436 + $0x52] sm:$0xff]
        %v3785 = vld [vmem:[%s1436 + $0x62] sm:$0xff]
        %v3786 = vld [vmem:[%s1436 + $0x6a] sm:$0xff]
        %v3787 = vld [vmem:[%s1436 + $0x7a] sm:$0xff]
        %v3788 = vld [vmem:[%s1436 + $0x82] sm:$0xff]
        %v3789 = vld [vmem:[%s1436 + $0x92] sm:$0xff]
        %v3790 = vld [vmem:[%s1436 + $0x9a] sm:$0xff]
        %v3791 = vld [vmem:[%s1436 + $0xaa] sm:$0xff]
        %v3792 = vld [vmem:[%s1436 + $0xb2] sm:$0xff]
        %v3793 = vld [vmem:[%s1436 + $0xc2] sm:$0xff]
        %v3794 = vld [vmem:[%s1436 + $0xca] sm:$0xff]
        %v3795 = vld [vmem:[%s1436 + $0xda] sm:$0xff]
        %v3796 = vld [vmem:[%s1436 + $0xe2] sm:$0xff]
        %v3797 = vld [vmem:[%s1436 + $0xf2] sm:$0xff]
        %v3798 = vld [vmem:[%s1436 + $0xfa] sm:$0xff]
        %v3799 = vld [vmem:[%s1436 + $0x10a] sm:$0xff]
        %v3800 = vld [vmem:[%s1436 + $0x112] sm:$0xff]
        %v3801 = vld [vmem:[%s1436 + $0x122] sm:$0xff]
        %v3802 = vld [vmem:[%s1436 + $0x12a] sm:$0xff]
        %v3803 = vld [vmem:[%s1436 + $0x13a] sm:$0xff]
        %v3804 = vld [vmem:[%s1436 + $0x142] sm:$0xff]
        %v3805 = vld [vmem:[%s1436 + $0x152] sm:$0xff]
        %v3806 = vld [vmem:[%s1436 + $0x15a] sm:$0xff]
        %v3807 = vld [vmem:[%s1436 + $0x16a] sm:$0xff]
        %v3808 = vld [vmem:[%s1436 + $0x172] sm:$0xff]
        %3841 = vrot.lane.b32.xlu0 %v3777, 32
        %v3842 = vpop.permute.xlu0 %3841
        %3843 = vrot.lane.b32.xlu0 %v3778, 32
        %v3844 = vpop.permute.xlu0 %3843
        %3845 = vrot.lane.b32.xlu0 %v3779, 32
        %v3846 = vpop.permute.xlu0 %3845
        %3847 = vrot.lane.b32.xlu0 %v3780, 32
        %v3848 = vpop.permute.xlu0 %3847
        %3849 = vrot.lane.b32.xlu0 %v3781, 32
        %v3850 = vpop.permute.xlu0 %3849
        %3851 = vrot.lane.b32.xlu0 %v3782, 32
        %v3852 = vpop.permute.xlu0 %3851
        %3853 = vrot.lane.b32.xlu0 %v3783, 32
        %v3854 = vpop.permute.xlu0 %3853
        %3855 = vrot.lane.b32.xlu0 %v3784, 32
        %v3856 = vpop.permute.xlu0 %3855
        %3857 = vrot.lane.b32.xlu0 %v3785, 32
        %v3858 = vpop.permute.xlu0 %3857
        %3859 = vrot.lane.b32.xlu0 %v3786, 32
        %v3860 = vpop.permute.xlu0 %3859
        %3861 = vrot.lane.b32.xlu0 %v3787, 32
        %v3862 = vpop.permute.xlu0 %3861
        %3863 = vrot.lane.b32.xlu0 %v3788, 32
        %v3864 = vpop.permute.xlu0 %3863
        %3865 = vrot.lane.b32.xlu0 %v3789, 32
        %v3866 = vpop.permute.xlu0 %3865
        %3867 = vrot.lane.b32.xlu0 %v3790, 32
        %v3868 = vpop.permute.xlu0 %3867
        %3869 = vrot.lane.b32.xlu0 %v3791, 32
        %v3870 = vpop.permute.xlu0 %3869
        %3871 = vrot.lane.b32.xlu0 %v3792, 32
        %v3872 = vpop.permute.xlu0 %3871
        %3873 = vrot.lane.b32.xlu0 %v3793, 32
        %v3874 = vpop.permute.xlu0 %3873
        %3875 = vrot.lane.b32.xlu0 %v3794, 32
        %v3876 = vpop.permute.xlu0 %3875
        %3877 = vrot.lane.b32.xlu0 %v3795, 32
        %v3878 = vpop.permute.xlu0 %3877
        %3879 = vrot.lane.b32.xlu0 %v3796, 32
        %v3880 = vpop.permute.xlu0 %3879
        %3881 = vrot.lane.b32.xlu0 %v3797, 32
        %v3882 = vpop.permute.xlu0 %3881
        %3883 = vrot.lane.b32.xlu0 %v3798, 32
        %v3884 = vpop.permute.xlu0 %3883
        %3885 = vrot.lane.b32.xlu0 %v3799, 32
        %v3886 = vpop.permute.xlu0 %3885
        %3887 = vrot.lane.b32.xlu0 %v3800, 32
        %v3888 = vpop.permute.xlu0 %3887
        %3889 = vrot.lane.b32.xlu0 %v3801, 32
        %v3890 = vpop.permute.xlu0 %3889
        %3891 = vrot.lane.b32.xlu0 %v3802, 32
        %v3892 = vpop.permute.xlu0 %3891
        %3893 = vrot.lane.b32.xlu0 %v3803, 32
        %v3894 = vpop.permute.xlu0 %3893
        %3895 = vrot.lane.b32.xlu0 %v3804, 32
        %v3896 = vpop.permute.xlu0 %3895
        %3897 = vrot.lane.b32.xlu0 %v3805, 32
        %v3898 = vpop.permute.xlu0 %3897
        %3899 = vrot.lane.b32.xlu0 %v3806, 32
        %v3900 = vpop.permute.xlu0 %3899
        %3901 = vrot.lane.b32.xlu0 %v3807, 32
        %v3902 = vpop.permute.xlu0 %3901
        %3903 = vrot.lane.b32.xlu0 %v3808, 32
        %v3904 = vpop.permute.xlu0 %3903
        %3937 = vst.msk [vmem:[#allocation3] sm:$0xff] %vm1983, %v3842
        %3938 = vst.msk [vmem:[#allocation3 + $0x8] sm:$0xff] %vm1983, %v3844
        %3939 = vst.msk [vmem:[#allocation3 + $0x10] sm:$0xff] %vm1983, %v3846
        %3940 = vst.msk [vmem:[#allocation3 + $0x18] sm:$0xff] %vm1983, %v3848
        %3941 = vst.msk [vmem:[#allocation3 + $0x20] sm:$0xff] %vm1983, %v3850
        %3942 = vst.msk [vmem:[#allocation3 + $0x28] sm:$0xff] %vm1983, %v3852
        %3943 = vst.msk [vmem:[#allocation3 + $0x30] sm:$0xff] %vm1983, %v3854
        %3944 = vst.msk [vmem:[#allocation3 + $0x38] sm:$0xff] %vm1983, %v3856
        %3945 = vst.msk [vmem:[#allocation3 + $0x40] sm:$0xff] %vm1983, %v3858
        %3946 = vst.msk [vmem:[#allocation3 + $0x48] sm:$0xff] %vm1983, %v3860
        %3947 = vst.msk [vmem:[#allocation3 + $0x50] sm:$0xff] %vm1983, %v3862
        %3948 = vst.msk [vmem:[#allocation3 + $0x58] sm:$0xff] %vm1983, %v3864
        %3949 = vst.msk [vmem:[#allocation3 + $0x60] sm:$0xff] %vm1983, %v3866
        %3950 = vst.msk [vmem:[#allocation3 + $0x68] sm:$0xff] %vm1983, %v3868
        %3951 = vst.msk [vmem:[#allocation3 + $0x70] sm:$0xff] %vm1983, %v3870
        %3952 = vst.msk [vmem:[#allocation3 + $0x78] sm:$0xff] %vm1983, %v3872
        %3953 = vst.msk [vmem:[#allocation3 + $0x80] sm:$0xff] %vm1983, %v3874
        %3954 = vst.msk [vmem:[#allocation3 + $0x88] sm:$0xff] %vm1983, %v3876
        %3955 = vst.msk [vmem:[#allocation3 + $0x90] sm:$0xff] %vm1983, %v3878
        %3956 = vst.msk [vmem:[#allocation3 + $0x98] sm:$0xff] %vm1983, %v3880
        %3957 = vst.msk [vmem:[#allocation3 + $0xa0] sm:$0xff] %vm1983, %v3882
        %3958 = vst.msk [vmem:[#allocation3 + $0xa8] sm:$0xff] %vm1983, %v3884
        %3959 = vst.msk [vmem:[#allocation3 + $0xb0] sm:$0xff] %vm1983, %v3886
        %3960 = vst.msk [vmem:[#allocation3 + $0xb8] sm:$0xff] %vm1983, %v3888
        %3961 = vst.msk [vmem:[#allocation3 + $0xc0] sm:$0xff] %vm1983, %v3890
        %3962 = vst.msk [vmem:[#allocation3 + $0xc8] sm:$0xff] %vm1983, %v3892
        %3963 = vst.msk [vmem:[#allocation3 + $0xd0] sm:$0xff] %vm1983, %v3894
        %3964 = vst.msk [vmem:[#allocation3 + $0xd8] sm:$0xff] %vm1983, %v3896
        %3965 = vst.msk [vmem:[#allocation3 + $0xe0] sm:$0xff] %vm1983, %v3898
        %3966 = vst.msk [vmem:[#allocation3 + $0xe8] sm:$0xff] %vm1983, %v3900
        %3967 = vst.msk [vmem:[#allocation3 + $0xf0] sm:$0xff] %vm1983, %v3902
        %3968 = vst.msk [vmem:[#allocation3 + $0xf8] sm:$0xff] %vm1983, %v3904
        %v3969 = vld [vmem:[#allocation3] sm:$0xff]
        %v3970 = vld [vmem:[#allocation3 + $0x8] sm:$0xff]
        %v3971 = vld [vmem:[#allocation3 + $0x10] sm:$0xff]
        %v3972 = vld [vmem:[#allocation3 + $0x18] sm:$0xff]
        %v3973 = vld [vmem:[#allocation3 + $0x20] sm:$0xff]
        %v3974 = vld [vmem:[#allocation3 + $0x28] sm:$0xff]
        %v3975 = vld [vmem:[#allocation3 + $0x30] sm:$0xff]
        %v3976 = vld [vmem:[#allocation3 + $0x38] sm:$0xff]
        %v3977 = vld [vmem:[#allocation3 + $0x40] sm:$0xff]
        %v3978 = vld [vmem:[#allocation3 + $0x48] sm:$0xff]
        %v3979 = vld [vmem:[#allocation3 + $0x50] sm:$0xff]
        %v3980 = vld [vmem:[#allocation3 + $0x58] sm:$0xff]
        %v3981 = vld [vmem:[#allocation3 + $0x60] sm:$0xff]
        %v3982 = vld [vmem:[#allocation3 + $0x68] sm:$0xff]
        %v3983 = vld [vmem:[#allocation3 + $0x70] sm:$0xff]
        %v3984 = vld [vmem:[#allocation3 + $0x78] sm:$0xff]
        %v3985 = vld [vmem:[#allocation3 + $0x80] sm:$0xff]
        %v3986 = vld [vmem:[#allocation3 + $0x88] sm:$0xff]
        %v3987 = vld [vmem:[#allocation3 + $0x90] sm:$0xff]
        %v3988 = vld [vmem:[#allocation3 + $0x98] sm:$0xff]
        %v3989 = vld [vmem:[#allocation3 + $0xa0] sm:$0xff]
        %v3990 = vld [vmem:[#allocation3 + $0xa8] sm:$0xff]
        %v3991 = vld [vmem:[#allocation3 + $0xb0] sm:$0xff]
        %v3992 = vld [vmem:[#allocation3 + $0xb8] sm:$0xff]
        %v3993 = vld [vmem:[#allocation3 + $0xc0] sm:$0xff]
        %v3994 = vld [vmem:[#allocation3 + $0xc8] sm:$0xff]
        %v3995 = vld [vmem:[#allocation3 + $0xd0] sm:$0xff]
        %v3996 = vld [vmem:[#allocation3 + $0xd8] sm:$0xff]
        %v3997 = vld [vmem:[#allocation3 + $0xe0] sm:$0xff]
        %v3998 = vld [vmem:[#allocation3 + $0xe8] sm:$0xff]
        %v3999 = vld [vmem:[#allocation3 + $0xf0] sm:$0xff]
        %v4000 = vld [vmem:[#allocation3 + $0xf8] sm:$0xff]
        %v4001 = vpack.c.bf16 %v3970, %v3969
        %v4002 = vpack.c.bf16 %v3972, %v3971
        %v4003 = vpack.c.bf16 %v3974, %v3973
        %v4004 = vpack.c.bf16 %v3976, %v3975
        %v4005 = vpack.c.bf16 %v3978, %v3977
        %v4006 = vpack.c.bf16 %v3980, %v3979
        %v4007 = vpack.c.bf16 %v3982, %v3981
        %v4008 = vpack.c.bf16 %v3984, %v3983
        %v4009 = vpack.c.bf16 %v3986, %v3985
        %v4010 = vpack.c.bf16 %v3988, %v3987
        %v4011 = vpack.c.bf16 %v3990, %v3989
        %v4012 = vpack.c.bf16 %v3992, %v3991
        %v4013 = vpack.c.bf16 %v3994, %v3993
        %v4014 = vpack.c.bf16 %v3996, %v3995
        %v4015 = vpack.c.bf16 %v3998, %v3997
        %v4016 = vpack.c.bf16 %v4000, %v3999
        %v4017 = vld [vmem:[#allocation10] sm:$0x3]
        %v4018 = vld [vmem:[#allocation12] sm:$0xf]
        %4020 = vset.pattern.permute.xlu0 0
        %4021 = vperm.xlu0 %4020, %v4018
        %v4022 = vpop.permute.xlu0 %4021
        %v4025 = vsel %vm2091, %v4017, 0
        %v4028 = vsel %vm2091, %v4001, 0
        %v4031 = vsel %vm2091, %v4002, 0
        %v4034 = vsel %vm2091, %v4003, 0
        %v4037 = vsel %vm2091, %v4004, 0
        %v4040 = vsel %vm2091, %v4005, 0
        %v4043 = vsel %vm2091, %v4006, 0
        %v4046 = vsel %vm2091, %v4007, 0
        %v4049 = vsel %vm2091, %v4008, 0
        %v4052 = vsel %vm2091, %v4009, 0
        %v4055 = vsel %vm2091, %v4010, 0
        %v4058 = vsel %vm2091, %v4011, 0
        %v4061 = vsel %vm2091, %v4012, 0
        %v4064 = vsel %vm2091, %v4013, 0
        %v4067 = vsel %vm2091, %v4014, 0
        %v4070 = vsel %vm2091, %v4015, 0
        %v4073 = vsel %vm2091, %v4016, 0
        %4075 = vmatprep.subr.bf16.mxu0 0
        %4076 = vmatpush1.bf16.xpose.msra.mxu0 %v4028
        %4077 = vmatprep.subr.bf16.mxu0 0
        %4078 = vmatpush1.bf16.xpose.msra.mxu0 %v4031
        %4079 = vmatprep.subr.bf16.mxu0 0
        %4080 = vmatpush1.bf16.xpose.msra.mxu0 %v4034
        %4081 = vmatprep.subr.bf16.mxu0 0
        %4082 = vmatpush1.bf16.xpose.msra.mxu0 %v4037
        %4083 = vmatprep.subr.bf16.mxu0 0
        %4084 = vmatpush1.bf16.xpose.msra.mxu0 %v4040
        %4085 = vmatprep.subr.bf16.mxu0 0
        %4086 = vmatpush1.bf16.xpose.msra.mxu0 %v4043
        %4087 = vmatprep.subr.bf16.mxu0 0
        %4088 = vmatpush1.bf16.xpose.msra.mxu0 %v4046
        %4089 = vmatprep.subr.bf16.mxu0 0
        %4090 = vmatpush1.bf16.xpose.msra.mxu0 %v4049
        %4091 = vmatprep.subr.bf16.mxu0 0
        %4092 = vmatpush1.bf16.xpose.msra.mxu0 %v4052
        %4093 = vmatprep.subr.bf16.mxu0 0
        %4094 = vmatpush1.bf16.xpose.msra.mxu0 %v4055
        %4095 = vmatprep.subr.bf16.mxu0 0
        %4096 = vmatpush1.bf16.xpose.msra.mxu0 %v4058
        %4097 = vmatprep.subr.bf16.mxu0 0
        %4098 = vmatpush1.bf16.xpose.msra.mxu0 %v4061
        %4099 = vmatprep.subr.bf16.mxu0 0
        %4100 = vmatpush1.bf16.xpose.msra.mxu0 %v4064
        %4101 = vmatprep.subr.bf16.mxu0 0
        %4102 = vmatpush1.bf16.xpose.msra.mxu0 %v4067
        %4103 = vmatprep.subr.bf16.mxu0 0
        %4104 = vmatpush1.bf16.xpose.msra.mxu0 %v4070
        %4105 = vmatprep.subr.bf16.mxu0 0
        %4106 = vmatpush1.bf16.xpose.msra.mxu0 %v4073
        %4107 = vmatprep.mubr.bf16.mxu0 0
        %4108 = vmatmul.mubr.bf16.gmra.mrb[0].mxu0 %v4025
        %v4109 = vpop.f32.mrb[0].mxu0
        %v4110 = vadd.f32 %v4022, %v4109
        %v4111 = vpop.f32.mrb[0].mxu0
        %v4112 = vadd.f32 %v4022, %v4111
        %v4113 = vpop.f32.mrb[0].mxu0
        %v4114 = vpop.f32.mrb[0].mxu0
        %4115 = vdwg.mxu0
        %v4116 = vld [vmem:[%s252] sm:$0xff]
        %v4117 = vld [vmem:[%s252 + $0x8] sm:$0xff]
        %v4118 = vld [vmem:[%s252 + $0x10] sm:$0xff]
        %v4119 = vld [vmem:[%s252 + $0x18] sm:$0xff]
        %v4120 = vld [vmem:[%s252 + $0x20] sm:$0xff]
        %v4121 = vld [vmem:[%s252 + $0x28] sm:$0xff]
        %v4122 = vld [vmem:[%s252 + $0x30] sm:$0xff]
        %v4123 = vld [vmem:[%s252 + $0x38] sm:$0xff]
        %v4124 = vld [vmem:[%s252 + $0x40] sm:$0xff]
        %v4125 = vld [vmem:[%s252 + $0x48] sm:$0xff]
        %v4126 = vld [vmem:[%s252 + $0x50] sm:$0xff]
        %v4127 = vld [vmem:[%s252 + $0x58] sm:$0xff]
        %v4128 = vld [vmem:[%s252 + $0x60] sm:$0xff]
        %v4129 = vld [vmem:[%s252 + $0x68] sm:$0xff]
        %v4130 = vld [vmem:[%s252 + $0x70] sm:$0xff]
        %v4131 = vld [vmem:[%s252 + $0x78] sm:$0xff]
        %v4132 = vld [vmem:[%s252 + $0x80] sm:$0xff]
        %v4133 = vld [vmem:[%s252 + $0x88] sm:$0xff]
        %v4134 = vld [vmem:[%s252 + $0x90] sm:$0xff]
        %v4135 = vld [vmem:[%s252 + $0x98] sm:$0xff]
        %v4136 = vld [vmem:[%s252 + $0xa0] sm:$0xff]
        %v4137 = vld [vmem:[%s252 + $0xa8] sm:$0xff]
        %v4138 = vld [vmem:[%s252 + $0xb0] sm:$0xff]
        %v4139 = vld [vmem:[%s252 + $0xb8] sm:$0xff]
        %v4140 = vld [vmem:[%s252 + $0xc0] sm:$0xff]
        %v4141 = vld [vmem:[%s252 + $0xc8] sm:$0xff]
        %v4142 = vld [vmem:[%s252 + $0xd0] sm:$0xff]
        %v4143 = vld [vmem:[%s252 + $0xd8] sm:$0xff]
        %v4144 = vld [vmem:[%s252 + $0xe0] sm:$0xff]
        %v4145 = vld [vmem:[%s252 + $0xe8] sm:$0xff]
        %v4146 = vld [vmem:[%s252 + $0xf0] sm:$0xff]
        %v4147 = vld [vmem:[%s252 + $0xf8] sm:$0xff]
        %v4148 = vlaneseq
        %v4149 = vshrl.u32 %v4148, 7
        %v4150 = vlaneseq
        %v4151 = vand.u32 %v4150, 127
        %vm4152 = vcmp.eq.s32.totalorder %v4149, %v4151
        %v4153 = vsel %vm4152, 1, 0
        %v4154 = vcvt.s32.f32 %v4153
        %v4156 = vsel %vm296, %v4154, 0
        %v4159 = vsel %vm296, %v4116, 0
        %v4162 = vsel %vm296, %v4117, 0
        %v4165 = vsel %vm296, %v4118, 0
        %v4168 = vsel %vm296, %v4119, 0
        %v4171 = vsel %vm296, %v4120, 0
        %v4174 = vsel %vm296, %v4121, 0
        %v4177 = vsel %vm296, %v4122, 0
        %v4180 = vsel %vm296, %v4123, 0
        %v4183 = vsel %vm296, %v4124, 0
        %v4186 = vsel %vm296, %v4125, 0
        %v4189 = vsel %vm296, %v4126, 0
        %v4192 = vsel %vm296, %v4127, 0
        %v4195 = vsel %vm296, %v4128, 0
        %v4198 = vsel %vm296, %v4129, 0
        %v4201 = vsel %vm296, %v4130, 0
        %v4204 = vsel %vm296, %v4131, 0
        %v4207 = vsel %vm296, %v4132, 0
        %v4210 = vsel %vm296, %v4133, 0
        %v4213 = vsel %vm296, %v4134, 0
        %v4216 = vsel %vm296, %v4135, 0
        %v4219 = vsel %vm296, %v4136, 0
        %v4222 = vsel %vm296, %v4137, 0
        %v4225 = vsel %vm296, %v4138, 0
        %v4228 = vsel %vm296, %v4139, 0
        %v4231 = vsel %vm296, %v4140, 0
        %v4234 = vsel %vm296, %v4141, 0
        %v4237 = vsel %vm296, %v4142, 0
        %v4240 = vsel %vm296, %v4143, 0
        %v4243 = vsel %vm296, %v4144, 0
        %v4246 = vsel %vm296, %v4145, 0
        %v4249 = vsel %vm296, %v4146, 0
        %v4252 = vsel %vm296, %v4147, 0
        %4254 = vmatprep.subr.mxu0 0.0
        %4255 = vmatpush1.xpose.msra.mxu0 %v4159
        %4256 = vmatprep.subr.mxu0 0.0
        %4257 = vmatpush1.xpose.msra.mxu0 %v4162
        %4258 = vmatprep.subr.mxu0 0.0
        %4259 = vmatpush1.xpose.msra.mxu0 %v4165
        %4260 = vmatprep.subr.mxu0 0.0
        %4261 = vmatpush1.xpose.msra.mxu0 %v4168
        %4262 = vmatprep.subr.mxu0 0.0
        %4263 = vmatpush1.xpose.msra.mxu0 %v4171
        %4264 = vmatprep.subr.mxu0 0.0
        %4265 = vmatpush1.xpose.msra.mxu0 %v4174
        %4266 = vmatprep.subr.mxu0 0.0
        %4267 = vmatpush1.xpose.msra.mxu0 %v4177
        %4268 = vmatprep.subr.mxu0 0.0
        %4269 = vmatpush1.xpose.msra.mxu0 %v4180
        %4270 = vmatprep.subr.mxu0 0.0
        %4271 = vmatpush1.xpose.msra.mxu0 %v4183
        %4272 = vmatprep.subr.mxu0 0.0
        %4273 = vmatpush1.xpose.msra.mxu0 %v4186
        %4274 = vmatprep.subr.mxu0 0.0
        %4275 = vmatpush1.xpose.msra.mxu0 %v4189
        %4276 = vmatprep.subr.mxu0 0.0
        %4277 = vmatpush1.xpose.msra.mxu0 %v4192
        %4278 = vmatprep.subr.mxu0 0.0
        %4279 = vmatpush1.xpose.msra.mxu0 %v4195
        %4280 = vmatprep.subr.mxu0 0.0
        %4281 = vmatpush1.xpose.msra.mxu0 %v4198
        %4282 = vmatprep.subr.mxu0 0.0
        %4283 = vmatpush1.xpose.msra.mxu0 %v4201
        %4284 = vmatprep.subr.mxu0 0.0
        %4285 = vmatpush1.xpose.msra.mxu0 %v4204
        %4286 = vmatprep.subr.mxu0 0.0
        %4287 = vmatpush1.xpose.msra.mxu0 %v4207
        %4288 = vmatprep.subr.mxu0 0.0
        %4289 = vmatpush1.xpose.msra.mxu0 %v4210
        %4290 = vmatprep.subr.mxu0 0.0
        %4291 = vmatpush1.xpose.msra.mxu0 %v4213
        %4292 = vmatprep.subr.mxu0 0.0
        %4293 = vmatpush1.xpose.msra.mxu0 %v4216
        %4294 = vmatprep.subr.mxu0 0.0
        %4295 = vmatpush1.xpose.msra.mxu0 %v4219
        %4296 = vmatprep.subr.mxu0 0.0
        %4297 = vmatpush1.xpose.msra.mxu0 %v4222
        %4298 = vmatprep.subr.mxu0 0.0
        %4299 = vmatpush1.xpose.msra.mxu0 %v4225
        %4300 = vmatprep.subr.mxu0 0.0
        %4301 = vmatpush1.xpose.msra.mxu0 %v4228
        %4302 = vmatprep.subr.mxu0 0.0
        %4303 = vmatpush1.xpose.msra.mxu0 %v4231
        %4304 = vmatprep.subr.mxu0 0.0
        %4305 = vmatpush1.xpose.msra.mxu0 %v4234
        %4306 = vmatprep.subr.mxu0 0.0
        %4307 = vmatpush1.xpose.msra.mxu0 %v4237
        %4308 = vmatprep.subr.mxu0 0.0
        %4309 = vmatpush1.xpose.msra.mxu0 %v4240
        %4310 = vmatprep.subr.mxu0 0.0
        %4311 = vmatpush1.xpose.msra.mxu0 %v4243
        %4312 = vmatprep.subr.mxu0 0.0
        %4313 = vmatpush1.xpose.msra.mxu0 %v4246
        %4314 = vmatprep.subr.mxu0 0.0
        %4315 = vmatpush1.xpose.msra.mxu0 %v4249
        %4316 = vmatprep.subr.mxu0 0.0
        %4317 = vmatpush1.xpose.msra.mxu0 %v4252
        %4318 = vmatprep.mubr.f32.mxu0 0.0
        %4319 = vmatmul.mubr.f32.gmra.mrb[0].mxu0 %v4156
        %v4320 = vpop.f32.mrb[0].mxu0
        %v4321 = vadd.f32 0.0, %v4320
        %v4322 = vpop.f32.mrb[0].mxu0
        %v4323 = vadd.f32 0.0, %v4322
        %4324 = vdwg.mxu0
        %v4325 = vadd.f32 %v4110, %v4321
        %v4326 = vadd.f32 %v4112, %v4323
        %v4329 = vcombine.low %v4325, %v4326
        %4331 = vst [vmem:[%s294] sm:$0xff] %v4329
        %s4332 = sand.u32 %s142, 1
        %s4333 = scalar_lea.sflag [#allocation6], %s4332
        %s4334 = sand.u32 %s142, 1
        %s4335 = smul.addr %s4334, 8
        %s4336 = scalar_lea.vmem [#allocation13], %s4335
        // Predicated region
        $region61: #{tpu_custom_call.1} parent=39 // pred_check
          %p4337 = pneg %p152
        $region62: #{tpu_custom_call.1} parent=39 // pred_check_branch
          %4339 = sbr.rel (%p4337) target = $region64
        $region63: #{tpu_custom_call.1} parent=39 // pred_region
          %s4341 = ssub.s32 128, 128
          %4342 = vsyncadd %s4333, %s4341
          %s4343 = smul.addr %s24, 2
          %s4344 = smul.addr %s4343, 64
          %s4345 = scalar_lea.hbm %s5, %s4344
          %s4347 = sshll.u32 %s4336, 4
          %s4348 = int_to_ptr.vmem [resolvable:$true] %s4347
          %4350 = dma.vmem_to_hbm [thread:$0]  %s4348, 128, %s4345, %s4333
        $region64: #{tpu_custom_call.1} parent=39 // pred_fallthru
          _
      $region40: #{tpu_custom_call.1} parent=5 // pred_fallthru
        _
      %p4351 = scmp.le.s32.totalorder 2, %s19
      // Predicated region
      $region65: #{tpu_custom_call.1} parent=5 // pred_check
        %p4352 = pneg %p4351
      $region66: #{tpu_custom_call.1} parent=5 // pred_check_branch
        %4354 = sbr.rel (%p4352) target = $region68
      $region67: #{tpu_custom_call.1} parent=5 // pred_region
        %s4355 = ssub.s32 %s19, 2
        // Predicated region
        $region69: #{tpu_custom_call.1} parent=67 // pred_check
          %p4356 = pneg %p158
        $region70: #{tpu_custom_call.1} parent=67 // pred_check_branch
          %4358 = sbr.rel (%p4356) target = $region72
        $region71: #{tpu_custom_call.1} parent=67 // pred_region
          %s4359 = sand.u32 %s143, 1
          %s4360 = scalar_lea.sflag [#allocation6], %s4359
          %s4361 = sand.u32 %s143, 1
          %s4362 = smul.addr %s4361, 8
          %s4363 = scalar_lea.vmem [#allocation13], %s4362
          %4364 = dma.done %s4360, 128
        $region72: #{tpu_custom_call.1} parent=67 // pred_fallthru
          _
      $region68: #{tpu_custom_call.1} parent=5 // pred_fallthru
        _
    $region6: #{tpu_custom_call.1} parent=1 // loop_footer
      %s23 = sadd.s32 1, %s19
    $region7: #{tpu_custom_call.1} parent=1 // loop_footer_branch
      %18 = sbr.rel target = $region3
    $region8: #{tpu_custom_call.1} parent=1 // loop_exit
      _
    %4365 = vsyncpa [#allocation5], 1
    %s4366 = scalar_lea.sflag [#allocation5], 1
    %4367 = vsyncpa %s4366, 1
    %4368 = vsyncpa [#allocation8], 1
    %4369 = vsyncpa [#allocation11], 1
    %4370 = vsyncpa [#allocation6], 1
    %s4371 = scalar_lea.sflag [#allocation6], 1
    %4372 = vsyncpa %s4371, 1

</llo_original>
